<compile_context>
chip_gen: v5e
topology: v5e:2x2
jax: 0.10.0
libtpu: 0.0.40
codegen_flags: <defaults>
</compile_context>

<pallas_src>
import functools
import math

import jax
import jax.numpy as jnp
from jax.experimental import pallas as pl
from jax.experimental.pallas import tpu as pltpu


# ----------------------------- Pallas kernel --------------------------------


def _layernorm(x, gamma, beta, eps=1e-5):
    mu = jnp.mean(x, axis=-1, keepdims=True)
    var = jnp.mean((x - mu) ** 2, axis=-1, keepdims=True)
    return (x - mu) * jax.lax.rsqrt(var + eps) * gamma + beta


def fused_transformer_kernel(x_ref, mask_ref, sel_ref,
                             wqkv_ref, bqkv_ref, wo_ref, bo_ref,
                             g1_ref, be1_ref, w1_ref, bf1_ref,
                             w2_ref, bf2_ref, g2_ref, be2_ref,
                             pw1_ref, pb1_ref, pw2_ref, pb2_ref,
                             o_ref, *, nlayers, nhead, d_model):
    """Full encoder stack (post-norm, relu FFN) + Linear->Softplus->Linear head."""
    E = d_model
    dh = E // nhead
    scale = 1.0 / math.sqrt(dh)
    bf16 = jnp.bfloat16

    x = x_ref[...].astype(jnp.float32)          # (N, E), N = seq_len * batch_size
    mask = mask_ref[...]                        # (N, N) additive bias: 0 in-group, -1e9 across
    N = x.shape[0]

    for l in range(nlayers):                    # static unroll; activation never leaves VMEM
        # --- self attention (fused QKV projection) ---
        xb = x.astype(bf16)
        qkv = jnp.dot(xb, wqkv_ref[l], preferred_element_type=jnp.float32) + bqkv_ref[l]

        attn = jnp.zeros((N, E), jnp.float32)
        for h in range(nhead):                  # static; all dots are plain 2-D MXU ops
            q = qkv[:, h * dh:(h + 1) * dh] * scale           # (N, dh)
            k = qkv[:, E + h * dh:E + (h + 1) * dh]           # (N, dh)
            v = qkv[:, 2 * E + h * dh:2 * E + (h + 1) * dh]   # (N, dh)

            # q @ k^T with block-diagonal bias => per-(seq) group attention over the batch axis
            s = jax.lax.dot_general(q, k, (((1,), (1,)), ((), ())),
                                    preferred_element_type=jnp.float32) + mask
            s = s - jnp.max(s, axis=-1, keepdims=True)
            p = jnp.exp(s)
            p = p * pl.reciprocal(jnp.sum(p, axis=-1, keepdims=True), approx=True)

            oh = jnp.dot(p, v, preferred_element_type=jnp.float32)            # (N, dh)
            # fold head h straight through its slice of the output projection
            attn = attn + jnp.dot(oh.astype(bf16), wo_ref[l, h],
                                  preferred_element_type=jnp.float32)
        attn = attn + bo_ref[l]

        # TODO(synk): dropout after attention / FFN omitted (inference / eval mode).
        x = _layernorm(x + attn, g1_ref[l], be1_ref[l])

        # --- feed forward (relu, PyTorch default) ---
        ff = jnp.dot(x.astype(bf16), w1_ref[l],
                     preferred_element_type=jnp.float32) + bf1_ref[l]
        ff = jnp.maximum(ff, 0.0)
        ff = jnp.dot(ff.astype(bf16), w2_ref[l],
                     preferred_element_type=jnp.float32) + bf2_ref[l]
        x = _layernorm(x + ff, g2_ref[l], be2_ref[l])

    # output[:, 0, :]  ==  rows with batch_idx == 0, selected with a one-hot matmul
    head = jnp.dot(sel_ref[...], x, preferred_element_type=jnp.float32)       # (seq_len, E)

    # projection head: Linear -> Softplus(beta=1, threshold=20) -> Linear
    h1 = jnp.dot(head.astype(bf16), pw1_ref[...],
                 preferred_element_type=jnp.float32) + pb1_ref[...]
    h1 = jnp.where(h1 > 20.0, h1, jnp.log1p(jnp.exp(jnp.minimum(h1, 20.0))))
    out = jnp.dot(h1.astype(bf16), pw2_ref[...],
                  preferred_element_type=jnp.float32) + pb2_ref[...]
    o_ref[...] = out.astype(o_ref.dtype)


# ------------------------------ wrapper --------------------------------------


def fused_forward(x_flat, mask, sel, params, *, nhead, nlayers):
    N, E = x_flat.shape
    n_out = sel.shape[0]
    L = nlayers
    dh = E // nhead
    d_hid = params["w1"].shape[2]

    kern = functools.partial(fused_transformer_kernel,
                             nlayers=nlayers, nhead=nhead, d_model=E)

    def full(shape):
        n = len(shape)
        return pl.BlockSpec(shape, lambda i, _n=n: (0,) * _n)

    in_specs = [
        full((N, E)),                 # x
        full((N, N)),                 # additive attention bias (block diagonal)
        full((n_out, N)),             # one-hot row selector for output[:, 0, :]
        full((L, E, 3 * E)), full((L, 1, 3 * E)),      # in_proj (stacked over layers)
        full((L, nhead, dh, E)), full((L, 1, E)),      # out_proj (pre-split per head)
        full((L, 1, E)), full((L, 1, E)),              # norm1 gamma/beta
        full((L, E, d_hid)), full((L, 1, d_hid)),      # linear1
        full((L, d_hid, E)), full((L, 1, E)),          # linear2
        full((L, 1, E)), full((L, 1, E)),              # norm2 gamma/beta
        full((E, E)), full((1, E)),                    # proj head linear1
        full((E, E)), full((1, E)),                    # proj head linear2
    ]

    # NOTE(v7x): single grid step => no double-buffering blowup; when scaling to real model
    # sizes, tile w1/w2 over d_hid (or pipeline_mode=pl.Buffered(1) on constant weight specs)
    # and keep vmem_limit_bytes explicit so the kernel still fits v7x's 64 MiB VMEM.
    return pl.pallas_call(
        kern,
        out_shape=jax.ShapeDtypeStruct((n_out, E), jnp.float32),
        grid=(1,),
        in_specs=in_specs,
        out_specs=full((n_out, E)),
        compiler_params=pltpu.CompilerParams(
            dimension_semantics=("arbitrary",),
            vmem_limit_bytes=32 * 1024 * 1024,
        ),
    )(x_flat, mask, sel,
      params["wqkv"], params["bqkv"], params["wo"], params["bo"],
      params["g1"], params["be1"], params["w1"], params["bf1"],
      params["w2"], params["bf2"], params["g2"], params["be2"],
      params["pw1"], params["pb1"], params["pw2"], params["pb2"])


# ------------------------------ model glue -----------------------------------


def positional_encoding(max_len, d_model):
    position = jnp.arange(max_len, dtype=jnp.float32)[:, None]
    div_term = jnp.exp(jnp.arange(0, d_model, 2, dtype=jnp.float32)
                       * (-math.log(10000.0) / d_model))
    pe = jnp.zeros((max_len, 1, d_model), jnp.float32)
    pe = pe.at[:, 0, 0::2].set(jnp.sin(position * div_term))
    pe = pe.at[:, 0, 1::2].set(jnp.cos(position * div_term))
    return pe


def init_params(key, ntoken, d_model, nhead, d_hid, nlayers, max_len=2048):
    keys = iter(jax.random.split(key, 5 + 8 * nlayers))
    bf16 = jnp.bfloat16
    dh = d_model // nhead

    def nrm(shape, std, dtype=jnp.float32):
        return (jax.random.normal(next(keys), shape, jnp.float32) * std).astype(dtype)

    params = {
        # xavier_normal_ on embedding weight
        "emb": nrm((ntoken, d_model), math.sqrt(2.0 / (ntoken + d_model))),
        "pe": positional_encoding(max_len, d_model),
        # projection head (stored pre-transposed (in,out); matmul weights in bf16)
        "pw1": nrm((d_model, d_model), 1.0 / math.sqrt(d_model), bf16),
        "pb1": nrm((1, d_model), 1.0 / math.sqrt(d_model)),
        "pw2": nrm((d_model, d_model), 1.0 / math.sqrt(d_model), bf16),
        "pb2": nrm((1, d_model), 1.0 / math.sqrt(d_model)),
    }

    layers = []
    for _ in range(nlayers):
        layers.append({
            "wqkv": nrm((d_model, 3 * d_model), 1.0 / math.sqrt(d_model), bf16),
            "bqkv": nrm((1, 3 * d_model), 0.02),
            # output projection stored pre-split per head: (nhead, dh, d_model)
            "wo": nrm((nhead, dh, d_model), 1.0 / math.sqrt(d_model), bf16),
            "bo": nrm((1, d_model), 0.02),
            "g1": jnp.ones((1, d_model), jnp.float32),
            "be1": jnp.zeros((1, d_model), jnp.float32),
            "w1": nrm((d_model, d_hid), 1.0 / math.sqrt(d_model), bf16),
            "bf1": nrm((1, d_hid), 0.02),
            "w2": nrm((d_hid, d_model), 1.0 / math.sqrt(d_hid), bf16),
            "bf2": nrm((1, d_model), 0.02),
            "g2": jnp.ones((1, d_model), jnp.float32),
            "be2": jnp.zeros((1, d_model), jnp.float32),
        })
    # stack per-layer params along a leading layer axis -> the whole encoder fuses
    # into a single pallas_call.
    for name in layers[0]:
        params[name] = jnp.stack([lp[name] for lp in layers], axis=0)
    return params


def transformer_pretrain_forward(src, params, *, nhead, nlayers):
    """src: [seq_len, batch_size] int32  ->  returns [seq_len, d_model]."""
    # TODO(synk): embedding gather + positional-encoding add stay in XLA (tiny gather,
    # not worth a manual Pallas DMA gather); dropout layers are identity (eval mode).
    d_model = params["emb"].shape[1]
    seq_len, bsz = src.shape
    x = params["emb"][src] * math.sqrt(d_model)          # (seq, batch, E)
    x = x + params["pe"][:seq_len]                       # broadcast over batch axis

    N = seq_len * bsz
    x_flat = x.reshape(N, d_model)                       # row n = seq_idx*bsz + batch_idx

    # block-diagonal additive attention bias: attention mixes only within a seq_idx group
    grp = jnp.arange(N) // bsz
    mask = jnp.where(grp[:, None] == grp[None, :], 0.0, -1e9).astype(jnp.float32)
    # one-hot selector implementing output[:, 0:1, :].squeeze(1)
    sel = (jnp.arange(N)[None, :] == (jnp.arange(seq_len) * bsz)[:, None]).astype(jnp.float32)

    return fused_forward(x_flat, mask, sel, params, nhead=nhead, nlayers=nlayers)


# --------------------------------- main --------------------------------------

if __name__ == "__main__":
    ntoken, d_model, nhead, d_hid, nlayers = 50, 32, 4, 64, 2
    seq_len, batch_size = 8, 4

    key = jax.random.PRNGKey(0)
    k_param, k_src = jax.random.split(key)

    params = init_params(k_param, ntoken, d_model, nhead, d_hid, nlayers)
    src = jax.random.randint(k_src, (seq_len, batch_size), 0, ntoken, dtype=jnp.int32)

    out = transformer_pretrain_forward(src, params, nhead=nhead, nlayers=nlayers)
    out = jax.block_until_ready(out)
    assert out.shape == (seq_len, d_model), out.shape
    assert jnp.all(jnp.isfinite(out))
    print("KERNEL_OK")
</pallas_src>

<mosaic_0001>
module attributes {stable_mosaic.version = 11 : i64} {
  func.func @fused_transformer_kernel(%arg0: i32, %arg1: memref<32x32xf32, #tpu.memory_space<vmem>>, %arg2: memref<32x32xf32, #tpu.memory_space<vmem>>, %arg3: memref<8x32xf32, #tpu.memory_space<vmem>>, %arg4: memref<2x32x96xbf16, #tpu.memory_space<vmem>>, %arg5: memref<2x1x96xf32, #tpu.memory_space<vmem>>, %arg6: memref<2x4x8x32xbf16, #tpu.memory_space<vmem>>, %arg7: memref<2x1x32xf32, #tpu.memory_space<vmem>>, %arg8: memref<2x1x32xf32, #tpu.memory_space<vmem>>, %arg9: memref<2x1x32xf32, #tpu.memory_space<vmem>>, %arg10: memref<2x32x64xbf16, #tpu.memory_space<vmem>>, %arg11: memref<2x1x64xf32, #tpu.memory_space<vmem>>, %arg12: memref<2x64x32xbf16, #tpu.memory_space<vmem>>, %arg13: memref<2x1x32xf32, #tpu.memory_space<vmem>>, %arg14: memref<2x1x32xf32, #tpu.memory_space<vmem>>, %arg15: memref<2x1x32xf32, #tpu.memory_space<vmem>>, %arg16: memref<32x32xbf16, #tpu.memory_space<vmem>>, %arg17: memref<1x32xf32, #tpu.memory_space<vmem>>, %arg18: memref<32x32xbf16, #tpu.memory_space<vmem>>, %arg19: memref<1x32xf32, #tpu.memory_space<vmem>>, %arg20: memref<8x32xf32, #tpu.memory_space<vmem>>) attributes {dimension_semantics = [#tpu.dimension_semantics<arbitrary>], iteration_bounds = array<i64: 1>, scalar_prefetch = 0 : i64, scratch_operands = 0 : i64, tpu.core_type = #tpu.core_type<tc>, window_params = [{pipeline_mode = #tpu.pipeline_mode<synchronous>, transform_indices = @transform_0, window_bounds = array<i64: 32, 32>}, {pipeline_mode = #tpu.pipeline_mode<synchronous>, transform_indices = @transform_1, window_bounds = array<i64: 32, 32>}, {pipeline_mode = #tpu.pipeline_mode<synchronous>, transform_indices = @transform_2, window_bounds = array<i64: 8, 32>}, {pipeline_mode = #tpu.pipeline_mode<synchronous>, transform_indices = @transform_3, window_bounds = array<i64: 2, 32, 96>}, {pipeline_mode = #tpu.pipeline_mode<synchronous>, transform_indices = @transform_4, window_bounds = array<i64: 2, 1, 96>}, {pipeline_mode = #tpu.pipeline_mode<synchronous>, transform_indices = @transform_5, window_bounds = array<i64: 2, 4, 8, 32>}, {pipeline_mode = #tpu.pipeline_mode<synchronous>, transform_indices = @transform_6, window_bounds = array<i64: 2, 1, 32>}, {pipeline_mode = #tpu.pipeline_mode<synchronous>, transform_indices = @transform_7, window_bounds = array<i64: 2, 1, 32>}, {pipeline_mode = #tpu.pipeline_mode<synchronous>, transform_indices = @transform_8, window_bounds = array<i64: 2, 1, 32>}, {pipeline_mode = #tpu.pipeline_mode<synchronous>, transform_indices = @transform_9, window_bounds = array<i64: 2, 32, 64>}, {pipeline_mode = #tpu.pipeline_mode<synchronous>, transform_indices = @transform_10, window_bounds = array<i64: 2, 1, 64>}, {pipeline_mode = #tpu.pipeline_mode<synchronous>, transform_indices = @transform_11, window_bounds = array<i64: 2, 64, 32>}, {pipeline_mode = #tpu.pipeline_mode<synchronous>, transform_indices = @transform_12, window_bounds = array<i64: 2, 1, 32>}, {pipeline_mode = #tpu.pipeline_mode<synchronous>, transform_indices = @transform_13, window_bounds = array<i64: 2, 1, 32>}, {pipeline_mode = #tpu.pipeline_mode<synchronous>, transform_indices = @transform_14, window_bounds = array<i64: 2, 1, 32>}, {pipeline_mode = #tpu.pipeline_mode<synchronous>, transform_indices = @transform_15, window_bounds = array<i64: 32, 32>}, {pipeline_mode = #tpu.pipeline_mode<synchronous>, transform_indices = @transform_16, window_bounds = array<i64: 1, 32>}, {pipeline_mode = #tpu.pipeline_mode<synchronous>, transform_indices = @transform_17, window_bounds = array<i64: 32, 32>}, {pipeline_mode = #tpu.pipeline_mode<synchronous>, transform_indices = @transform_18, window_bounds = array<i64: 1, 32>}, {pipeline_mode = #tpu.pipeline_mode<synchronous>, transform_indices = @transform_19, window_bounds = array<i64: 8, 32>}]} {
    %c0 = arith.constant 0 : index
    %c0_0 = arith.constant 0 : index
    %0 = vector.load %arg1[%c0, %c0_0] : memref<32x32xf32, #tpu.memory_space<vmem>>, vector<32x32xf32>
    %c0_1 = arith.constant 0 : index
    %c0_2 = arith.constant 0 : index
    %1 = vector.load %arg2[%c0_1, %c0_2] : memref<32x32xf32, #tpu.memory_space<vmem>>, vector<32x32xf32>
    %2 = arith.truncf %0 : vector<32x32xf32> to vector<32x32xbf16>
    %c0_3 = arith.constant 0 : index
    %c0_4 = arith.constant 0 : index
    %c0_5 = arith.constant 0 : index
    %3 = vector.load %arg4[%c0_3, %c0_4, %c0_5] : memref<2x32x96xbf16, #tpu.memory_space<vmem>>, vector<1x32x96xbf16>
    %4 = vector.shape_cast %3 : vector<1x32x96xbf16> to vector<32x96xbf16>
    %cst = arith.constant dense<0.000000e+00> : vector<32x96xf32>
    %5 = tpu.matmul %2, %4, %cst {dimension_numbers = #tpu.dot_dimension_numbers<[1], [0], [0], [1], [0, 0, 1, 1], [], []>} : vector<32x32xbf16>, vector<32x96xbf16>, vector<32x96xf32> -> vector<32x96xf32>
    %c0_6 = arith.constant 0 : index
    %c0_7 = arith.constant 0 : index
    %c0_8 = arith.constant 0 : index
    %6 = vector.load %arg5[%c0_6, %c0_7, %c0_8] : memref<2x1x96xf32, #tpu.memory_space<vmem>>, vector<1x1x96xf32>
    %7 = vector.shape_cast %6 : vector<1x1x96xf32> to vector<1x96xf32>
    %8 = vector.broadcast %7 : vector<1x96xf32> to vector<32x96xf32>
    %9 = arith.addf %5, %8 : vector<32x96xf32>
    %cst_9 = arith.constant 0.000000e+00 : f32
    %10 = vector.broadcast %cst_9 : f32 to vector<32x32xf32>
    %11 = vector.extract_strided_slice %9 {offsets = [0, 0], sizes = [32, 8], strides = [1, 1]} : vector<32x96xf32> to vector<32x8xf32>
    %cst_10 = arith.constant 0.353553385 : f32
    %12 = vector.broadcast %cst_10 : f32 to vector<32x8xf32>
    %13 = arith.mulf %11, %12 : vector<32x8xf32>
    %14 = vector.extract_strided_slice %9 {offsets = [0, 32], sizes = [32, 8], strides = [1, 1]} : vector<32x96xf32> to vector<32x8xf32>
    %15 = vector.extract_strided_slice %9 {offsets = [0, 64], sizes = [32, 8], strides = [1, 1]} : vector<32x96xf32> to vector<32x8xf32>
    %cst_11 = arith.constant dense<0.000000e+00> : vector<32x32xf32>
    %16 = tpu.matmul %13, %14, %cst_11 {dimension_numbers = #tpu.dot_dimension_numbers<[1], [1], [0], [0], [0, 0, 1, 0], [], []>} : vector<32x8xf32>, vector<32x8xf32>, vector<32x32xf32> -> vector<32x32xf32>
    %17 = arith.addf %16, %1 : vector<32x32xf32>
    %cst_12 = arith.constant dense<0xFF800000> : vector<32xf32>
    %18 = vector.multi_reduction <maximumf>, %17, %cst_12 [1] : vector<32x32xf32> to vector<32xf32>
    %19 = vector.shape_cast %18 : vector<32xf32> to vector<32x1xf32>
    %20 = vector.broadcast %19 : vector<32x1xf32> to vector<32x32xf32>
    %21 = arith.subf %17, %20 : vector<32x32xf32>
    %22 = math.exp %21 : vector<32x32xf32>
    %cst_13 = arith.constant dense<0.000000e+00> : vector<32xf32>
    %23 = vector.multi_reduction <add>, %22, %cst_13 [1] : vector<32x32xf32> to vector<32xf32>
    %24 = vector.shape_cast %23 : vector<32xf32> to vector<32x1xf32>
    %25 = tpu.reciprocal %24 {approx = true} : vector<32x1xf32> -> vector<32x1xf32>
    %26 = vector.broadcast %25 : vector<32x1xf32> to vector<32x32xf32>
    %27 = arith.mulf %22, %26 : vector<32x32xf32>
    %cst_14 = arith.constant dense<0.000000e+00> : vector<32x8xf32>
    %28 = tpu.matmul %27, %15, %cst_14 {dimension_numbers = #tpu.dot_dimension_numbers<[1], [0], [0], [1], [0, 0, 1, 1], [], []>} : vector<32x32xf32>, vector<32x8xf32>, vector<32x8xf32> -> vector<32x8xf32>
    %29 = arith.truncf %28 : vector<32x8xf32> to vector<32x8xbf16>
    %c0_15 = arith.constant 0 : index
    %c0_16 = arith.constant 0 : index
    %c0_17 = arith.constant 0 : index
    %c0_18 = arith.constant 0 : index
    %30 = vector.load %arg6[%c0_15, %c0_16, %c0_17, %c0_18] : memref<2x4x8x32xbf16, #tpu.memory_space<vmem>>, vector<1x1x8x32xbf16>
    %31 = vector.shape_cast %30 : vector<1x1x8x32xbf16> to vector<8x32xbf16>
    %cst_19 = arith.constant dense<0.000000e+00> : vector<32x32xf32>
    %32 = tpu.matmul %29, %31, %cst_19 {dimension_numbers = #tpu.dot_dimension_numbers<[1], [0], [0], [1], [0, 0, 1, 1], [], []>} : vector<32x8xbf16>, vector<8x32xbf16>, vector<32x32xf32> -> vector<32x32xf32>
    %33 = arith.addf %10, %32 : vector<32x32xf32>
    %34 = vector.extract_strided_slice %9 {offsets = [0, 8], sizes = [32, 8], strides = [1, 1]} : vector<32x96xf32> to vector<32x8xf32>
    %cst_20 = arith.constant 0.353553385 : f32
    %35 = vector.broadcast %cst_20 : f32 to vector<32x8xf32>
    %36 = arith.mulf %34, %35 : vector<32x8xf32>
    %37 = vector.extract_strided_slice %9 {offsets = [0, 40], sizes = [32, 8], strides = [1, 1]} : vector<32x96xf32> to vector<32x8xf32>
    %38 = vector.extract_strided_slice %9 {offsets = [0, 72], sizes = [32, 8], strides = [1, 1]} : vector<32x96xf32> to vector<32x8xf32>
    %cst_21 = arith.constant dense<0.000000e+00> : vector<32x32xf32>
    %39 = tpu.matmul %36, %37, %cst_21 {dimension_numbers = #tpu.dot_dimension_numbers<[1], [1], [0], [0], [0, 0, 1, 0], [], []>} : vector<32x8xf32>, vector<32x8xf32>, vector<32x32xf32> -> vector<32x32xf32>
    %40 = arith.addf %39, %1 : vector<32x32xf32>
    %cst_22 = arith.constant dense<0xFF800000> : vector<32xf32>
    %41 = vector.multi_reduction <maximumf>, %40, %cst_22 [1] : vector<32x32xf32> to vector<32xf32>
    %42 = vector.shape_cast %41 : vector<32xf32> to vector<32x1xf32>
    %43 = vector.broadcast %42 : vector<32x1xf32> to vector<32x32xf32>
    %44 = arith.subf %40, %43 : vector<32x32xf32>
    %45 = math.exp %44 : vector<32x32xf32>
    %cst_23 = arith.constant dense<0.000000e+00> : vector<32xf32>
    %46 = vector.multi_reduction <add>, %45, %cst_23 [1] : vector<32x32xf32> to vector<32xf32>
    %47 = vector.shape_cast %46 : vector<32xf32> to vector<32x1xf32>
    %48 = tpu.reciprocal %47 {approx = true} : vector<32x1xf32> -> vector<32x1xf32>
    %49 = vector.broadcast %48 : vector<32x1xf32> to vector<32x32xf32>
    %50 = arith.mulf %45, %49 : vector<32x32xf32>
    %cst_24 = arith.constant dense<0.000000e+00> : vector<32x8xf32>
    %51 = tpu.matmul %50, %38, %cst_24 {dimension_numbers = #tpu.dot_dimension_numbers<[1], [0], [0], [1], [0, 0, 1, 1], [], []>} : vector<32x32xf32>, vector<32x8xf32>, vector<32x8xf32> -> vector<32x8xf32>
    %52 = arith.truncf %51 : vector<32x8xf32> to vector<32x8xbf16>
    %c0_25 = arith.constant 0 : index
    %c1 = arith.constant 1 : index
    %c0_26 = arith.constant 0 : index
    %c0_27 = arith.constant 0 : index
    %53 = vector.load %arg6[%c0_25, %c1, %c0_26, %c0_27] : memref<2x4x8x32xbf16, #tpu.memory_space<vmem>>, vector<1x1x8x32xbf16>
    %54 = vector.shape_cast %53 : vector<1x1x8x32xbf16> to vector<8x32xbf16>
    %cst_28 = arith.constant dense<0.000000e+00> : vector<32x32xf32>
    %55 = tpu.matmul %52, %54, %cst_28 {dimension_numbers = #tpu.dot_dimension_numbers<[1], [0], [0], [1], [0, 0, 1, 1], [], []>} : vector<32x8xbf16>, vector<8x32xbf16>, vector<32x32xf32> -> vector<32x32xf32>
    %56 = arith.addf %33, %55 : vector<32x32xf32>
    %57 = vector.extract_strided_slice %9 {offsets = [0, 16], sizes = [32, 8], strides = [1, 1]} : vector<32x96xf32> to vector<32x8xf32>
    %cst_29 = arith.constant 0.353553385 : f32
    %58 = vector.broadcast %cst_29 : f32 to vector<32x8xf32>
    %59 = arith.mulf %57, %58 : vector<32x8xf32>
    %60 = vector.extract_strided_slice %9 {offsets = [0, 48], sizes = [32, 8], strides = [1, 1]} : vector<32x96xf32> to vector<32x8xf32>
    %61 = vector.extract_strided_slice %9 {offsets = [0, 80], sizes = [32, 8], strides = [1, 1]} : vector<32x96xf32> to vector<32x8xf32>
    %cst_30 = arith.constant dense<0.000000e+00> : vector<32x32xf32>
    %62 = tpu.matmul %59, %60, %cst_30 {dimension_numbers = #tpu.dot_dimension_numbers<[1], [1], [0], [0], [0, 0, 1, 0], [], []>} : vector<32x8xf32>, vector<32x8xf32>, vector<32x32xf32> -> vector<32x32xf32>
    %63 = arith.addf %62, %1 : vector<32x32xf32>
    %cst_31 = arith.constant dense<0xFF800000> : vector<32xf32>
    %64 = vector.multi_reduction <maximumf>, %63, %cst_31 [1] : vector<32x32xf32> to vector<32xf32>
    %65 = vector.shape_cast %64 : vector<32xf32> to vector<32x1xf32>
    %66 = vector.broadcast %65 : vector<32x1xf32> to vector<32x32xf32>
    %67 = arith.subf %63, %66 : vector<32x32xf32>
    %68 = math.exp %67 : vector<32x32xf32>
    %cst_32 = arith.constant dense<0.000000e+00> : vector<32xf32>
    %69 = vector.multi_reduction <add>, %68, %cst_32 [1] : vector<32x32xf32> to vector<32xf32>
    %70 = vector.shape_cast %69 : vector<32xf32> to vector<32x1xf32>
    %71 = tpu.reciprocal %70 {approx = true} : vector<32x1xf32> -> vector<32x1xf32>
    %72 = vector.broadcast %71 : vector<32x1xf32> to vector<32x32xf32>
    %73 = arith.mulf %68, %72 : vector<32x32xf32>
    %cst_33 = arith.constant dense<0.000000e+00> : vector<32x8xf32>
    %74 = tpu.matmul %73, %61, %cst_33 {dimension_numbers = #tpu.dot_dimension_numbers<[1], [0], [0], [1], [0, 0, 1, 1], [], []>} : vector<32x32xf32>, vector<32x8xf32>, vector<32x8xf32> -> vector<32x8xf32>
    %75 = arith.truncf %74 : vector<32x8xf32> to vector<32x8xbf16>
    %c0_34 = arith.constant 0 : index
    %c2 = arith.constant 2 : index
    %c0_35 = arith.constant 0 : index
    %c0_36 = arith.constant 0 : index
    %76 = vector.load %arg6[%c0_34, %c2, %c0_35, %c0_36] : memref<2x4x8x32xbf16, #tpu.memory_space<vmem>>, vector<1x1x8x32xbf16>
    %77 = vector.shape_cast %76 : vector<1x1x8x32xbf16> to vector<8x32xbf16>
    %cst_37 = arith.constant dense<0.000000e+00> : vector<32x32xf32>
    %78 = tpu.matmul %75, %77, %cst_37 {dimension_numbers = #tpu.dot_dimension_numbers<[1], [0], [0], [1], [0, 0, 1, 1], [], []>} : vector<32x8xbf16>, vector<8x32xbf16>, vector<32x32xf32> -> vector<32x32xf32>
    %79 = arith.addf %56, %78 : vector<32x32xf32>
    %80 = vector.extract_strided_slice %9 {offsets = [0, 24], sizes = [32, 8], strides = [1, 1]} : vector<32x96xf32> to vector<32x8xf32>
    %cst_38 = arith.constant 0.353553385 : f32
    %81 = vector.broadcast %cst_38 : f32 to vector<32x8xf32>
    %82 = arith.mulf %80, %81 : vector<32x8xf32>
    %83 = vector.extract_strided_slice %9 {offsets = [0, 56], sizes = [32, 8], strides = [1, 1]} : vector<32x96xf32> to vector<32x8xf32>
    %84 = vector.extract_strided_slice %9 {offsets = [0, 88], sizes = [32, 8], strides = [1, 1]} : vector<32x96xf32> to vector<32x8xf32>
    %cst_39 = arith.constant dense<0.000000e+00> : vector<32x32xf32>
    %85 = tpu.matmul %82, %83, %cst_39 {dimension_numbers = #tpu.dot_dimension_numbers<[1], [1], [0], [0], [0, 0, 1, 0], [], []>} : vector<32x8xf32>, vector<32x8xf32>, vector<32x32xf32> -> vector<32x32xf32>
    %86 = arith.addf %85, %1 : vector<32x32xf32>
    %cst_40 = arith.constant dense<0xFF800000> : vector<32xf32>
    %87 = vector.multi_reduction <maximumf>, %86, %cst_40 [1] : vector<32x32xf32> to vector<32xf32>
    %88 = vector.shape_cast %87 : vector<32xf32> to vector<32x1xf32>
    %89 = vector.broadcast %88 : vector<32x1xf32> to vector<32x32xf32>
    %90 = arith.subf %86, %89 : vector<32x32xf32>
    %91 = math.exp %90 : vector<32x32xf32>
    %cst_41 = arith.constant dense<0.000000e+00> : vector<32xf32>
    %92 = vector.multi_reduction <add>, %91, %cst_41 [1] : vector<32x32xf32> to vector<32xf32>
    %93 = vector.shape_cast %92 : vector<32xf32> to vector<32x1xf32>
    %94 = tpu.reciprocal %93 {approx = true} : vector<32x1xf32> -> vector<32x1xf32>
    %95 = vector.broadcast %94 : vector<32x1xf32> to vector<32x32xf32>
    %96 = arith.mulf %91, %95 : vector<32x32xf32>
    %cst_42 = arith.constant dense<0.000000e+00> : vector<32x8xf32>
    %97 = tpu.matmul %96, %84, %cst_42 {dimension_numbers = #tpu.dot_dimension_numbers<[1], [0], [0], [1], [0, 0, 1, 1], [], []>} : vector<32x32xf32>, vector<32x8xf32>, vector<32x8xf32> -> vector<32x8xf32>
    %98 = arith.truncf %97 : vector<32x8xf32> to vector<32x8xbf16>
    %c0_43 = arith.constant 0 : index
    %c3 = arith.constant 3 : index
    %c0_44 = arith.constant 0 : index
    %c0_45 = arith.constant 0 : index
    %99 = vector.load %arg6[%c0_43, %c3, %c0_44, %c0_45] : memref<2x4x8x32xbf16, #tpu.memory_space<vmem>>, vector<1x1x8x32xbf16>
    %100 = vector.shape_cast %99 : vector<1x1x8x32xbf16> to vector<8x32xbf16>
    %cst_46 = arith.constant dense<0.000000e+00> : vector<32x32xf32>
    %101 = tpu.matmul %98, %100, %cst_46 {dimension_numbers = #tpu.dot_dimension_numbers<[1], [0], [0], [1], [0, 0, 1, 1], [], []>} : vector<32x8xbf16>, vector<8x32xbf16>, vector<32x32xf32> -> vector<32x32xf32>
    %102 = arith.addf %79, %101 : vector<32x32xf32>
    %c0_47 = arith.constant 0 : index
    %c0_48 = arith.constant 0 : index
    %c0_49 = arith.constant 0 : index
    %103 = vector.load %arg7[%c0_47, %c0_48, %c0_49] : memref<2x1x32xf32, #tpu.memory_space<vmem>>, vector<1x1x32xf32>
    %104 = vector.shape_cast %103 : vector<1x1x32xf32> to vector<1x32xf32>
    %105 = vector.broadcast %104 : vector<1x32xf32> to vector<32x32xf32>
    %106 = arith.addf %102, %105 : vector<32x32xf32>
    %107 = arith.addf %0, %106 : vector<32x32xf32>
    %c0_50 = arith.constant 0 : index
    %c0_51 = arith.constant 0 : index
    %c0_52 = arith.constant 0 : index
    %108 = vector.load %arg8[%c0_50, %c0_51, %c0_52] : memref<2x1x32xf32, #tpu.memory_space<vmem>>, vector<1x1x32xf32>
    %109 = vector.shape_cast %108 : vector<1x1x32xf32> to vector<1x32xf32>
    %c0_53 = arith.constant 0 : index
    %c0_54 = arith.constant 0 : index
    %c0_55 = arith.constant 0 : index
    %110 = vector.load %arg9[%c0_53, %c0_54, %c0_55] : memref<2x1x32xf32, #tpu.memory_space<vmem>>, vector<1x1x32xf32>
    %111 = vector.shape_cast %110 : vector<1x1x32xf32> to vector<1x32xf32>
    %cst_56 = arith.constant dense<0.000000e+00> : vector<32xf32>
    %112 = vector.multi_reduction <add>, %107, %cst_56 [1] : vector<32x32xf32> to vector<32xf32>
    %113 = vector.shape_cast %112 : vector<32xf32> to vector<32x1xf32>
    %cst_57 = arith.constant 3.200000e+01 : f32
    %114 = vector.broadcast %cst_57 : f32 to vector<32x1xf32>
    %115 = arith.divf %113, %114 : vector<32x1xf32>
    %116 = vector.broadcast %115 : vector<32x1xf32> to vector<32x32xf32>
    %117 = arith.subf %107, %116 : vector<32x32xf32>
    %118 = arith.mulf %117, %117 : vector<32x32xf32>
    %cst_58 = arith.constant dense<0.000000e+00> : vector<32xf32>
    %119 = vector.multi_reduction <add>, %118, %cst_58 [1] : vector<32x32xf32> to vector<32xf32>
    %120 = vector.shape_cast %119 : vector<32xf32> to vector<32x1xf32>
    %cst_59 = arith.constant 3.200000e+01 : f32
    %121 = vector.broadcast %cst_59 : f32 to vector<32x1xf32>
    %122 = arith.divf %120, %121 : vector<32x1xf32>
    %123 = vector.broadcast %115 : vector<32x1xf32> to vector<32x32xf32>
    %124 = arith.subf %107, %123 : vector<32x32xf32>
    %cst_60 = arith.constant 9.99999974E-6 : f32
    %125 = vector.broadcast %cst_60 : f32 to vector<32x1xf32>
    %126 = arith.addf %122, %125 : vector<32x1xf32>
    %127 = math.rsqrt %126 : vector<32x1xf32>
    %128 = vector.broadcast %127 : vector<32x1xf32> to vector<32x32xf32>
    %129 = arith.mulf %124, %128 : vector<32x32xf32>
    %130 = vector.broadcast %109 : vector<1x32xf32> to vector<32x32xf32>
    %131 = arith.mulf %129, %130 : vector<32x32xf32>
    %132 = vector.broadcast %111 : vector<1x32xf32> to vector<32x32xf32>
    %133 = arith.addf %131, %132 : vector<32x32xf32>
    %134 = arith.truncf %133 : vector<32x32xf32> to vector<32x32xbf16>
    %c0_61 = arith.constant 0 : index
    %c0_62 = arith.constant 0 : index
    %c0_63 = arith.constant 0 : index
    %135 = vector.load %arg10[%c0_61, %c0_62, %c0_63] : memref<2x32x64xbf16, #tpu.memory_space<vmem>>, vector<1x32x64xbf16>
    %136 = vector.shape_cast %135 : vector<1x32x64xbf16> to vector<32x64xbf16>
    %cst_64 = arith.constant dense<0.000000e+00> : vector<32x64xf32>
    %137 = tpu.matmul %134, %136, %cst_64 {dimension_numbers = #tpu.dot_dimension_numbers<[1], [0], [0], [1], [0, 0, 1, 1], [], []>} : vector<32x32xbf16>, vector<32x64xbf16>, vector<32x64xf32> -> vector<32x64xf32>
    %c0_65 = arith.constant 0 : index
    %c0_66 = arith.constant 0 : index
    %c0_67 = arith.constant 0 : index
    %138 = vector.load %arg11[%c0_65, %c0_66, %c0_67] : memref<2x1x64xf32, #tpu.memory_space<vmem>>, vector<1x1x64xf32>
    %139 = vector.shape_cast %138 : vector<1x1x64xf32> to vector<1x64xf32>
    %140 = vector.broadcast %139 : vector<1x64xf32> to vector<32x64xf32>
    %141 = arith.addf %137, %140 : vector<32x64xf32>
    %cst_68 = arith.constant 0.000000e+00 : f32
    %142 = vector.broadcast %cst_68 : f32 to vector<32x64xf32>
    %143 = arith.maximumf %141, %142 : vector<32x64xf32>
    %144 = arith.truncf %143 : vector<32x64xf32> to vector<32x64xbf16>
    %c0_69 = arith.constant 0 : index
    %c0_70 = arith.constant 0 : index
    %c0_71 = arith.constant 0 : index
    %145 = vector.load %arg12[%c0_69, %c0_70, %c0_71] : memref<2x64x32xbf16, #tpu.memory_space<vmem>>, vector<1x64x32xbf16>
    %146 = vector.shape_cast %145 : vector<1x64x32xbf16> to vector<64x32xbf16>
    %cst_72 = arith.constant dense<0.000000e+00> : vector<32x32xf32>
    %147 = tpu.matmul %144, %146, %cst_72 {dimension_numbers = #tpu.dot_dimension_numbers<[1], [0], [0], [1], [0, 0, 1, 1], [], []>} : vector<32x64xbf16>, vector<64x32xbf16>, vector<32x32xf32> -> vector<32x32xf32>
    %c0_73 = arith.constant 0 : index
    %c0_74 = arith.constant 0 : index
    %c0_75 = arith.constant 0 : index
    %148 = vector.load %arg13[%c0_73, %c0_74, %c0_75] : memref<2x1x32xf32, #tpu.memory_space<vmem>>, vector<1x1x32xf32>
    %149 = vector.shape_cast %148 : vector<1x1x32xf32> to vector<1x32xf32>
    %150 = vector.broadcast %149 : vector<1x32xf32> to vector<32x32xf32>
    %151 = arith.addf %147, %150 : vector<32x32xf32>
    %152 = arith.addf %133, %151 : vector<32x32xf32>
    %c0_76 = arith.constant 0 : index
    %c0_77 = arith.constant 0 : index
    %c0_78 = arith.constant 0 : index
    %153 = vector.load %arg14[%c0_76, %c0_77, %c0_78] : memref<2x1x32xf32, #tpu.memory_space<vmem>>, vector<1x1x32xf32>
    %154 = vector.shape_cast %153 : vector<1x1x32xf32> to vector<1x32xf32>
    %c0_79 = arith.constant 0 : index
    %c0_80 = arith.constant 0 : index
    %c0_81 = arith.constant 0 : index
    %155 = vector.load %arg15[%c0_79, %c0_80, %c0_81] : memref<2x1x32xf32, #tpu.memory_space<vmem>>, vector<1x1x32xf32>
    %156 = vector.shape_cast %155 : vector<1x1x32xf32> to vector<1x32xf32>
    %cst_82 = arith.constant dense<0.000000e+00> : vector<32xf32>
    %157 = vector.multi_reduction <add>, %152, %cst_82 [1] : vector<32x32xf32> to vector<32xf32>
    %158 = vector.shape_cast %157 : vector<32xf32> to vector<32x1xf32>
    %cst_83 = arith.constant 3.200000e+01 : f32
    %159 = vector.broadcast %cst_83 : f32 to vector<32x1xf32>
    %160 = arith.divf %158, %159 : vector<32x1xf32>
    %161 = vector.broadcast %160 : vector<32x1xf32> to vector<32x32xf32>
    %162 = arith.subf %152, %161 : vector<32x32xf32>
    %163 = arith.mulf %162, %162 : vector<32x32xf32>
    %cst_84 = arith.constant dense<0.000000e+00> : vector<32xf32>
    %164 = vector.multi_reduction <add>, %163, %cst_84 [1] : vector<32x32xf32> to vector<32xf32>
    %165 = vector.shape_cast %164 : vector<32xf32> to vector<32x1xf32>
    %cst_85 = arith.constant 3.200000e+01 : f32
    %166 = vector.broadcast %cst_85 : f32 to vector<32x1xf32>
    %167 = arith.divf %165, %166 : vector<32x1xf32>
    %168 = vector.broadcast %160 : vector<32x1xf32> to vector<32x32xf32>
    %169 = arith.subf %152, %168 : vector<32x32xf32>
    %cst_86 = arith.constant 9.99999974E-6 : f32
    %170 = vector.broadcast %cst_86 : f32 to vector<32x1xf32>
    %171 = arith.addf %167, %170 : vector<32x1xf32>
    %172 = math.rsqrt %171 : vector<32x1xf32>
    %173 = vector.broadcast %172 : vector<32x1xf32> to vector<32x32xf32>
    %174 = arith.mulf %169, %173 : vector<32x32xf32>
    %175 = vector.broadcast %154 : vector<1x32xf32> to vector<32x32xf32>
    %176 = arith.mulf %174, %175 : vector<32x32xf32>
    %177 = vector.broadcast %156 : vector<1x32xf32> to vector<32x32xf32>
    %178 = arith.addf %176, %177 : vector<32x32xf32>
    %179 = arith.truncf %178 : vector<32x32xf32> to vector<32x32xbf16>
    %c1_87 = arith.constant 1 : index
    %c0_88 = arith.constant 0 : index
    %c0_89 = arith.constant 0 : index
    %180 = vector.load %arg4[%c1_87, %c0_88, %c0_89] : memref<2x32x96xbf16, #tpu.memory_space<vmem>>, vector<1x32x96xbf16>
    %181 = vector.shape_cast %180 : vector<1x32x96xbf16> to vector<32x96xbf16>
    %cst_90 = arith.constant dense<0.000000e+00> : vector<32x96xf32>
    %182 = tpu.matmul %179, %181, %cst_90 {dimension_numbers = #tpu.dot_dimension_numbers<[1], [0], [0], [1], [0, 0, 1, 1], [], []>} : vector<32x32xbf16>, vector<32x96xbf16>, vector<32x96xf32> -> vector<32x96xf32>
    %c1_91 = arith.constant 1 : index
    %c0_92 = arith.constant 0 : index
    %c0_93 = arith.constant 0 : index
    %183 = vector.load %arg5[%c1_91, %c0_92, %c0_93] : memref<2x1x96xf32, #tpu.memory_space<vmem>>, vector<1x1x96xf32>
    %184 = vector.shape_cast %183 : vector<1x1x96xf32> to vector<1x96xf32>
    %185 = vector.broadcast %184 : vector<1x96xf32> to vector<32x96xf32>
    %186 = arith.addf %182, %185 : vector<32x96xf32>
    %cst_94 = arith.constant 0.000000e+00 : f32
    %187 = vector.broadcast %cst_94 : f32 to vector<32x32xf32>
    %188 = vector.extract_strided_slice %186 {offsets = [0, 0], sizes = [32, 8], strides = [1, 1]} : vector<32x96xf32> to vector<32x8xf32>
    %cst_95 = arith.constant 0.353553385 : f32
    %189 = vector.broadcast %cst_95 : f32 to vector<32x8xf32>
    %190 = arith.mulf %188, %189 : vector<32x8xf32>
    %191 = vector.extract_strided_slice %186 {offsets = [0, 32], sizes = [32, 8], strides = [1, 1]} : vector<32x96xf32> to vector<32x8xf32>
    %192 = vector.extract_strided_slice %186 {offsets = [0, 64], sizes = [32, 8], strides = [1, 1]} : vector<32x96xf32> to vector<32x8xf32>
    %cst_96 = arith.constant dense<0.000000e+00> : vector<32x32xf32>
    %193 = tpu.matmul %190, %191, %cst_96 {dimension_numbers = #tpu.dot_dimension_numbers<[1], [1], [0], [0], [0, 0, 1, 0], [], []>} : vector<32x8xf32>, vector<32x8xf32>, vector<32x32xf32> -> vector<32x32xf32>
    %194 = arith.addf %193, %1 : vector<32x32xf32>
    %cst_97 = arith.constant dense<0xFF800000> : vector<32xf32>
    %195 = vector.multi_reduction <maximumf>, %194, %cst_97 [1] : vector<32x32xf32> to vector<32xf32>
    %196 = vector.shape_cast %195 : vector<32xf32> to vector<32x1xf32>
    %197 = vector.broadcast %196 : vector<32x1xf32> to vector<32x32xf32>
    %198 = arith.subf %194, %197 : vector<32x32xf32>
    %199 = math.exp %198 : vector<32x32xf32>
    %cst_98 = arith.constant dense<0.000000e+00> : vector<32xf32>
    %200 = vector.multi_reduction <add>, %199, %cst_98 [1] : vector<32x32xf32> to vector<32xf32>
    %201 = vector.shape_cast %200 : vector<32xf32> to vector<32x1xf32>
    %202 = tpu.reciprocal %201 {approx = true} : vector<32x1xf32> -> vector<32x1xf32>
    %203 = vector.broadcast %202 : vector<32x1xf32> to vector<32x32xf32>
    %204 = arith.mulf %199, %203 : vector<32x32xf32>
    %cst_99 = arith.constant dense<0.000000e+00> : vector<32x8xf32>
    %205 = tpu.matmul %204, %192, %cst_99 {dimension_numbers = #tpu.dot_dimension_numbers<[1], [0], [0], [1], [0, 0, 1, 1], [], []>} : vector<32x32xf32>, vector<32x8xf32>, vector<32x8xf32> -> vector<32x8xf32>
    %206 = arith.truncf %205 : vector<32x8xf32> to vector<32x8xbf16>
    %c1_100 = arith.constant 1 : index
    %c0_101 = arith.constant 0 : index
    %c0_102 = arith.constant 0 : index
    %c0_103 = arith.constant 0 : index
    %207 = vector.load %arg6[%c1_100, %c0_101, %c0_102, %c0_103] : memref<2x4x8x32xbf16, #tpu.memory_space<vmem>>, vector<1x1x8x32xbf16>
    %208 = vector.shape_cast %207 : vector<1x1x8x32xbf16> to vector<8x32xbf16>
    %cst_104 = arith.constant dense<0.000000e+00> : vector<32x32xf32>
    %209 = tpu.matmul %206, %208, %cst_104 {dimension_numbers = #tpu.dot_dimension_numbers<[1], [0], [0], [1], [0, 0, 1, 1], [], []>} : vector<32x8xbf16>, vector<8x32xbf16>, vector<32x32xf32> -> vector<32x32xf32>
    %210 = arith.addf %187, %209 : vector<32x32xf32>
    %211 = vector.extract_strided_slice %186 {offsets = [0, 8], sizes = [32, 8], strides = [1, 1]} : vector<32x96xf32> to vector<32x8xf32>
    %cst_105 = arith.constant 0.353553385 : f32
    %212 = vector.broadcast %cst_105 : f32 to vector<32x8xf32>
    %213 = arith.mulf %211, %212 : vector<32x8xf32>
    %214 = vector.extract_strided_slice %186 {offsets = [0, 40], sizes = [32, 8], strides = [1, 1]} : vector<32x96xf32> to vector<32x8xf32>
    %215 = vector.extract_strided_slice %186 {offsets = [0, 72], sizes = [32, 8], strides = [1, 1]} : vector<32x96xf32> to vector<32x8xf32>
    %cst_106 = arith.constant dense<0.000000e+00> : vector<32x32xf32>
    %216 = tpu.matmul %213, %214, %cst_106 {dimension_numbers = #tpu.dot_dimension_numbers<[1], [1], [0], [0], [0, 0, 1, 0], [], []>} : vector<32x8xf32>, vector<32x8xf32>, vector<32x32xf32> -> vector<32x32xf32>
    %217 = arith.addf %216, %1 : vector<32x32xf32>
    %cst_107 = arith.constant dense<0xFF800000> : vector<32xf32>
    %218 = vector.multi_reduction <maximumf>, %217, %cst_107 [1] : vector<32x32xf32> to vector<32xf32>
    %219 = vector.shape_cast %218 : vector<32xf32> to vector<32x1xf32>
    %220 = vector.broadcast %219 : vector<32x1xf32> to vector<32x32xf32>
    %221 = arith.subf %217, %220 : vector<32x32xf32>
    %222 = math.exp %221 : vector<32x32xf32>
    %cst_108 = arith.constant dense<0.000000e+00> : vector<32xf32>
    %223 = vector.multi_reduction <add>, %222, %cst_108 [1] : vector<32x32xf32> to vector<32xf32>
    %224 = vector.shape_cast %223 : vector<32xf32> to vector<32x1xf32>
    %225 = tpu.reciprocal %224 {approx = true} : vector<32x1xf32> -> vector<32x1xf32>
    %226 = vector.broadcast %225 : vector<32x1xf32> to vector<32x32xf32>
    %227 = arith.mulf %222, %226 : vector<32x32xf32>
    %cst_109 = arith.constant dense<0.000000e+00> : vector<32x8xf32>
    %228 = tpu.matmul %227, %215, %cst_109 {dimension_numbers = #tpu.dot_dimension_numbers<[1], [0], [0], [1], [0, 0, 1, 1], [], []>} : vector<32x32xf32>, vector<32x8xf32>, vector<32x8xf32> -> vector<32x8xf32>
    %229 = arith.truncf %228 : vector<32x8xf32> to vector<32x8xbf16>
    %c1_110 = arith.constant 1 : index
    %c1_111 = arith.constant 1 : index
    %c0_112 = arith.constant 0 : index
    %c0_113 = arith.constant 0 : index
    %230 = vector.load %arg6[%c1_110, %c1_111, %c0_112, %c0_113] : memref<2x4x8x32xbf16, #tpu.memory_space<vmem>>, vector<1x1x8x32xbf16>
    %231 = vector.shape_cast %230 : vector<1x1x8x32xbf16> to vector<8x32xbf16>
    %cst_114 = arith.constant dense<0.000000e+00> : vector<32x32xf32>
    %232 = tpu.matmul %229, %231, %cst_114 {dimension_numbers = #tpu.dot_dimension_numbers<[1], [0], [0], [1], [0, 0, 1, 1], [], []>} : vector<32x8xbf16>, vector<8x32xbf16>, vector<32x32xf32> -> vector<32x32xf32>
    %233 = arith.addf %210, %232 : vector<32x32xf32>
    %234 = vector.extract_strided_slice %186 {offsets = [0, 16], sizes = [32, 8], strides = [1, 1]} : vector<32x96xf32> to vector<32x8xf32>
    %cst_115 = arith.constant 0.353553385 : f32
    %235 = vector.broadcast %cst_115 : f32 to vector<32x8xf32>
    %236 = arith.mulf %234, %235 : vector<32x8xf32>
    %237 = vector.extract_strided_slice %186 {offsets = [0, 48], sizes = [32, 8], strides = [1, 1]} : vector<32x96xf32> to vector<32x8xf32>
    %238 = vector.extract_strided_slice %186 {offsets = [0, 80], sizes = [32, 8], strides = [1, 1]} : vector<32x96xf32> to vector<32x8xf32>
    %cst_116 = arith.constant dense<0.000000e+00> : vector<32x32xf32>
    %239 = tpu.matmul %236, %237, %cst_116 {dimension_numbers = #tpu.dot_dimension_numbers<[1], [1], [0], [0], [0, 0, 1, 0], [], []>} : vector<32x8xf32>, vector<32x8xf32>, vector<32x32xf32> -> vector<32x32xf32>
    %240 = arith.addf %239, %1 : vector<32x32xf32>
    %cst_117 = arith.constant dense<0xFF800000> : vector<32xf32>
    %241 = vector.multi_reduction <maximumf>, %240, %cst_117 [1] : vector<32x32xf32> to vector<32xf32>
    %242 = vector.shape_cast %241 : vector<32xf32> to vector<32x1xf32>
    %243 = vector.broadcast %242 : vector<32x1xf32> to vector<32x32xf32>
    %244 = arith.subf %240, %243 : vector<32x32xf32>
    %245 = math.exp %244 : vector<32x32xf32>
    %cst_118 = arith.constant dense<0.000000e+00> : vector<32xf32>
    %246 = vector.multi_reduction <add>, %245, %cst_118 [1] : vector<32x32xf32> to vector<32xf32>
    %247 = vector.shape_cast %246 : vector<32xf32> to vector<32x1xf32>
    %248 = tpu.reciprocal %247 {approx = true} : vector<32x1xf32> -> vector<32x1xf32>
    %249 = vector.broadcast %248 : vector<32x1xf32> to vector<32x32xf32>
    %250 = arith.mulf %245, %249 : vector<32x32xf32>
    %cst_119 = arith.constant dense<0.000000e+00> : vector<32x8xf32>
    %251 = tpu.matmul %250, %238, %cst_119 {dimension_numbers = #tpu.dot_dimension_numbers<[1], [0], [0], [1], [0, 0, 1, 1], [], []>} : vector<32x32xf32>, vector<32x8xf32>, vector<32x8xf32> -> vector<32x8xf32>
    %252 = arith.truncf %251 : vector<32x8xf32> to vector<32x8xbf16>
    %c1_120 = arith.constant 1 : index
    %c2_121 = arith.constant 2 : index
    %c0_122 = arith.constant 0 : index
    %c0_123 = arith.constant 0 : index
    %253 = vector.load %arg6[%c1_120, %c2_121, %c0_122, %c0_123] : memref<2x4x8x32xbf16, #tpu.memory_space<vmem>>, vector<1x1x8x32xbf16>
    %254 = vector.shape_cast %253 : vector<1x1x8x32xbf16> to vector<8x32xbf16>
    %cst_124 = arith.constant dense<0.000000e+00> : vector<32x32xf32>
    %255 = tpu.matmul %252, %254, %cst_124 {dimension_numbers = #tpu.dot_dimension_numbers<[1], [0], [0], [1], [0, 0, 1, 1], [], []>} : vector<32x8xbf16>, vector<8x32xbf16>, vector<32x32xf32> -> vector<32x32xf32>
    %256 = arith.addf %233, %255 : vector<32x32xf32>
    %257 = vector.extract_strided_slice %186 {offsets = [0, 24], sizes = [32, 8], strides = [1, 1]} : vector<32x96xf32> to vector<32x8xf32>
    %cst_125 = arith.constant 0.353553385 : f32
    %258 = vector.broadcast %cst_125 : f32 to vector<32x8xf32>
    %259 = arith.mulf %257, %258 : vector<32x8xf32>
    %260 = vector.extract_strided_slice %186 {offsets = [0, 56], sizes = [32, 8], strides = [1, 1]} : vector<32x96xf32> to vector<32x8xf32>
    %261 = vector.extract_strided_slice %186 {offsets = [0, 88], sizes = [32, 8], strides = [1, 1]} : vector<32x96xf32> to vector<32x8xf32>
    %cst_126 = arith.constant dense<0.000000e+00> : vector<32x32xf32>
    %262 = tpu.matmul %259, %260, %cst_126 {dimension_numbers = #tpu.dot_dimension_numbers<[1], [1], [0], [0], [0, 0, 1, 0], [], []>} : vector<32x8xf32>, vector<32x8xf32>, vector<32x32xf32> -> vector<32x32xf32>
    %263 = arith.addf %262, %1 : vector<32x32xf32>
    %cst_127 = arith.constant dense<0xFF800000> : vector<32xf32>
    %264 = vector.multi_reduction <maximumf>, %263, %cst_127 [1] : vector<32x32xf32> to vector<32xf32>
    %265 = vector.shape_cast %264 : vector<32xf32> to vector<32x1xf32>
    %266 = vector.broadcast %265 : vector<32x1xf32> to vector<32x32xf32>
    %267 = arith.subf %263, %266 : vector<32x32xf32>
    %268 = math.exp %267 : vector<32x32xf32>
    %cst_128 = arith.constant dense<0.000000e+00> : vector<32xf32>
    %269 = vector.multi_reduction <add>, %268, %cst_128 [1] : vector<32x32xf32> to vector<32xf32>
    %270 = vector.shape_cast %269 : vector<32xf32> to vector<32x1xf32>
    %271 = tpu.reciprocal %270 {approx = true} : vector<32x1xf32> -> vector<32x1xf32>
    %272 = vector.broadcast %271 : vector<32x1xf32> to vector<32x32xf32>
    %273 = arith.mulf %268, %272 : vector<32x32xf32>
    %cst_129 = arith.constant dense<0.000000e+00> : vector<32x8xf32>
    %274 = tpu.matmul %273, %261, %cst_129 {dimension_numbers = #tpu.dot_dimension_numbers<[1], [0], [0], [1], [0, 0, 1, 1], [], []>} : vector<32x32xf32>, vector<32x8xf32>, vector<32x8xf32> -> vector<32x8xf32>
    %275 = arith.truncf %274 : vector<32x8xf32> to vector<32x8xbf16>
    %c1_130 = arith.constant 1 : index
    %c3_131 = arith.constant 3 : index
    %c0_132 = arith.constant 0 : index
    %c0_133 = arith.constant 0 : index
    %276 = vector.load %arg6[%c1_130, %c3_131, %c0_132, %c0_133] : memref<2x4x8x32xbf16, #tpu.memory_space<vmem>>, vector<1x1x8x32xbf16>
    %277 = vector.shape_cast %276 : vector<1x1x8x32xbf16> to vector<8x32xbf16>
    %cst_134 = arith.constant dense<0.000000e+00> : vector<32x32xf32>
    %278 = tpu.matmul %275, %277, %cst_134 {dimension_numbers = #tpu.dot_dimension_numbers<[1], [0], [0], [1], [0, 0, 1, 1], [], []>} : vector<32x8xbf16>, vector<8x32xbf16>, vector<32x32xf32> -> vector<32x32xf32>
    %279 = arith.addf %256, %278 : vector<32x32xf32>
    %c1_135 = arith.constant 1 : index
    %c0_136 = arith.constant 0 : index
    %c0_137 = arith.constant 0 : index
    %280 = vector.load %arg7[%c1_135, %c0_136, %c0_137] : memref<2x1x32xf32, #tpu.memory_space<vmem>>, vector<1x1x32xf32>
    %281 = vector.shape_cast %280 : vector<1x1x32xf32> to vector<1x32xf32>
    %282 = vector.broadcast %281 : vector<1x32xf32> to vector<32x32xf32>
    %283 = arith.addf %279, %282 : vector<32x32xf32>
    %284 = arith.addf %178, %283 : vector<32x32xf32>
    %c1_138 = arith.constant 1 : index
    %c0_139 = arith.constant 0 : index
    %c0_140 = arith.constant 0 : index
    %285 = vector.load %arg8[%c1_138, %c0_139, %c0_140] : memref<2x1x32xf32, #tpu.memory_space<vmem>>, vector<1x1x32xf32>
    %286 = vector.shape_cast %285 : vector<1x1x32xf32> to vector<1x32xf32>
    %c1_141 = arith.constant 1 : index
    %c0_142 = arith.constant 0 : index
    %c0_143 = arith.constant 0 : index
    %287 = vector.load %arg9[%c1_141, %c0_142, %c0_143] : memref<2x1x32xf32, #tpu.memory_space<vmem>>, vector<1x1x32xf32>
    %288 = vector.shape_cast %287 : vector<1x1x32xf32> to vector<1x32xf32>
    %cst_144 = arith.constant dense<0.000000e+00> : vector<32xf32>
    %289 = vector.multi_reduction <add>, %284, %cst_144 [1] : vector<32x32xf32> to vector<32xf32>
    %290 = vector.shape_cast %289 : vector<32xf32> to vector<32x1xf32>
    %cst_145 = arith.constant 3.200000e+01 : f32
    %291 = vector.broadcast %cst_145 : f32 to vector<32x1xf32>
    %292 = arith.divf %290, %291 : vector<32x1xf32>
    %293 = vector.broadcast %292 : vector<32x1xf32> to vector<32x32xf32>
    %294 = arith.subf %284, %293 : vector<32x32xf32>
    %295 = arith.mulf %294, %294 : vector<32x32xf32>
    %cst_146 = arith.constant dense<0.000000e+00> : vector<32xf32>
    %296 = vector.multi_reduction <add>, %295, %cst_146 [1] : vector<32x32xf32> to vector<32xf32>
    %297 = vector.shape_cast %296 : vector<32xf32> to vector<32x1xf32>
    %cst_147 = arith.constant 3.200000e+01 : f32
    %298 = vector.broadcast %cst_147 : f32 to vector<32x1xf32>
    %299 = arith.divf %297, %298 : vector<32x1xf32>
    %300 = vector.broadcast %292 : vector<32x1xf32> to vector<32x32xf32>
    %301 = arith.subf %284, %300 : vector<32x32xf32>
    %cst_148 = arith.constant 9.99999974E-6 : f32
    %302 = vector.broadcast %cst_148 : f32 to vector<32x1xf32>
    %303 = arith.addf %299, %302 : vector<32x1xf32>
    %304 = math.rsqrt %303 : vector<32x1xf32>
    %305 = vector.broadcast %304 : vector<32x1xf32> to vector<32x32xf32>
    %306 = arith.mulf %301, %305 : vector<32x32xf32>
    %307 = vector.broadcast %286 : vector<1x32xf32> to vector<32x32xf32>
    %308 = arith.mulf %306, %307 : vector<32x32xf32>
    %309 = vector.broadcast %288 : vector<1x32xf32> to vector<32x32xf32>
    %310 = arith.addf %308, %309 : vector<32x32xf32>
    %311 = arith.truncf %310 : vector<32x32xf32> to vector<32x32xbf16>
    %c1_149 = arith.constant 1 : index
    %c0_150 = arith.constant 0 : index
    %c0_151 = arith.constant 0 : index
    %312 = vector.load %arg10[%c1_149, %c0_150, %c0_151] : memref<2x32x64xbf16, #tpu.memory_space<vmem>>, vector<1x32x64xbf16>
    %313 = vector.shape_cast %312 : vector<1x32x64xbf16> to vector<32x64xbf16>
    %cst_152 = arith.constant dense<0.000000e+00> : vector<32x64xf32>
    %314 = tpu.matmul %311, %313, %cst_152 {dimension_numbers = #tpu.dot_dimension_numbers<[1], [0], [0], [1], [0, 0, 1, 1], [], []>} : vector<32x32xbf16>, vector<32x64xbf16>, vector<32x64xf32> -> vector<32x64xf32>
    %c1_153 = arith.constant 1 : index
    %c0_154 = arith.constant 0 : index
    %c0_155 = arith.constant 0 : index
    %315 = vector.load %arg11[%c1_153, %c0_154, %c0_155] : memref<2x1x64xf32, #tpu.memory_space<vmem>>, vector<1x1x64xf32>
    %316 = vector.shape_cast %315 : vector<1x1x64xf32> to vector<1x64xf32>
    %317 = vector.broadcast %316 : vector<1x64xf32> to vector<32x64xf32>
    %318 = arith.addf %314, %317 : vector<32x64xf32>
    %cst_156 = arith.constant 0.000000e+00 : f32
    %319 = vector.broadcast %cst_156 : f32 to vector<32x64xf32>
    %320 = arith.maximumf %318, %319 : vector<32x64xf32>
    %321 = arith.truncf %320 : vector<32x64xf32> to vector<32x64xbf16>
    %c1_157 = arith.constant 1 : index
    %c0_158 = arith.constant 0 : index
    %c0_159 = arith.constant 0 : index
    %322 = vector.load %arg12[%c1_157, %c0_158, %c0_159] : memref<2x64x32xbf16, #tpu.memory_space<vmem>>, vector<1x64x32xbf16>
    %323 = vector.shape_cast %322 : vector<1x64x32xbf16> to vector<64x32xbf16>
    %cst_160 = arith.constant dense<0.000000e+00> : vector<32x32xf32>
    %324 = tpu.matmul %321, %323, %cst_160 {dimension_numbers = #tpu.dot_dimension_numbers<[1], [0], [0], [1], [0, 0, 1, 1], [], []>} : vector<32x64xbf16>, vector<64x32xbf16>, vector<32x32xf32> -> vector<32x32xf32>
    %c1_161 = arith.constant 1 : index
    %c0_162 = arith.constant 0 : index
    %c0_163 = arith.constant 0 : index
    %325 = vector.load %arg13[%c1_161, %c0_162, %c0_163] : memref<2x1x32xf32, #tpu.memory_space<vmem>>, vector<1x1x32xf32>
    %326 = vector.shape_cast %325 : vector<1x1x32xf32> to vector<1x32xf32>
    %327 = vector.broadcast %326 : vector<1x32xf32> to vector<32x32xf32>
    %328 = arith.addf %324, %327 : vector<32x32xf32>
    %329 = arith.addf %310, %328 : vector<32x32xf32>
    %c1_164 = arith.constant 1 : index
    %c0_165 = arith.constant 0 : index
    %c0_166 = arith.constant 0 : index
    %330 = vector.load %arg14[%c1_164, %c0_165, %c0_166] : memref<2x1x32xf32, #tpu.memory_space<vmem>>, vector<1x1x32xf32>
    %331 = vector.shape_cast %330 : vector<1x1x32xf32> to vector<1x32xf32>
    %c1_167 = arith.constant 1 : index
    %c0_168 = arith.constant 0 : index
    %c0_169 = arith.constant 0 : index
    %332 = vector.load %arg15[%c1_167, %c0_168, %c0_169] : memref<2x1x32xf32, #tpu.memory_space<vmem>>, vector<1x1x32xf32>
    %333 = vector.shape_cast %332 : vector<1x1x32xf32> to vector<1x32xf32>
    %cst_170 = arith.constant dense<0.000000e+00> : vector<32xf32>
    %334 = vector.multi_reduction <add>, %329, %cst_170 [1] : vector<32x32xf32> to vector<32xf32>
    %335 = vector.shape_cast %334 : vector<32xf32> to vector<32x1xf32>
    %cst_171 = arith.constant 3.200000e+01 : f32
    %336 = vector.broadcast %cst_171 : f32 to vector<32x1xf32>
    %337 = arith.divf %335, %336 : vector<32x1xf32>
    %338 = vector.broadcast %337 : vector<32x1xf32> to vector<32x32xf32>
    %339 = arith.subf %329, %338 : vector<32x32xf32>
    %340 = arith.mulf %339, %339 : vector<32x32xf32>
    %cst_172 = arith.constant dense<0.000000e+00> : vector<32xf32>
    %341 = vector.multi_reduction <add>, %340, %cst_172 [1] : vector<32x32xf32> to vector<32xf32>
    %342 = vector.shape_cast %341 : vector<32xf32> to vector<32x1xf32>
    %cst_173 = arith.constant 3.200000e+01 : f32
    %343 = vector.broadcast %cst_173 : f32 to vector<32x1xf32>
    %344 = arith.divf %342, %343 : vector<32x1xf32>
    %345 = vector.broadcast %337 : vector<32x1xf32> to vector<32x32xf32>
    %346 = arith.subf %329, %345 : vector<32x32xf32>
    %cst_174 = arith.constant 9.99999974E-6 : f32
    %347 = vector.broadcast %cst_174 : f32 to vector<32x1xf32>
    %348 = arith.addf %344, %347 : vector<32x1xf32>
    %349 = math.rsqrt %348 : vector<32x1xf32>
    %350 = vector.broadcast %349 : vector<32x1xf32> to vector<32x32xf32>
    %351 = arith.mulf %346, %350 : vector<32x32xf32>
    %352 = vector.broadcast %331 : vector<1x32xf32> to vector<32x32xf32>
    %353 = arith.mulf %351, %352 : vector<32x32xf32>
    %354 = vector.broadcast %333 : vector<1x32xf32> to vector<32x32xf32>
    %355 = arith.addf %353, %354 : vector<32x32xf32>
    %c0_175 = arith.constant 0 : index
    %c0_176 = arith.constant 0 : index
    %356 = vector.load %arg3[%c0_175, %c0_176] : memref<8x32xf32, #tpu.memory_space<vmem>>, vector<8x32xf32>
    %cst_177 = arith.constant dense<0.000000e+00> : vector<8x32xf32>
    %357 = tpu.matmul %356, %355, %cst_177 {dimension_numbers = #tpu.dot_dimension_numbers<[1], [0], [0], [1], [0, 0, 1, 1], [], []>} : vector<8x32xf32>, vector<32x32xf32>, vector<8x32xf32> -> vector<8x32xf32>
    %358 = arith.truncf %357 : vector<8x32xf32> to vector<8x32xbf16>
    %c0_178 = arith.constant 0 : index
    %c0_179 = arith.constant 0 : index
    %359 = vector.load %arg16[%c0_178, %c0_179] : memref<32x32xbf16, #tpu.memory_space<vmem>>, vector<32x32xbf16>
    %cst_180 = arith.constant dense<0.000000e+00> : vector<8x32xf32>
    %360 = tpu.matmul %358, %359, %cst_180 {dimension_numbers = #tpu.dot_dimension_numbers<[1], [0], [0], [1], [0, 0, 1, 1], [], []>} : vector<8x32xbf16>, vector<32x32xbf16>, vector<8x32xf32> -> vector<8x32xf32>
    %c0_181 = arith.constant 0 : index
    %c0_182 = arith.constant 0 : index
    %361 = vector.load %arg17[%c0_181, %c0_182] : memref<1x32xf32, #tpu.memory_space<vmem>>, vector<1x32xf32>
    %362 = vector.broadcast %361 : vector<1x32xf32> to vector<8x32xf32>
    %363 = arith.addf %360, %362 : vector<8x32xf32>
    %cst_183 = arith.constant 2.000000e+01 : f32
    %364 = vector.broadcast %cst_183 : f32 to vector<8x32xf32>
    %365 = arith.cmpf ogt, %363, %364 : vector<8x32xf32>
    %cst_184 = arith.constant 2.000000e+01 : f32
    %366 = vector.broadcast %cst_184 : f32 to vector<8x32xf32>
    %367 = arith.minimumf %363, %366 : vector<8x32xf32>
    %368 = math.exp %367 : vector<8x32xf32>
    %369 = math.log1p %368 : vector<8x32xf32>
    %370 = arith.select %365, %363, %369 : vector<8x32xi1>, vector<8x32xf32>
    %371 = arith.truncf %370 : vector<8x32xf32> to vector<8x32xbf16>
    %c0_185 = arith.constant 0 : index
    %c0_186 = arith.constant 0 : index
    %372 = vector.load %arg18[%c0_185, %c0_186] : memref<32x32xbf16, #tpu.memory_space<vmem>>, vector<32x32xbf16>
    %cst_187 = arith.constant dense<0.000000e+00> : vector<8x32xf32>
    %373 = tpu.matmul %371, %372, %cst_187 {dimension_numbers = #tpu.dot_dimension_numbers<[1], [0], [0], [1], [0, 0, 1, 1], [], []>} : vector<8x32xbf16>, vector<32x32xbf16>, vector<8x32xf32> -> vector<8x32xf32>
    %c0_188 = arith.constant 0 : index
    %c0_189 = arith.constant 0 : index
    %374 = vector.load %arg19[%c0_188, %c0_189] : memref<1x32xf32, #tpu.memory_space<vmem>>, vector<1x32xf32>
    %375 = vector.broadcast %374 : vector<1x32xf32> to vector<8x32xf32>
    %376 = arith.addf %373, %375 : vector<8x32xf32>
    %c0_190 = arith.constant 0 : index
    %c0_191 = arith.constant 0 : index
    %377 = vector.load %arg20[%c0_190, %c0_191] : memref<8x32xf32, #tpu.memory_space<vmem>>, vector<8x32xf32>
    tpu.vector_store %arg20[%c0_190, %c0_191], %376 {strides = array<i32>} : memref<8x32xf32, #tpu.memory_space<vmem>>, vector<8x32xf32>,
    return
  }
  func.func @transform_0(%arg0: i32) -> (i32, i32) {
    %c0_i32 = arith.constant 0 : i32
    %c0_i32_0 = arith.constant 0 : i32
    %c0_i32_1 = arith.constant 0 : i32
    return %c0_i32, %c0_i32_0 : i32, i32
  }
  func.func @transform_1(%arg0: i32) -> (i32, i32) {
    %c0_i32 = arith.constant 0 : i32
    %c0_i32_0 = arith.constant 0 : i32
    %c0_i32_1 = arith.constant 0 : i32
    return %c0_i32, %c0_i32_0 : i32, i32
  }
  func.func @transform_2(%arg0: i32) -> (i32, i32) {
    %c0_i32 = arith.constant 0 : i32
    %c0_i32_0 = arith.constant 0 : i32
    %c0_i32_1 = arith.constant 0 : i32
    return %c0_i32, %c0_i32_0 : i32, i32
  }
  func.func @transform_3(%arg0: i32) -> (i32, i32, i32) {
    %c0_i32 = arith.constant 0 : i32
    %c0_i32_0 = arith.constant 0 : i32
    %c0_i32_1 = arith.constant 0 : i32
    %c0_i32_2 = arith.constant 0 : i32
    return %c0_i32, %c0_i32_0, %c0_i32_1 : i32, i32, i32
  }
  func.func @transform_4(%arg0: i32) -> (i32, i32, i32) {
    %c0_i32 = arith.constant 0 : i32
    %c0_i32_0 = arith.constant 0 : i32
    %c0_i32_1 = arith.constant 0 : i32
    %c0_i32_2 = arith.constant 0 : i32
    return %c0_i32, %c0_i32_0, %c0_i32_1 : i32, i32, i32
  }
  func.func @transform_5(%arg0: i32) -> (i32, i32, i32, i32) {
    %c0_i32 = arith.constant 0 : i32
    %c0_i32_0 = arith.constant 0 : i32
    %c0_i32_1 = arith.constant 0 : i32
    %c0_i32_2 = arith.constant 0 : i32
    %c0_i32_3 = arith.constant 0 : i32
    return %c0_i32, %c0_i32_0, %c0_i32_1, %c0_i32_2 : i32, i32, i32, i32
  }
  func.func @transform_6(%arg0: i32) -> (i32, i32, i32) {
    %c0_i32 = arith.constant 0 : i32
    %c0_i32_0 = arith.constant 0 : i32
    %c0_i32_1 = arith.constant 0 : i32
    %c0_i32_2 = arith.constant 0 : i32
    return %c0_i32, %c0_i32_0, %c0_i32_1 : i32, i32, i32
  }
  func.func @transform_7(%arg0: i32) -> (i32, i32, i32) {
    %c0_i32 = arith.constant 0 : i32
    %c0_i32_0 = arith.constant 0 : i32
    %c0_i32_1 = arith.constant 0 : i32
    %c0_i32_2 = arith.constant 0 : i32
    return %c0_i32, %c0_i32_0, %c0_i32_1 : i32, i32, i32
  }
  func.func @transform_8(%arg0: i32) -> (i32, i32, i32) {
    %c0_i32 = arith.constant 0 : i32
    %c0_i32_0 = arith.constant 0 : i32
    %c0_i32_1 = arith.constant 0 : i32
    %c0_i32_2 = arith.constant 0 : i32
    return %c0_i32, %c0_i32_0, %c0_i32_1 : i32, i32, i32
  }
  func.func @transform_9(%arg0: i32) -> (i32, i32, i32) {
    %c0_i32 = arith.constant 0 : i32
    %c0_i32_0 = arith.constant 0 : i32
    %c0_i32_1 = arith.constant 0 : i32
    %c0_i32_2 = arith.constant 0 : i32
    return %c0_i32, %c0_i32_0, %c0_i32_1 : i32, i32, i32
  }
  func.func @transform_10(%arg0: i32) -> (i32, i32, i32) {
    %c0_i32 = arith.constant 0 : i32
    %c0_i32_0 = arith.constant 0 : i32
    %c0_i32_1 = arith.constant 0 : i32
    %c0_i32_2 = arith.constant 0 : i32
    return %c0_i32, %c0_i32_0, %c0_i32_1 : i32, i32, i32
  }
  func.func @transform_11(%arg0: i32) -> (i32, i32, i32) {
    %c0_i32 = arith.constant 0 : i32
    %c0_i32_0 = arith.constant 0 : i32
    %c0_i32_1 = arith.constant 0 : i32
    %c0_i32_2 = arith.constant 0 : i32
    return %c0_i32, %c0_i32_0, %c0_i32_1 : i32, i32, i32
  }
  func.func @transform_12(%arg0: i32) -> (i32, i32, i32) {
    %c0_i32 = arith.constant 0 : i32
    %c0_i32_0 = arith.constant 0 : i32
    %c0_i32_1 = arith.constant 0 : i32
    %c0_i32_2 = arith.constant 0 : i32
    return %c0_i32, %c0_i32_0, %c0_i32_1 : i32, i32, i32
  }
  func.func @transform_13(%arg0: i32) -> (i32, i32, i32) {
    %c0_i32 = arith.constant 0 : i32
    %c0_i32_0 = arith.constant 0 : i32
    %c0_i32_1 = arith.constant 0 : i32
    %c0_i32_2 = arith.constant 0 : i32
    return %c0_i32, %c0_i32_0, %c0_i32_1 : i32, i32, i32
  }
  func.func @transform_14(%arg0: i32) -> (i32, i32, i32) {
    %c0_i32 = arith.constant 0 : i32
    %c0_i32_0 = arith.constant 0 : i32
    %c0_i32_1 = arith.constant 0 : i32
    %c0_i32_2 = arith.constant 0 : i32
    return %c0_i32, %c0_i32_0, %c0_i32_1 : i32, i32, i32
  }
  func.func @transform_15(%arg0: i32) -> (i32, i32) {
    %c0_i32 = arith.constant 0 : i32
    %c0_i32_0 = arith.constant 0 : i32
    %c0_i32_1 = arith.constant 0 : i32
    return %c0_i32, %c0_i32_0 : i32, i32
  }
  func.func @transform_16(%arg0: i32) -> (i32, i32) {
    %c0_i32 = arith.constant 0 : i32
    %c0_i32_0 = arith.constant 0 : i32
    %c0_i32_1 = arith.constant 0 : i32
    return %c0_i32, %c0_i32_0 : i32, i32
  }
  func.func @transform_17(%arg0: i32) -> (i32, i32) {
    %c0_i32 = arith.constant 0 : i32
    %c0_i32_0 = arith.constant 0 : i32
    %c0_i32_1 = arith.constant 0 : i32
    return %c0_i32, %c0_i32_0 : i32, i32
  }
  func.func @transform_18(%arg0: i32) -> (i32, i32) {
    %c0_i32 = arith.constant 0 : i32
    %c0_i32_0 = arith.constant 0 : i32
    %c0_i32_1 = arith.constant 0 : i32
    return %c0_i32, %c0_i32_0 : i32, i32
  }
  func.func @transform_19(%arg0: i32) -> (i32, i32) {
    %c0_i32 = arith.constant 0 : i32
    %c0_i32_0 = arith.constant 0 : i32
    %c0_i32_1 = arith.constant 0 : i32
    return %c0_i32, %c0_i32_0 : i32, i32
  }
}

</mosaic_0001>

<llo_original>
// kernel: tpu_custom_call.1
$region0: #{tpu_custom_call.1}
  #allocation0 [shape = 'u32[]', space=smem, size = 0x4, offset = 0x4, fixed_abs, tag = 'smem constant byte address 0x4 - core index']
  #allocation1 [shape = 'u32[72,128]{1,0:T(1,128)}', space=vmem, size = 0x9000, scoped, tag = 'internal scratch']
  %s0 = inlined_call_operand.vmem [shape: f32[32,32], index: 0, kind: input, shape index: {}]
  %s1 = inlined_call_operand.vmem [shape: f32[32,32], index: 1, kind: input, shape index: {}]
  %s2 = inlined_call_operand.hbm [shape: f32[8,32], index: 2, kind: input, shape index: {}]
  %s3 = inlined_call_operand.vmem [shape: bf16[2,32,96], index: 3, kind: input, shape index: {}]
  %s4 = inlined_call_operand.vmem [shape: f32[2,1,96], index: 4, kind: input, shape index: {}]
  %s5 = inlined_call_operand.hbm [shape: bf16[2,4,8,32], index: 5, kind: input, shape index: {}]
  %s6 = inlined_call_operand.vmem [shape: f32[2,1,32], index: 6, kind: input, shape index: {}]
  %s7 = inlined_call_operand.hbm [shape: f32[2,1,32], index: 7, kind: input, shape index: {}]
  %s8 = inlined_call_operand.vmem [shape: f32[2,1,32], index: 8, kind: input, shape index: {}]
  %s9 = inlined_call_operand.hbm [shape: bf16[2,32,64], index: 9, kind: input, shape index: {}]
  %s10 = inlined_call_operand.vmem [shape: f32[2,1,64], index: 10, kind: input, shape index: {}]
  %s11 = inlined_call_operand.vmem [shape: bf16[2,64,32], index: 11, kind: input, shape index: {}]
  %s12 = inlined_call_operand.vmem [shape: f32[2,1,32], index: 12, kind: input, shape index: {}]
  %s13 = inlined_call_operand.hbm [shape: f32[2,1,32], index: 13, kind: input, shape index: {}]
  %s14 = inlined_call_operand.vmem [shape: f32[2,1,32], index: 14, kind: input, shape index: {}]
  %s15 = inlined_call_operand.hbm [shape: bf16[32,32], index: 15, kind: input, shape index: {}]
  %s16 = inlined_call_operand.vmem [shape: f32[1,32], index: 16, kind: input, shape index: {}]
  %s17 = inlined_call_operand.hbm [shape: bf16[32,32], index: 17, kind: input, shape index: {}]
  %s18 = inlined_call_operand.vmem [shape: f32[1,32], index: 18, kind: input, shape index: {}]
  %s19 = inlined_call_operand.hbm [shape: f32[8,32], index: 19, kind: output, shape index: {}]
  %s20 = sld [smem:[#allocation0]]
  $region114: #{tpu_custom_call.1} parent=0
    _
  %s22 = ssub.s32 1, %s20
  %s23 = scalar_select 0, %s22, %s20
  $region1: #{tpu_custom_call.1} parent=0
    #allocation2 [shape = 'u8[4096]{0}', space=vmem, size = 0x1000, scoped, tag = 'input window, operand 2, single buffered']
    #allocation3 [shape = 's32[1]{0}', space=sflag, size = 0x4, scoped, tag = 'scoped memory for tpu_custom_call.1']
    #allocation4 [shape = 's32[1]{0}', space=sflag, size = 0x4, scoped, tag = 'scoped memory for tpu_custom_call.1']
    #allocation5 [shape = 'u8[16384]{0}', space=vmem, size = 0x4000, scoped, tag = 'input window, operand 5, single buffered']
    #allocation6 [shape = 's32[1]{0}', space=sflag, size = 0x4, scoped, tag = 'scoped memory for tpu_custom_call.1']
    #allocation7 [shape = 'u8[1024]{0}', space=vmem, size = 0x400, scoped, tag = 'input window, operand 7, single buffered']
    #allocation8 [shape = 'u8[16384]{0}', space=vmem, size = 0x4000, scoped, tag = 'input window, operand 9, single buffered']
    #allocation9 [shape = 's32[1]{0}', space=sflag, size = 0x4, scoped, tag = 'scoped memory for tpu_custom_call.1']
    #allocation10 [shape = 'u8[1024]{0}', space=vmem, size = 0x400, scoped, tag = 'input window, operand 13, single buffered']
    #allocation11 [shape = 'u8[8192]{0}', space=vmem, size = 0x2000, scoped, tag = 'input window, operand 15, single buffered']
    #allocation12 [shape = 's32[1]{0}', space=sflag, size = 0x4, scoped, tag = 'scoped memory for tpu_custom_call.1']
    #allocation13 [shape = 'u8[8192]{0}', space=vmem, size = 0x2000, scoped, tag = 'input window, operand 17, single buffered']
    #allocation14 [shape = 'u8[4096]{0}', space=vmem, size = 0x1000, scoped, tag = 'output window, operand 0, single buffered']
    %24 = vsyncpa [#allocation3], 0
    %25 = vsyncpa [#allocation6], 0
    %26 = vsyncpa [#allocation9], 0
    %27 = vsyncpa [#allocation12], 0
    %28 = vsyncpa [#allocation4], 0
    // Predicated region
    $region2: #{tpu_custom_call.1} parent=1 // pred_check
      _
    $region3: #{tpu_custom_call.1} parent=1 // pred_check_branch
      %30 = sbr.rel (0) target = $region5
    $region4: #{tpu_custom_call.1} parent=1 // pred_region
      _
    $region5: #{tpu_custom_call.1} parent=1 // pred_fallthru
      _
    // Predicated region
    $region6: #{tpu_custom_call.1} parent=1 // pred_check
      _
    $region7: #{tpu_custom_call.1} parent=1 // pred_check_branch
      %32 = sbr.rel (0) target = $region9
    $region8: #{tpu_custom_call.1} parent=1 // pred_region
      _
    $region9: #{tpu_custom_call.1} parent=1 // pred_fallthru
      _
    // Predicated region
    $region10: #{tpu_custom_call.1} parent=1 // pred_check
      _
    $region11: #{tpu_custom_call.1} parent=1 // pred_check_branch
      %34 = sbr.rel (0) target = $region13
    $region12: #{tpu_custom_call.1} parent=1 // pred_region
      %36 = vsyncadd [#allocation3], 0
      %s38 = sshll.u32 %s2, 4
      %s39 = int_to_ptr.hbm [resolvable:$true] %s38
      %s40 = sshll.u32 [#allocation2], 4
      %s41 = int_to_ptr.vmem [resolvable:$true] %s40
      %43 = dma.hbm_to_vmem [thread:$0]  %s39, 128, %s41, [#allocation3]
    $region13: #{tpu_custom_call.1} parent=1 // pred_fallthru
      _
    // Predicated region
    $region14: #{tpu_custom_call.1} parent=1 // pred_check
      _
    $region15: #{tpu_custom_call.1} parent=1 // pred_check_branch
      %45 = sbr.rel (0) target = $region17
    $region16: #{tpu_custom_call.1} parent=1 // pred_region
      _
    $region17: #{tpu_custom_call.1} parent=1 // pred_fallthru
      _
    // Predicated region
    $region18: #{tpu_custom_call.1} parent=1 // pred_check
      _
    $region19: #{tpu_custom_call.1} parent=1 // pred_check_branch
      %47 = sbr.rel (0) target = $region21
    $region20: #{tpu_custom_call.1} parent=1 // pred_region
      _
    $region21: #{tpu_custom_call.1} parent=1 // pred_fallthru
      _
    // Predicated region
    $region22: #{tpu_custom_call.1} parent=1 // pred_check
      _
    $region23: #{tpu_custom_call.1} parent=1 // pred_check_branch
      %49 = sbr.rel (0) target = $region25
    $region24: #{tpu_custom_call.1} parent=1 // pred_region
      %51 = vsyncadd [#allocation6], 0
      %s52 = sshll.u32 %s5, 4
      %s53 = int_to_ptr.hbm [resolvable:$true] %s52
      %s54 = sshll.u32 [#allocation5], 4
      %s55 = int_to_ptr.vmem [resolvable:$true] %s54
      %60 = dma.hbm_to_vmem [thread:$0]  %s53, 512, %s55, [#allocation6], 64, 64, 4
    $region25: #{tpu_custom_call.1} parent=1 // pred_fallthru
      _
    // Predicated region
    $region26: #{tpu_custom_call.1} parent=1 // pred_check
      _
    $region27: #{tpu_custom_call.1} parent=1 // pred_check_branch
      %62 = sbr.rel (0) target = $region29
    $region28: #{tpu_custom_call.1} parent=1 // pred_region
      _
    $region29: #{tpu_custom_call.1} parent=1 // pred_fallthru
      _
    // Predicated region
    $region30: #{tpu_custom_call.1} parent=1 // pred_check
      _
    $region31: #{tpu_custom_call.1} parent=1 // pred_check_branch
      %64 = sbr.rel (0) target = $region33
    $region32: #{tpu_custom_call.1} parent=1 // pred_region
      %66 = vsyncadd [#allocation6], 0
      %s67 = sshll.u32 %s7, 4
      %s68 = int_to_ptr.hbm [resolvable:$true] %s67
      %s69 = sshll.u32 [#allocation7], 4
      %s70 = int_to_ptr.vmem [resolvable:$true] %s69
      %75 = dma.hbm_to_vmem [thread:$0]  %s68, 32, %s70, [#allocation6], 16, 16, 1
    $region33: #{tpu_custom_call.1} parent=1 // pred_fallthru
      _
    // Predicated region
    $region34: #{tpu_custom_call.1} parent=1 // pred_check
      _
    $region35: #{tpu_custom_call.1} parent=1 // pred_check_branch
      %77 = sbr.rel (0) target = $region37
    $region36: #{tpu_custom_call.1} parent=1 // pred_region
      _
    $region37: #{tpu_custom_call.1} parent=1 // pred_fallthru
      _
    // Predicated region
    $region38: #{tpu_custom_call.1} parent=1 // pred_check
      _
    $region39: #{tpu_custom_call.1} parent=1 // pred_check_branch
      %79 = sbr.rel (0) target = $region41
    $region40: #{tpu_custom_call.1} parent=1 // pred_region
      %81 = vsyncadd [#allocation9], 0
      %s82 = sshll.u32 %s9, 4
      %s83 = int_to_ptr.hbm [resolvable:$true] %s82
      %s84 = sshll.u32 [#allocation8], 4
      %s85 = int_to_ptr.vmem [resolvable:$true] %s84
      %90 = dma.hbm_to_vmem [thread:$0]  %s83, 512, %s85, [#allocation9], 64, 64, 4
    $region41: #{tpu_custom_call.1} parent=1 // pred_fallthru
      _
    // Predicated region
    $region42: #{tpu_custom_call.1} parent=1 // pred_check
      _
    $region43: #{tpu_custom_call.1} parent=1 // pred_check_branch
      %92 = sbr.rel (0) target = $region45
    $region44: #{tpu_custom_call.1} parent=1 // pred_region
      _
    $region45: #{tpu_custom_call.1} parent=1 // pred_fallthru
      _
    // Predicated region
    $region46: #{tpu_custom_call.1} parent=1 // pred_check
      _
    $region47: #{tpu_custom_call.1} parent=1 // pred_check_branch
      %94 = sbr.rel (0) target = $region49
    $region48: #{tpu_custom_call.1} parent=1 // pred_region
      _
    $region49: #{tpu_custom_call.1} parent=1 // pred_fallthru
      _
    // Predicated region
    $region50: #{tpu_custom_call.1} parent=1 // pred_check
      _
    $region51: #{tpu_custom_call.1} parent=1 // pred_check_branch
      %96 = sbr.rel (0) target = $region53
    $region52: #{tpu_custom_call.1} parent=1 // pred_region
      _
    $region53: #{tpu_custom_call.1} parent=1 // pred_fallthru
      _
    // Predicated region
    $region54: #{tpu_custom_call.1} parent=1 // pred_check
      _
    $region55: #{tpu_custom_call.1} parent=1 // pred_check_branch
      %98 = sbr.rel (0) target = $region57
    $region56: #{tpu_custom_call.1} parent=1 // pred_region
      %100 = vsyncadd [#allocation9], 0
      %s101 = sshll.u32 %s13, 4
      %s102 = int_to_ptr.hbm [resolvable:$true] %s101
      %s103 = sshll.u32 [#allocation10], 4
      %s104 = int_to_ptr.vmem [resolvable:$true] %s103
      %109 = dma.hbm_to_vmem [thread:$0]  %s102, 32, %s104, [#allocation9], 16, 16, 1
    $region57: #{tpu_custom_call.1} parent=1 // pred_fallthru
      _
    // Predicated region
    $region58: #{tpu_custom_call.1} parent=1 // pred_check
      _
    $region59: #{tpu_custom_call.1} parent=1 // pred_check_branch
      %111 = sbr.rel (0) target = $region61
    $region60: #{tpu_custom_call.1} parent=1 // pred_region
      _
    $region61: #{tpu_custom_call.1} parent=1 // pred_fallthru
      _
    // Predicated region
    $region62: #{tpu_custom_call.1} parent=1 // pred_check
      _
    $region63: #{tpu_custom_call.1} parent=1 // pred_check_branch
      %113 = sbr.rel (0) target = $region65
    $region64: #{tpu_custom_call.1} parent=1 // pred_region
      %115 = vsyncadd [#allocation12], 0
      %s116 = sshll.u32 %s15, 4
      %s117 = int_to_ptr.hbm [resolvable:$true] %s116
      %s118 = sshll.u32 [#allocation11], 4
      %s119 = int_to_ptr.vmem [resolvable:$true] %s118
      %124 = dma.hbm_to_vmem [thread:$0]  %s117, 256, %s119, [#allocation12], 64, 64, 4
    $region65: #{tpu_custom_call.1} parent=1 // pred_fallthru
      _
    // Predicated region
    $region66: #{tpu_custom_call.1} parent=1 // pred_check
      _
    $region67: #{tpu_custom_call.1} parent=1 // pred_check_branch
      %126 = sbr.rel (0) target = $region69
    $region68: #{tpu_custom_call.1} parent=1 // pred_region
      _
    $region69: #{tpu_custom_call.1} parent=1 // pred_fallthru
      _
    // Predicated region
    $region70: #{tpu_custom_call.1} parent=1 // pred_check
      _
    $region71: #{tpu_custom_call.1} parent=1 // pred_check_branch
      %128 = sbr.rel (0) target = $region73
    $region72: #{tpu_custom_call.1} parent=1 // pred_region
      %130 = vsyncadd [#allocation12], 0
      %s131 = sshll.u32 %s17, 4
      %s132 = int_to_ptr.hbm [resolvable:$true] %s131
      %s133 = sshll.u32 [#allocation13], 4
      %s134 = int_to_ptr.vmem [resolvable:$true] %s133
      %139 = dma.hbm_to_vmem [thread:$0]  %s132, 256, %s134, [#allocation12], 64, 64, 4
    $region73: #{tpu_custom_call.1} parent=1 // pred_fallthru
      _
    // Predicated region
    $region74: #{tpu_custom_call.1} parent=1 // pred_check
      _
    $region75: #{tpu_custom_call.1} parent=1 // pred_check_branch
      %141 = sbr.rel (0) target = $region77
    $region76: #{tpu_custom_call.1} parent=1 // pred_region
      _
    $region77: #{tpu_custom_call.1} parent=1 // pred_fallthru
      _
    // Predicated region
    $region78: #{tpu_custom_call.1} parent=1 // pred_check
      _
    $region79: #{tpu_custom_call.1} parent=1 // pred_check_branch
      %143 = sbr.rel (0) target = $region81
    $region80: #{tpu_custom_call.1} parent=1 // pred_region
      %145 = dma.done [#allocation3], 128
    $region81: #{tpu_custom_call.1} parent=1 // pred_fallthru
      _
    // Predicated region
    $region82: #{tpu_custom_call.1} parent=1 // pred_check
      _
    $region83: #{tpu_custom_call.1} parent=1 // pred_check_branch
      %147 = sbr.rel (0) target = $region85
    $region84: #{tpu_custom_call.1} parent=1 // pred_region
      %149 = dma.done [#allocation6], 512
    $region85: #{tpu_custom_call.1} parent=1 // pred_fallthru
      _
    // Predicated region
    $region86: #{tpu_custom_call.1} parent=1 // pred_check
      _
    $region87: #{tpu_custom_call.1} parent=1 // pred_check_branch
      %151 = sbr.rel (0) target = $region89
    $region88: #{tpu_custom_call.1} parent=1 // pred_region
      %153 = dma.done [#allocation6], 32
    $region89: #{tpu_custom_call.1} parent=1 // pred_fallthru
      _
    // Predicated region
    $region90: #{tpu_custom_call.1} parent=1 // pred_check
      _
    $region91: #{tpu_custom_call.1} parent=1 // pred_check_branch
      %155 = sbr.rel (0) target = $region93
    $region92: #{tpu_custom_call.1} parent=1 // pred_region
      %157 = dma.done [#allocation9], 512
    $region93: #{tpu_custom_call.1} parent=1 // pred_fallthru
      _
    // Predicated region
    $region94: #{tpu_custom_call.1} parent=1 // pred_check
      _
    $region95: #{tpu_custom_call.1} parent=1 // pred_check_branch
      %159 = sbr.rel (0) target = $region97
    $region96: #{tpu_custom_call.1} parent=1 // pred_region
      %161 = dma.done [#allocation9], 32
    $region97: #{tpu_custom_call.1} parent=1 // pred_fallthru
      _
    // Predicated region
    $region98: #{tpu_custom_call.1} parent=1 // pred_check
      _
    $region99: #{tpu_custom_call.1} parent=1 // pred_check_branch
      %163 = sbr.rel (0) target = $region101
    $region100: #{tpu_custom_call.1} parent=1 // pred_region
      %165 = dma.done [#allocation12], 256
    $region101: #{tpu_custom_call.1} parent=1 // pred_fallthru
      _
    // Predicated region
    $region102: #{tpu_custom_call.1} parent=1 // pred_check
      _
    $region103: #{tpu_custom_call.1} parent=1 // pred_check_branch
      %167 = sbr.rel (0) target = $region105
    $region104: #{tpu_custom_call.1} parent=1 // pred_region
      %169 = dma.done [#allocation12], 256
    $region105: #{tpu_custom_call.1} parent=1 // pred_fallthru
      _
    %v171 = vld [vmem:[%s0] sm:$0xff]
    %v172 = vld [vmem:[%s0 + $0x8] sm:$0xff]
    %v173 = vld [vmem:[%s0 + $0x10] sm:$0xff]
    %v174 = vld [vmem:[%s0 + $0x18] sm:$0xff]
    %v175 = vld [vmem:[%s1] sm:$0xff]
    %v176 = vld [vmem:[%s1 + $0x8] sm:$0xff]
    %v177 = vld [vmem:[%s1 + $0x10] sm:$0xff]
    %v178 = vld [vmem:[%s1 + $0x18] sm:$0xff]
    %v179 = vpack.c.bf16 %v172, %v171
    %v180 = vpack.c.bf16 %v174, %v173
    %v181 = vld [vmem:[%s3] sm:$0xf]
    %v182 = vld [vmem:[%s3 + $0x4] sm:$0xf]
    %v183 = vld [vmem:[%s3 + $0x8] sm:$0xf]
    %v184 = vld [vmem:[%s3 + $0xc] sm:$0xf]
    %v185 = vld [vmem:[%s4] sm:$0x1]
    %v187 = vperm.slane %v185, 0
    %v193 = vunpack.c.l.b16 %v181
    %v194 = vunpack.c.l.b16 %v182
    %v195 = vunpack.c.l.b16 %v183
    %v196 = vunpack.c.l.b16 %v184
    %v197 = vpack.c.b16 %v194, %v193
    %v198 = vpack.c.b16 %v196, %v195
    %vm201 = vcmask 261120
    %v203 = vsel %vm201, %v179, 0
    %v206 = vsel %vm201, %v180, 0
    %208 = vmatpush.bf16.msra.mxu0 0
    %209 = vmatpush.bf16.msra.mxu0 0
    %210 = vmatpush.bf16.msra.mxu0 0
    %211 = vmatpush.bf16.msra.mxu0 0
    %212 = vmatpush.bf16.msra.mxu0 0
    %213 = vmatpush.bf16.msra.mxu0 0
    %214 = vmatpush.bf16.msra.mxu0 %v198
    %215 = vmatpush.bf16.msra.mxu0 %v197
    %216 = vmatmul.bf16.gmra.mxu0 %v203
    %v217 = vpop.f32.mrf.mxu0
    %v218 = vadd.f32 %v187, %v217
    %v219 = vpop.f32.mrf.mxu0
    %v220 = vadd.f32 %v187, %v219
    %221 = vmatmul.bf16.gmra.mxu0 %v206
    %v222 = vpop.f32.mrf.mxu0
    %v223 = vadd.f32 %v187, %v222
    %v224 = vpop.f32.mrf.mxu0
    %v225 = vadd.f32 %v187, %v224
    %226 = vdwg.mxu0
    %v227 = vmul.f32 %v218, 0.35355338
    %v228 = vmul.f32 %v220, 0.35355338
    %v229 = vmul.f32 %v223, 0.35355338
    %v230 = vmul.f32 %v225, 0.35355338
    %235 = vrot.lane.b32.xlu0 %v218, 96
    %v236 = vpop.permute.xlu0 %235
    %237 = vrot.lane.b32.xlu0 %v220, 96
    %v238 = vpop.permute.xlu0 %237
    %239 = vrot.lane.b32.xlu0 %v223, 96
    %v240 = vpop.permute.xlu0 %239
    %241 = vrot.lane.b32.xlu0 %v225, 96
    %v242 = vpop.permute.xlu0 %241
    %vm243 = vcmask 64512
    %v245 = vsel %vm243, %v227, 0
    %v248 = vsel %vm243, %v228, 0
    %v251 = vsel %vm243, %v229, 0
    %v254 = vsel %vm243, %v230, 0
    %v256 = vsel %vm243, %v236, 0
    %v258 = vsel %vm243, %v238, 0
    %v260 = vsel %vm243, %v240, 0
    %v262 = vsel %vm243, %v242, 0
    %264 = vmatpush.xpose.msra.mxu0 0.0
    %265 = vmatpush.xpose.msra.mxu0 0.0
    %266 = vmatpush.xpose.msra.mxu0 0.0
    %267 = vmatpush.xpose.msra.mxu0 0.0
    %268 = vmatpush.xpose.msra.mxu0 0.0
    %269 = vmatpush.xpose.msra.mxu0 0.0
    %270 = vmatpush.xpose.msra.mxu0 0.0
    %271 = vmatpush.xpose.msra.mxu0 0.0
    %272 = vmatpush.xpose.msra.mxu0 0.0
    %273 = vmatpush.xpose.msra.mxu0 0.0
    %274 = vmatpush.xpose.msra.mxu0 0.0
    %275 = vmatpush.xpose.msra.mxu0 0.0
    %276 = vmatpush.xpose.msra.mxu0 %v262
    %277 = vmatpush.xpose.msra.mxu0 %v260
    %278 = vmatpush.xpose.msra.mxu0 %v258
    %279 = vmatpush.xpose.msra.mxu0 %v256
    %280 = vmatmul.f32.gmra.mxu0 %v245
    %v281 = vpop.f32.mrf.mxu0
    %v282 = vadd.f32 %v175, %v281
    %283 = vmatmul.f32.gmra.mxu0 %v248
    %v284 = vpop.f32.mrf.mxu0
    %v285 = vadd.f32 %v176, %v284
    %286 = vmatmul.f32.gmra.mxu0 %v251
    %v287 = vpop.f32.mrf.mxu0
    %v288 = vadd.f32 %v177, %v287
    %289 = vmatmul.f32.gmra.mxu0 %v254
    %v290 = vpop.f32.mrf.mxu0
    %v291 = vadd.f32 %v178, %v290
    %292 = vdwg.mxu0
    %v293 = vsel %vm201, %v282, -inf
    %294 = vmax.xlane.f32.xlu0 %v293
    %v295 = vpop.xlane.xlu0 %294
    %v296 = vsel %vm201, %v285, -inf
    %297 = vmax.xlane.f32.xlu0 %v296
    %v298 = vpop.xlane.xlu0 %297
    %v299 = vsel %vm201, %v288, -inf
    %300 = vmax.xlane.f32.xlu0 %v299
    %v301 = vpop.xlane.xlu0 %300
    %v302 = vsel %vm201, %v291, -inf
    %303 = vmax.xlane.f32.xlu0 %v302
    %v304 = vpop.xlane.xlu0 %303
    %v305 = vsub.f32 %v282, %v295
    %v306 = vsub.f32 %v285, %v298
    %v307 = vsub.f32 %v288, %v301
    %v308 = vsub.f32 %v291, %v304
    %v309 = vmul.f32 %v305, 1.442695
    %v310 = vpow.pop %v309
    %v311 = vmul.f32 %v306, 1.442695
    %v312 = vpow.pop %v311
    %v313 = vmul.f32 %v307, 1.442695
    %v314 = vpow.pop %v313
    %v315 = vmul.f32 %v308, 1.442695
    %v316 = vpow.pop %v315
    %v317 = vsel %vm201, %v310, 0.0
    %318 = vadd.xlane.f32.xlu0 %v317
    %v319 = vpop.xlane.xlu0 %318
    %v320 = vsel %vm201, %v312, 0.0
    %321 = vadd.xlane.f32.xlu0 %v320
    %v322 = vpop.xlane.xlu0 %321
    %v323 = vsel %vm201, %v314, 0.0
    %324 = vadd.xlane.f32.xlu0 %v323
    %v325 = vpop.xlane.xlu0 %324
    %v326 = vsel %vm201, %v316, 0.0
    %327 = vadd.xlane.f32.xlu0 %v326
    %v328 = vpop.xlane.xlu0 %327
    %v329 = vrcp.pop %v319
    %v330 = vrcp.pop %v322
    %v331 = vrcp.pop %v325
    %v332 = vrcp.pop %v328
    %v333 = vmul.f32 %v310, %v329
    %v334 = vmul.f32 %v312, %v330
    %v335 = vmul.f32 %v314, %v331
    %v336 = vmul.f32 %v316, %v332
    %337 = vrot.lane.b32.xlu0 %v218, 64
    %v338 = vpop.permute.xlu0 %337
    %339 = vrot.lane.b32.xlu0 %v220, 64
    %v340 = vpop.permute.xlu0 %339
    %341 = vrot.lane.b32.xlu0 %v223, 64
    %v342 = vpop.permute.xlu0 %341
    %343 = vrot.lane.b32.xlu0 %v225, 64
    %v344 = vpop.permute.xlu0 %343
    %v350 = vsel %vm201, %v333, 0
    %v353 = vsel %vm201, %v334, 0
    %v356 = vsel %vm201, %v335, 0
    %v359 = vsel %vm201, %v336, 0
    %361 = vmatpush.msra.mxu0 0.0
    %362 = vmatpush.msra.mxu0 0.0
    %363 = vmatpush.msra.mxu0 0.0
    %364 = vmatpush.msra.mxu0 0.0
    %365 = vmatpush.msra.mxu0 0.0
    %366 = vmatpush.msra.mxu0 0.0
    %367 = vmatpush.msra.mxu0 0.0
    %368 = vmatpush.msra.mxu0 0.0
    %369 = vmatpush.msra.mxu0 0.0
    %370 = vmatpush.msra.mxu0 0.0
    %371 = vmatpush.msra.mxu0 0.0
    %372 = vmatpush.msra.mxu0 0.0
    %373 = vmatpush.msra.mxu0 %v344
    %374 = vmatpush.msra.mxu0 %v342
    %375 = vmatpush.msra.mxu0 %v340
    %376 = vmatpush.msra.mxu0 %v338
    %377 = vmatmul.f32.gmra.mxu0 %v350
    %v378 = vpop.f32.mrf.mxu0
    %v379 = vadd.f32 0.0, %v378
    %380 = vmatmul.f32.gmra.mxu0 %v353
    %v381 = vpop.f32.mrf.mxu0
    %v382 = vadd.f32 0.0, %v381
    %383 = vmatmul.f32.gmra.mxu0 %v356
    %v384 = vpop.f32.mrf.mxu0
    %v385 = vadd.f32 0.0, %v384
    %386 = vmatmul.f32.gmra.mxu0 %v359
    %v387 = vpop.f32.mrf.mxu0
    %v388 = vadd.f32 0.0, %v387
    %389 = vdwg.mxu0
    %v390 = vpack.c.bf16 %v382, %v379
    %v391 = vpack.c.bf16 %v388, %v385
    %v392 = vld [vmem:[#allocation5] sm:$0xf]
    %393 = vrot.lane.b32.xlu0 %v227, 120
    %v394 = vpop.permute.xlu0 %393
    %395 = vrot.lane.b32.xlu0 %v228, 120
    %v396 = vpop.permute.xlu0 %395
    %397 = vrot.lane.b32.xlu0 %v229, 120
    %v398 = vpop.permute.xlu0 %397
    %399 = vrot.lane.b32.xlu0 %v230, 120
    %v400 = vpop.permute.xlu0 %399
    %401 = vrot.lane.b32.xlu0 %v218, 88
    %v402 = vpop.permute.xlu0 %401
    %403 = vrot.lane.b32.xlu0 %v220, 88
    %v404 = vpop.permute.xlu0 %403
    %405 = vrot.lane.b32.xlu0 %v223, 88
    %v406 = vpop.permute.xlu0 %405
    %407 = vrot.lane.b32.xlu0 %v225, 88
    %v408 = vpop.permute.xlu0 %407
    %v409 = vsel %vm243, %v394, 0
    %v411 = vsel %vm243, %v396, 0
    %v413 = vsel %vm243, %v398, 0
    %v415 = vsel %vm243, %v400, 0
    %v417 = vsel %vm243, %v402, 0
    %v419 = vsel %vm243, %v404, 0
    %v421 = vsel %vm243, %v406, 0
    %v423 = vsel %vm243, %v408, 0
    %425 = vmatpush.xpose.msra.mxu0 0.0
    %426 = vmatpush.xpose.msra.mxu0 0.0
    %427 = vmatpush.xpose.msra.mxu0 0.0
    %428 = vmatpush.xpose.msra.mxu0 0.0
    %429 = vmatpush.xpose.msra.mxu0 0.0
    %430 = vmatpush.xpose.msra.mxu0 0.0
    %431 = vmatpush.xpose.msra.mxu0 0.0
    %432 = vmatpush.xpose.msra.mxu0 0.0
    %433 = vmatpush.xpose.msra.mxu0 0.0
    %434 = vmatpush.xpose.msra.mxu0 0.0
    %435 = vmatpush.xpose.msra.mxu0 0.0
    %436 = vmatpush.xpose.msra.mxu0 0.0
    %437 = vmatpush.xpose.msra.mxu0 %v423
    %438 = vmatpush.xpose.msra.mxu0 %v421
    %439 = vmatpush.xpose.msra.mxu0 %v419
    %440 = vmatpush.xpose.msra.mxu0 %v417
    %441 = vmatmul.f32.gmra.mxu0 %v409
    %v442 = vpop.f32.mrf.mxu0
    %v443 = vadd.f32 %v175, %v442
    %444 = vmatmul.f32.gmra.mxu0 %v411
    %v445 = vpop.f32.mrf.mxu0
    %v446 = vadd.f32 %v176, %v445
    %447 = vmatmul.f32.gmra.mxu0 %v413
    %v448 = vpop.f32.mrf.mxu0
    %v449 = vadd.f32 %v177, %v448
    %450 = vmatmul.f32.gmra.mxu0 %v415
    %v451 = vpop.f32.mrf.mxu0
    %v452 = vadd.f32 %v178, %v451
    %453 = vdwg.mxu0
    %v454 = vsel %vm201, %v443, -inf
    %455 = vmax.xlane.f32.xlu0 %v454
    %v456 = vpop.xlane.xlu0 %455
    %v457 = vsel %vm201, %v446, -inf
    %458 = vmax.xlane.f32.xlu0 %v457
    %v459 = vpop.xlane.xlu0 %458
    %v460 = vsel %vm201, %v449, -inf
    %461 = vmax.xlane.f32.xlu0 %v460
    %v462 = vpop.xlane.xlu0 %461
    %v463 = vsel %vm201, %v452, -inf
    %464 = vmax.xlane.f32.xlu0 %v463
    %v465 = vpop.xlane.xlu0 %464
    %v466 = vsub.f32 %v443, %v456
    %v467 = vsub.f32 %v446, %v459
    %v468 = vsub.f32 %v449, %v462
    %v469 = vsub.f32 %v452, %v465
    %v470 = vmul.f32 %v466, 1.442695
    %v471 = vpow.pop %v470
    %v472 = vmul.f32 %v467, 1.442695
    %v473 = vpow.pop %v472
    %v474 = vmul.f32 %v468, 1.442695
    %v475 = vpow.pop %v474
    %v476 = vmul.f32 %v469, 1.442695
    %v477 = vpow.pop %v476
    %v478 = vsel %vm201, %v471, 0.0
    %479 = vadd.xlane.f32.xlu0 %v478
    %v480 = vpop.xlane.xlu0 %479
    %v481 = vsel %vm201, %v473, 0.0
    %482 = vadd.xlane.f32.xlu0 %v481
    %v483 = vpop.xlane.xlu0 %482
    %v484 = vsel %vm201, %v475, 0.0
    %485 = vadd.xlane.f32.xlu0 %v484
    %v486 = vpop.xlane.xlu0 %485
    %v487 = vsel %vm201, %v477, 0.0
    %488 = vadd.xlane.f32.xlu0 %v487
    %v489 = vpop.xlane.xlu0 %488
    %v490 = vrcp.pop %v480
    %v491 = vrcp.pop %v483
    %v492 = vrcp.pop %v486
    %v493 = vrcp.pop %v489
    %v494 = vmul.f32 %v471, %v490
    %v495 = vmul.f32 %v473, %v491
    %v496 = vmul.f32 %v475, %v492
    %v497 = vmul.f32 %v477, %v493
    %498 = vrot.lane.b32.xlu0 %v218, 56
    %v499 = vpop.permute.xlu0 %498
    %500 = vrot.lane.b32.xlu0 %v220, 56
    %v501 = vpop.permute.xlu0 %500
    %502 = vrot.lane.b32.xlu0 %v223, 56
    %v503 = vpop.permute.xlu0 %502
    %504 = vrot.lane.b32.xlu0 %v225, 56
    %v505 = vpop.permute.xlu0 %504
    %v511 = vsel %vm201, %v494, 0
    %v514 = vsel %vm201, %v495, 0
    %v517 = vsel %vm201, %v496, 0
    %v520 = vsel %vm201, %v497, 0
    %522 = vmatpush.msra.mxu0 0.0
    %523 = vmatpush.msra.mxu0 0.0
    %524 = vmatpush.msra.mxu0 0.0
    %525 = vmatpush.msra.mxu0 0.0
    %526 = vmatpush.msra.mxu0 0.0
    %527 = vmatpush.msra.mxu0 0.0
    %528 = vmatpush.msra.mxu0 0.0
    %529 = vmatpush.msra.mxu0 0.0
    %530 = vmatpush.msra.mxu0 0.0
    %531 = vmatpush.msra.mxu0 0.0
    %532 = vmatpush.msra.mxu0 0.0
    %533 = vmatpush.msra.mxu0 0.0
    %534 = vmatpush.msra.mxu0 %v505
    %535 = vmatpush.msra.mxu0 %v503
    %536 = vmatpush.msra.mxu0 %v501
    %537 = vmatpush.msra.mxu0 %v499
    %538 = vmatmul.f32.gmra.mxu0 %v511
    %v539 = vpop.f32.mrf.mxu0
    %v540 = vadd.f32 0.0, %v539
    %541 = vmatmul.f32.gmra.mxu0 %v514
    %v542 = vpop.f32.mrf.mxu0
    %v543 = vadd.f32 0.0, %v542
    %544 = vmatmul.f32.gmra.mxu0 %v517
    %v545 = vpop.f32.mrf.mxu0
    %v546 = vadd.f32 0.0, %v545
    %547 = vmatmul.f32.gmra.mxu0 %v520
    %v548 = vpop.f32.mrf.mxu0
    %v549 = vadd.f32 0.0, %v548
    %550 = vdwg.mxu0
    %v551 = vpack.c.bf16 %v543, %v540
    %v552 = vpack.c.bf16 %v549, %v546
    %s553 = scalar_lea.vmem [#allocation5], 4
    %v554 = vld [vmem:[%s553] sm:$0xf]
    %v556 = vsel %vm243, %v551, 0
    %v559 = vsel %vm243, %v552, 0
    %vm561 = vcmask 1043456
    %v563 = vsel %vm561, %v554, 0
    %565 = vmatpush.bf16.msra.mxu0 0
    %566 = vmatpush.bf16.msra.mxu0 0
    %567 = vmatpush.bf16.msra.mxu0 0
    %568 = vmatpush.bf16.msra.mxu0 0
    %569 = vmatpush.bf16.msra.mxu0 0
    %570 = vmatpush.bf16.msra.mxu0 0
    %571 = vmatpush.bf16.msra.mxu0 0
    %572 = vmatpush.bf16.msra.mxu0 %v563
    %573 = vmatmul.bf16.gmra.mxu0 %v556
    %v574 = vpop.f32.mrf.mxu0
    %v575 = vadd.f32 0.0, %v574
    %v576 = vpop.f32.mrf.mxu0
    %v577 = vadd.f32 0.0, %v576
    %578 = vmatmul.bf16.gmra.mxu0 %v559
    %v579 = vpop.f32.mrf.mxu0
    %v580 = vadd.f32 0.0, %v579
    %v581 = vpop.f32.mrf.mxu0
    %v582 = vadd.f32 0.0, %v581
    %583 = vdwg.mxu0
    %v585 = vsel %vm243, %v390, 0
    %v588 = vsel %vm243, %v391, 0
    %v591 = vsel %vm561, %v392, 0
    %593 = vmatpush.bf16.msra.mxu0 0
    %594 = vmatpush.bf16.msra.mxu0 0
    %595 = vmatpush.bf16.msra.mxu0 0
    %596 = vmatpush.bf16.msra.mxu0 0
    %597 = vmatpush.bf16.msra.mxu0 0
    %598 = vmatpush.bf16.msra.mxu0 0
    %599 = vmatpush.bf16.msra.mxu0 0
    %600 = vmatpush.bf16.msra.mxu0 %v591
    %601 = vmatmul.bf16.gmra.mxu0 %v585
    %v602 = vpop.f32.mrf.mxu0
    %v603 = vadd.f32 %v575, %v602
    %v604 = vpop.f32.mrf.mxu0
    %v605 = vadd.f32 %v577, %v604
    %606 = vmatmul.bf16.gmra.mxu0 %v588
    %v607 = vpop.f32.mrf.mxu0
    %v608 = vadd.f32 %v580, %v607
    %v609 = vpop.f32.mrf.mxu0
    %v610 = vadd.f32 %v582, %v609
    %611 = vdwg.mxu0
    %612 = vrot.lane.b32.xlu0 %v227, 112
    %v613 = vpop.permute.xlu0 %612
    %614 = vrot.lane.b32.xlu0 %v228, 112
    %v615 = vpop.permute.xlu0 %614
    %616 = vrot.lane.b32.xlu0 %v229, 112
    %v617 = vpop.permute.xlu0 %616
    %618 = vrot.lane.b32.xlu0 %v230, 112
    %v619 = vpop.permute.xlu0 %618
    %620 = vrot.lane.b32.xlu0 %v218, 80
    %v621 = vpop.permute.xlu0 %620
    %622 = vrot.lane.b32.xlu0 %v220, 80
    %v623 = vpop.permute.xlu0 %622
    %624 = vrot.lane.b32.xlu0 %v223, 80
    %v625 = vpop.permute.xlu0 %624
    %626 = vrot.lane.b32.xlu0 %v225, 80
    %v627 = vpop.permute.xlu0 %626
    %v628 = vsel %vm243, %v613, 0
    %v630 = vsel %vm243, %v615, 0
    %v632 = vsel %vm243, %v617, 0
    %v634 = vsel %vm243, %v619, 0
    %v636 = vsel %vm243, %v621, 0
    %v638 = vsel %vm243, %v623, 0
    %v640 = vsel %vm243, %v625, 0
    %v642 = vsel %vm243, %v627, 0
    %644 = vmatpush.xpose.msra.mxu0 0.0
    %645 = vmatpush.xpose.msra.mxu0 0.0
    %646 = vmatpush.xpose.msra.mxu0 0.0
    %647 = vmatpush.xpose.msra.mxu0 0.0
    %648 = vmatpush.xpose.msra.mxu0 0.0
    %649 = vmatpush.xpose.msra.mxu0 0.0
    %650 = vmatpush.xpose.msra.mxu0 0.0
    %651 = vmatpush.xpose.msra.mxu0 0.0
    %652 = vmatpush.xpose.msra.mxu0 0.0
    %653 = vmatpush.xpose.msra.mxu0 0.0
    %654 = vmatpush.xpose.msra.mxu0 0.0
    %655 = vmatpush.xpose.msra.mxu0 0.0
    %656 = vmatpush.xpose.msra.mxu0 %v642
    %657 = vmatpush.xpose.msra.mxu0 %v640
    %658 = vmatpush.xpose.msra.mxu0 %v638
    %659 = vmatpush.xpose.msra.mxu0 %v636
    %660 = vmatmul.f32.gmra.mxu0 %v628
    %v661 = vpop.f32.mrf.mxu0
    %v662 = vadd.f32 %v175, %v661
    %663 = vmatmul.f32.gmra.mxu0 %v630
    %v664 = vpop.f32.mrf.mxu0
    %v665 = vadd.f32 %v176, %v664
    %666 = vmatmul.f32.gmra.mxu0 %v632
    %v667 = vpop.f32.mrf.mxu0
    %v668 = vadd.f32 %v177, %v667
    %669 = vmatmul.f32.gmra.mxu0 %v634
    %v670 = vpop.f32.mrf.mxu0
    %v671 = vadd.f32 %v178, %v670
    %672 = vdwg.mxu0
    %v673 = vsel %vm201, %v662, -inf
    %674 = vmax.xlane.f32.xlu0 %v673
    %v675 = vpop.xlane.xlu0 %674
    %v676 = vsel %vm201, %v665, -inf
    %677 = vmax.xlane.f32.xlu0 %v676
    %v678 = vpop.xlane.xlu0 %677
    %v679 = vsel %vm201, %v668, -inf
    %680 = vmax.xlane.f32.xlu0 %v679
    %v681 = vpop.xlane.xlu0 %680
    %v682 = vsel %vm201, %v671, -inf
    %683 = vmax.xlane.f32.xlu0 %v682
    %v684 = vpop.xlane.xlu0 %683
    %v685 = vsub.f32 %v662, %v675
    %v686 = vsub.f32 %v665, %v678
    %v687 = vsub.f32 %v668, %v681
    %v688 = vsub.f32 %v671, %v684
    %v689 = vmul.f32 %v685, 1.442695
    %v690 = vpow.pop %v689
    %v691 = vmul.f32 %v686, 1.442695
    %v692 = vpow.pop %v691
    %v693 = vmul.f32 %v687, 1.442695
    %v694 = vpow.pop %v693
    %v695 = vmul.f32 %v688, 1.442695
    %v696 = vpow.pop %v695
    %v697 = vsel %vm201, %v690, 0.0
    %698 = vadd.xlane.f32.xlu0 %v697
    %v699 = vpop.xlane.xlu0 %698
    %v700 = vsel %vm201, %v692, 0.0
    %701 = vadd.xlane.f32.xlu0 %v700
    %v702 = vpop.xlane.xlu0 %701
    %v703 = vsel %vm201, %v694, 0.0
    %704 = vadd.xlane.f32.xlu0 %v703
    %v705 = vpop.xlane.xlu0 %704
    %v706 = vsel %vm201, %v696, 0.0
    %707 = vadd.xlane.f32.xlu0 %v706
    %v708 = vpop.xlane.xlu0 %707
    %v709 = vrcp.pop %v699
    %v710 = vrcp.pop %v702
    %v711 = vrcp.pop %v705
    %v712 = vrcp.pop %v708
    %v713 = vmul.f32 %v690, %v709
    %v714 = vmul.f32 %v692, %v710
    %v715 = vmul.f32 %v694, %v711
    %v716 = vmul.f32 %v696, %v712
    %717 = vrot.lane.b32.xlu0 %v218, 48
    %v718 = vpop.permute.xlu0 %717
    %719 = vrot.lane.b32.xlu0 %v220, 48
    %v720 = vpop.permute.xlu0 %719
    %721 = vrot.lane.b32.xlu0 %v223, 48
    %v722 = vpop.permute.xlu0 %721
    %723 = vrot.lane.b32.xlu0 %v225, 48
    %v724 = vpop.permute.xlu0 %723
    %v730 = vsel %vm201, %v713, 0
    %v733 = vsel %vm201, %v714, 0
    %v736 = vsel %vm201, %v715, 0
    %v739 = vsel %vm201, %v716, 0
    %741 = vmatpush.msra.mxu0 0.0
    %742 = vmatpush.msra.mxu0 0.0
    %743 = vmatpush.msra.mxu0 0.0
    %744 = vmatpush.msra.mxu0 0.0
    %745 = vmatpush.msra.mxu0 0.0
    %746 = vmatpush.msra.mxu0 0.0
    %747 = vmatpush.msra.mxu0 0.0
    %748 = vmatpush.msra.mxu0 0.0
    %749 = vmatpush.msra.mxu0 0.0
    %750 = vmatpush.msra.mxu0 0.0
    %751 = vmatpush.msra.mxu0 0.0
    %752 = vmatpush.msra.mxu0 0.0
    %753 = vmatpush.msra.mxu0 %v724
    %754 = vmatpush.msra.mxu0 %v722
    %755 = vmatpush.msra.mxu0 %v720
    %756 = vmatpush.msra.mxu0 %v718
    %757 = vmatmul.f32.gmra.mxu0 %v730
    %v758 = vpop.f32.mrf.mxu0
    %v759 = vadd.f32 0.0, %v758
    %760 = vmatmul.f32.gmra.mxu0 %v733
    %v761 = vpop.f32.mrf.mxu0
    %v762 = vadd.f32 0.0, %v761
    %763 = vmatmul.f32.gmra.mxu0 %v736
    %v764 = vpop.f32.mrf.mxu0
    %v765 = vadd.f32 0.0, %v764
    %766 = vmatmul.f32.gmra.mxu0 %v739
    %v767 = vpop.f32.mrf.mxu0
    %v768 = vadd.f32 0.0, %v767
    %769 = vdwg.mxu0
    %v770 = vpack.c.bf16 %v762, %v759
    %v771 = vpack.c.bf16 %v768, %v765
    %s772 = scalar_lea.vmem [#allocation5], 8
    %v773 = vld [vmem:[%s772] sm:$0xf]
    %v775 = vsel %vm243, %v770, 0
    %v778 = vsel %vm243, %v771, 0
    %v781 = vsel %vm561, %v773, 0
    %783 = vmatpush.bf16.msra.mxu0 0
    %784 = vmatpush.bf16.msra.mxu0 0
    %785 = vmatpush.bf16.msra.mxu0 0
    %786 = vmatpush.bf16.msra.mxu0 0
    %787 = vmatpush.bf16.msra.mxu0 0
    %788 = vmatpush.bf16.msra.mxu0 0
    %789 = vmatpush.bf16.msra.mxu0 0
    %790 = vmatpush.bf16.msra.mxu0 %v781
    %791 = vmatmul.bf16.gmra.mxu0 %v775
    %v792 = vpop.f32.mrf.mxu0
    %v793 = vadd.f32 0.0, %v792
    %v794 = vpop.f32.mrf.mxu0
    %v795 = vadd.f32 0.0, %v794
    %796 = vmatmul.bf16.gmra.mxu0 %v778
    %v797 = vpop.f32.mrf.mxu0
    %v798 = vadd.f32 0.0, %v797
    %v799 = vpop.f32.mrf.mxu0
    %v800 = vadd.f32 0.0, %v799
    %801 = vdwg.mxu0
    %v802 = vadd.f32 %v603, %v793
    %v803 = vadd.f32 %v605, %v795
    %v804 = vadd.f32 %v608, %v798
    %v805 = vadd.f32 %v610, %v800
    %806 = vrot.lane.b32.xlu0 %v227, 104
    %v807 = vpop.permute.xlu0 %806
    %808 = vrot.lane.b32.xlu0 %v228, 104
    %v809 = vpop.permute.xlu0 %808
    %810 = vrot.lane.b32.xlu0 %v229, 104
    %v811 = vpop.permute.xlu0 %810
    %812 = vrot.lane.b32.xlu0 %v230, 104
    %v813 = vpop.permute.xlu0 %812
    %814 = vrot.lane.b32.xlu0 %v218, 72
    %v815 = vpop.permute.xlu0 %814
    %816 = vrot.lane.b32.xlu0 %v220, 72
    %v817 = vpop.permute.xlu0 %816
    %818 = vrot.lane.b32.xlu0 %v223, 72
    %v819 = vpop.permute.xlu0 %818
    %820 = vrot.lane.b32.xlu0 %v225, 72
    %v821 = vpop.permute.xlu0 %820
    %v822 = vsel %vm243, %v807, 0
    %v824 = vsel %vm243, %v809, 0
    %v826 = vsel %vm243, %v811, 0
    %v828 = vsel %vm243, %v813, 0
    %v830 = vsel %vm243, %v815, 0
    %v832 = vsel %vm243, %v817, 0
    %v834 = vsel %vm243, %v819, 0
    %v836 = vsel %vm243, %v821, 0
    %838 = vmatpush.xpose.msra.mxu0 0.0
    %839 = vmatpush.xpose.msra.mxu0 0.0
    %840 = vmatpush.xpose.msra.mxu0 0.0
    %841 = vmatpush.xpose.msra.mxu0 0.0
    %842 = vmatpush.xpose.msra.mxu0 0.0
    %843 = vmatpush.xpose.msra.mxu0 0.0
    %844 = vmatpush.xpose.msra.mxu0 0.0
    %845 = vmatpush.xpose.msra.mxu0 0.0
    %846 = vmatpush.xpose.msra.mxu0 0.0
    %847 = vmatpush.xpose.msra.mxu0 0.0
    %848 = vmatpush.xpose.msra.mxu0 0.0
    %849 = vmatpush.xpose.msra.mxu0 0.0
    %850 = vmatpush.xpose.msra.mxu0 %v836
    %851 = vmatpush.xpose.msra.mxu0 %v834
    %852 = vmatpush.xpose.msra.mxu0 %v832
    %853 = vmatpush.xpose.msra.mxu0 %v830
    %854 = vmatmul.f32.gmra.mxu0 %v822
    %v855 = vpop.f32.mrf.mxu0
    %v856 = vadd.f32 %v175, %v855
    %857 = vmatmul.f32.gmra.mxu0 %v824
    %v858 = vpop.f32.mrf.mxu0
    %v859 = vadd.f32 %v176, %v858
    %860 = vmatmul.f32.gmra.mxu0 %v826
    %v861 = vpop.f32.mrf.mxu0
    %v862 = vadd.f32 %v177, %v861
    %863 = vmatmul.f32.gmra.mxu0 %v828
    %v864 = vpop.f32.mrf.mxu0
    %v865 = vadd.f32 %v178, %v864
    %866 = vdwg.mxu0
    %v867 = vsel %vm201, %v856, -inf
    %868 = vmax.xlane.f32.xlu0 %v867
    %v869 = vpop.xlane.xlu0 %868
    %v870 = vsel %vm201, %v859, -inf
    %871 = vmax.xlane.f32.xlu0 %v870
    %v872 = vpop.xlane.xlu0 %871
    %v873 = vsel %vm201, %v862, -inf
    %874 = vmax.xlane.f32.xlu0 %v873
    %v875 = vpop.xlane.xlu0 %874
    %v876 = vsel %vm201, %v865, -inf
    %877 = vmax.xlane.f32.xlu0 %v876
    %v878 = vpop.xlane.xlu0 %877
    %v879 = vsub.f32 %v856, %v869
    %v880 = vsub.f32 %v859, %v872
    %v881 = vsub.f32 %v862, %v875
    %v882 = vsub.f32 %v865, %v878
    %v883 = vmul.f32 %v879, 1.442695
    %v884 = vpow.pop %v883
    %v885 = vmul.f32 %v880, 1.442695
    %v886 = vpow.pop %v885
    %v887 = vmul.f32 %v881, 1.442695
    %v888 = vpow.pop %v887
    %v889 = vmul.f32 %v882, 1.442695
    %v890 = vpow.pop %v889
    %v891 = vsel %vm201, %v884, 0.0
    %892 = vadd.xlane.f32.xlu0 %v891
    %v893 = vpop.xlane.xlu0 %892
    %v894 = vsel %vm201, %v886, 0.0
    %895 = vadd.xlane.f32.xlu0 %v894
    %v896 = vpop.xlane.xlu0 %895
    %v897 = vsel %vm201, %v888, 0.0
    %898 = vadd.xlane.f32.xlu0 %v897
    %v899 = vpop.xlane.xlu0 %898
    %v900 = vsel %vm201, %v890, 0.0
    %901 = vadd.xlane.f32.xlu0 %v900
    %v902 = vpop.xlane.xlu0 %901
    %v903 = vrcp.pop %v893
    %v904 = vrcp.pop %v896
    %v905 = vrcp.pop %v899
    %v906 = vrcp.pop %v902
    %v907 = vmul.f32 %v884, %v903
    %v908 = vmul.f32 %v886, %v904
    %v909 = vmul.f32 %v888, %v905
    %v910 = vmul.f32 %v890, %v906
    %911 = vrot.lane.b32.xlu0 %v218, 40
    %v912 = vpop.permute.xlu0 %911
    %913 = vrot.lane.b32.xlu0 %v220, 40
    %v914 = vpop.permute.xlu0 %913
    %915 = vrot.lane.b32.xlu0 %v223, 40
    %v916 = vpop.permute.xlu0 %915
    %917 = vrot.lane.b32.xlu0 %v225, 40
    %v918 = vpop.permute.xlu0 %917
    %v924 = vsel %vm201, %v907, 0
    %v927 = vsel %vm201, %v908, 0
    %v930 = vsel %vm201, %v909, 0
    %v933 = vsel %vm201, %v910, 0
    %935 = vmatpush.msra.mxu0 0.0
    %936 = vmatpush.msra.mxu0 0.0
    %937 = vmatpush.msra.mxu0 0.0
    %938 = vmatpush.msra.mxu0 0.0
    %939 = vmatpush.msra.mxu0 0.0
    %940 = vmatpush.msra.mxu0 0.0
    %941 = vmatpush.msra.mxu0 0.0
    %942 = vmatpush.msra.mxu0 0.0
    %943 = vmatpush.msra.mxu0 0.0
    %944 = vmatpush.msra.mxu0 0.0
    %945 = vmatpush.msra.mxu0 0.0
    %946 = vmatpush.msra.mxu0 0.0
    %947 = vmatpush.msra.mxu0 %v918
    %948 = vmatpush.msra.mxu0 %v916
    %949 = vmatpush.msra.mxu0 %v914
    %950 = vmatpush.msra.mxu0 %v912
    %951 = vmatmul.f32.gmra.mxu0 %v924
    %v952 = vpop.f32.mrf.mxu0
    %v953 = vadd.f32 0.0, %v952
    %954 = vmatmul.f32.gmra.mxu0 %v927
    %v955 = vpop.f32.mrf.mxu0
    %v956 = vadd.f32 0.0, %v955
    %957 = vmatmul.f32.gmra.mxu0 %v930
    %v958 = vpop.f32.mrf.mxu0
    %v959 = vadd.f32 0.0, %v958
    %960 = vmatmul.f32.gmra.mxu0 %v933
    %v961 = vpop.f32.mrf.mxu0
    %v962 = vadd.f32 0.0, %v961
    %963 = vdwg.mxu0
    %v964 = vpack.c.bf16 %v956, %v953
    %v965 = vpack.c.bf16 %v962, %v959
    %s966 = scalar_lea.vmem [#allocation5], 12
    %v967 = vld [vmem:[%s966] sm:$0xf]
    %v969 = vsel %vm243, %v964, 0
    %v972 = vsel %vm243, %v965, 0
    %v975 = vsel %vm561, %v967, 0
    %977 = vmatpush.bf16.msra.mxu0 0
    %978 = vmatpush.bf16.msra.mxu0 0
    %979 = vmatpush.bf16.msra.mxu0 0
    %980 = vmatpush.bf16.msra.mxu0 0
    %981 = vmatpush.bf16.msra.mxu0 0
    %982 = vmatpush.bf16.msra.mxu0 0
    %983 = vmatpush.bf16.msra.mxu0 0
    %984 = vmatpush.bf16.msra.mxu0 %v975
    %985 = vmatmul.bf16.gmra.mxu0 %v969
    %v986 = vpop.f32.mrf.mxu0
    %v987 = vadd.f32 0.0, %v986
    %v988 = vpop.f32.mrf.mxu0
    %v989 = vadd.f32 0.0, %v988
    %990 = vmatmul.bf16.gmra.mxu0 %v972
    %v991 = vpop.f32.mrf.mxu0
    %v992 = vadd.f32 0.0, %v991
    %v993 = vpop.f32.mrf.mxu0
    %v994 = vadd.f32 0.0, %v993
    %995 = vdwg.mxu0
    %v996 = vadd.f32 %v802, %v987
    %v997 = vadd.f32 %v803, %v989
    %v998 = vadd.f32 %v804, %v992
    %v999 = vadd.f32 %v805, %v994
    %v1000 = vld [vmem:[%s6] sm:$0x1]
    %v1002 = vperm.slane %v1000, 0
    %v1004 = vadd.f32 %v996, %v1002
    %v1005 = vadd.f32 %v997, %v1002
    %v1006 = vadd.f32 %v998, %v1002
    %v1007 = vadd.f32 %v999, %v1002
    %v1008 = vadd.f32 %v171, %v1004
    %v1009 = vadd.f32 %v172, %v1005
    %v1010 = vadd.f32 %v173, %v1006
    %v1011 = vadd.f32 %v174, %v1007
    %v1012 = vld [vmem:[#allocation7] sm:$0x1]
    %v1013 = vld [vmem:[%s8] sm:$0x1]
    %v1014 = vsel %vm201, %v1008, 0.0
    %1015 = vadd.xlane.f32.xlu0 %v1014
    %v1016 = vpop.xlane.xlu0 %1015
    %v1017 = vsel %vm201, %v1009, 0.0
    %1018 = vadd.xlane.f32.xlu0 %v1017
    %v1019 = vpop.xlane.xlu0 %1018
    %v1020 = vsel %vm201, %v1010, 0.0
    %1021 = vadd.xlane.f32.xlu0 %v1020
    %v1022 = vpop.xlane.xlu0 %1021
    %v1023 = vsel %vm201, %v1011, 0.0
    %1024 = vadd.xlane.f32.xlu0 %v1023
    %v1025 = vpop.xlane.xlu0 %1024
    %v1026 = vrcp.pop 32.0
    %v1027 = vmul.f32 32.0, %v1026
    %v1028 = vsub.f32 1.0, %v1027
    %v1029 = vmul.f32 %v1026, %v1028
    %v1030 = vadd.f32 %v1026, %v1029
    %vm1031 = vweird.f32 %v1026
    %v1032 = vsel %vm1031, %v1026, %v1030
    %v1033 = vmul.f32 %v1016, %v1032
    %v1034 = vmul.f32 %v1019, %v1032
    %v1035 = vmul.f32 %v1022, %v1032
    %v1036 = vmul.f32 %v1025, %v1032
    %v1037 = vsub.f32 %v1008, %v1033
    %v1038 = vsub.f32 %v1009, %v1034
    %v1039 = vsub.f32 %v1010, %v1035
    %v1040 = vsub.f32 %v1011, %v1036
    %v1041 = vmul.f32 %v1037, %v1037
    %v1042 = vmul.f32 %v1038, %v1038
    %v1043 = vmul.f32 %v1039, %v1039
    %v1044 = vmul.f32 %v1040, %v1040
    %v1045 = vsel %vm201, %v1041, 0.0
    %1046 = vadd.xlane.f32.xlu0 %v1045
    %v1047 = vpop.xlane.xlu0 %1046
    %v1048 = vsel %vm201, %v1042, 0.0
    %1049 = vadd.xlane.f32.xlu0 %v1048
    %v1050 = vpop.xlane.xlu0 %1049
    %v1051 = vsel %vm201, %v1043, 0.0
    %1052 = vadd.xlane.f32.xlu0 %v1051
    %v1053 = vpop.xlane.xlu0 %1052
    %v1054 = vsel %vm201, %v1044, 0.0
    %1055 = vadd.xlane.f32.xlu0 %v1054
    %v1056 = vpop.xlane.xlu0 %1055
    %v1057 = vmul.f32 %v1047, %v1032
    %v1058 = vmul.f32 %v1050, %v1032
    %v1059 = vmul.f32 %v1053, %v1032
    %v1060 = vmul.f32 %v1056, %v1032
    %v1061 = vadd.f32 %v1057, 1e-05
    %v1062 = vadd.f32 %v1058, 1e-05
    %v1063 = vadd.f32 %v1059, 1e-05
    %v1064 = vadd.f32 %v1060, 1e-05
    %v1065 = vrsqrt.pop %v1061
    %v1066 = vmul.f32 %v1065, %v1061
    %v1067 = vmul.f32 %v1066, %v1065
    %v1068 = vmul.f32 0.5, %v1067
    %v1069 = vsub.f32 1.5, %v1068
    %v1070 = vmul.f32 %v1065, %v1069
    %vm1071 = vweird.f32 %v1061
    %vm1072 = vweird.f32 %v1065
    %vm1073 = vmor %vm1071, %vm1072
    %v1074 = vsel %vm1073, %v1065, %v1070
    %v1075 = vrsqrt.pop %v1062
    %v1076 = vmul.f32 %v1075, %v1062
    %v1077 = vmul.f32 %v1076, %v1075
    %v1078 = vmul.f32 0.5, %v1077
    %v1079 = vsub.f32 1.5, %v1078
    %v1080 = vmul.f32 %v1075, %v1079
    %vm1081 = vweird.f32 %v1062
    %vm1082 = vweird.f32 %v1075
    %vm1083 = vmor %vm1081, %vm1082
    %v1084 = vsel %vm1083, %v1075, %v1080
    %v1085 = vrsqrt.pop %v1063
    %v1086 = vmul.f32 %v1085, %v1063
    %v1087 = vmul.f32 %v1086, %v1085
    %v1088 = vmul.f32 0.5, %v1087
    %v1089 = vsub.f32 1.5, %v1088
    %v1090 = vmul.f32 %v1085, %v1089
    %vm1091 = vweird.f32 %v1063
    %vm1092 = vweird.f32 %v1085
    %vm1093 = vmor %vm1091, %vm1092
    %v1094 = vsel %vm1093, %v1085, %v1090
    %v1095 = vrsqrt.pop %v1064
    %v1096 = vmul.f32 %v1095, %v1064
    %v1097 = vmul.f32 %v1096, %v1095
    %v1098 = vmul.f32 0.5, %v1097
    %v1099 = vsub.f32 1.5, %v1098
    %v1100 = vmul.f32 %v1095, %v1099
    %vm1101 = vweird.f32 %v1064
    %vm1102 = vweird.f32 %v1095
    %vm1103 = vmor %vm1101, %vm1102
    %v1104 = vsel %vm1103, %v1095, %v1100
    %v1105 = vmul.f32 %v1037, %v1074
    %v1106 = vmul.f32 %v1038, %v1084
    %v1107 = vmul.f32 %v1039, %v1094
    %v1108 = vmul.f32 %v1040, %v1104
    %v1110 = vperm.slane %v1012, 0
    %v1112 = vmul.f32 %v1105, %v1110
    %v1113 = vmul.f32 %v1106, %v1110
    %v1114 = vmul.f32 %v1107, %v1110
    %v1115 = vmul.f32 %v1108, %v1110
    %v1117 = vperm.slane %v1013, 0
    %v1119 = vadd.f32 %v1112, %v1117
    %v1120 = vadd.f32 %v1113, %v1117
    %v1121 = vadd.f32 %v1114, %v1117
    %v1122 = vadd.f32 %v1115, %v1117
    %v1123 = vpack.c.bf16 %v1120, %v1119
    %v1124 = vpack.c.bf16 %v1122, %v1121
    %v1125 = vld [vmem:[#allocation8] sm:$0xf]
    %v1126 = vld [vmem:[#allocation8 + $0x4] sm:$0xf]
    %v1127 = vld [vmem:[#allocation8 + $0x8] sm:$0xf]
    %v1128 = vld [vmem:[#allocation8 + $0xc] sm:$0xf]
    %v1129 = vld [vmem:[%s10] sm:$0x1]
    %v1131 = vperm.slane %v1129, 0
    %v1137 = vunpack.c.l.b16 %v1125
    %v1138 = vunpack.c.l.b16 %v1126
    %v1139 = vunpack.c.l.b16 %v1127
    %v1140 = vunpack.c.l.b16 %v1128
    %v1141 = vpack.c.b16 %v1138, %v1137
    %v1142 = vpack.c.b16 %v1140, %v1139
    %v1146 = vsel %vm201, %v1123, 0
    %v1149 = vsel %vm201, %v1124, 0
    %1151 = vmatpush.bf16.msra.mxu0 0
    %1152 = vmatpush.bf16.msra.mxu0 0
    %1153 = vmatpush.bf16.msra.mxu0 0
    %1154 = vmatpush.bf16.msra.mxu0 0
    %1155 = vmatpush.bf16.msra.mxu0 0
    %1156 = vmatpush.bf16.msra.mxu0 0
    %1157 = vmatpush.bf16.msra.mxu0 %v1142
    %1158 = vmatpush.bf16.msra.mxu0 %v1141
    %1159 = vmatmul.bf16.gmra.mxu0 %v1146
    %v1160 = vpop.f32.mrf.mxu0
    %v1161 = vadd.f32 %v1131, %v1160
    %v1162 = vpop.f32.mrf.mxu0
    %v1163 = vadd.f32 %v1131, %v1162
    %1164 = vmatmul.bf16.gmra.mxu0 %v1149
    %v1165 = vpop.f32.mrf.mxu0
    %v1166 = vadd.f32 %v1131, %v1165
    %v1167 = vpop.f32.mrf.mxu0
    %v1168 = vadd.f32 %v1131, %v1167
    %1169 = vdwg.mxu0
    %v1170 = vmax.f32 %v1161, 0.0
    %v1171 = vmax.f32 %v1163, 0.0
    %v1172 = vmax.f32 %v1166, 0.0
    %v1173 = vmax.f32 %v1168, 0.0
    %v1174 = vpack.c.bf16 %v1171, %v1170
    %v1175 = vpack.c.bf16 %v1173, %v1172
    %v1176 = vld [vmem:[%s11] sm:$0xf]
    %v1177 = vld [vmem:[%s11 + $0x4] sm:$0xf]
    %v1178 = vld [vmem:[%s11 + $0x8] sm:$0xf]
    %v1179 = vld [vmem:[%s11 + $0xc] sm:$0xf]
    %v1180 = vld [vmem:[%s11 + $0x10] sm:$0xf]
    %v1181 = vld [vmem:[%s11 + $0x14] sm:$0xf]
    %v1182 = vld [vmem:[%s11 + $0x18] sm:$0xf]
    %v1183 = vld [vmem:[%s11 + $0x1c] sm:$0xf]
    %v1184 = vld [vmem:[%s12] sm:$0x1]
    %v1186 = vperm.slane %v1184, 0
    %v1196 = vunpack.c.l.b16 %v1176
    %v1197 = vunpack.c.l.b16 %v1177
    %v1198 = vunpack.c.l.b16 %v1178
    %v1199 = vunpack.c.l.b16 %v1179
    %v1200 = vunpack.c.l.b16 %v1180
    %v1201 = vunpack.c.l.b16 %v1181
    %v1202 = vunpack.c.l.b16 %v1182
    %v1203 = vunpack.c.l.b16 %v1183
    %v1204 = vpack.c.b16 %v1197, %v1196
    %v1205 = vpack.c.b16 %v1199, %v1198
    %v1206 = vpack.c.b16 %v1201, %v1200
    %v1207 = vpack.c.b16 %v1203, %v1202
    %vm1212 = vcmask 523264
    %v1214 = vsel %vm1212, %v1174, 0
    %v1217 = vsel %vm1212, %v1175, 0
    %1219 = vmatpush.bf16.msra.mxu0 0
    %1220 = vmatpush.bf16.msra.mxu0 0
    %1221 = vmatpush.bf16.msra.mxu0 0
    %1222 = vmatpush.bf16.msra.mxu0 0
    %1223 = vmatpush.bf16.msra.mxu0 %v1207
    %1224 = vmatpush.bf16.msra.mxu0 %v1206
    %1225 = vmatpush.bf16.msra.mxu0 %v1205
    %1226 = vmatpush.bf16.msra.mxu0 %v1204
    %1227 = vmatmul.bf16.gmra.mxu0 %v1214
    %v1228 = vpop.f32.mrf.mxu0
    %v1229 = vadd.f32 %v1186, %v1228
    %v1230 = vpop.f32.mrf.mxu0
    %v1231 = vadd.f32 %v1186, %v1230
    %1232 = vmatmul.bf16.gmra.mxu0 %v1217
    %v1233 = vpop.f32.mrf.mxu0
    %v1234 = vadd.f32 %v1186, %v1233
    %v1235 = vpop.f32.mrf.mxu0
    %v1236 = vadd.f32 %v1186, %v1235
    %1237 = vdwg.mxu0
    %v1238 = vadd.f32 %v1119, %v1229
    %v1239 = vadd.f32 %v1120, %v1231
    %v1240 = vadd.f32 %v1121, %v1234
    %v1241 = vadd.f32 %v1122, %v1236
    %v1242 = vld [vmem:[#allocation10] sm:$0x1]
    %v1243 = vld [vmem:[%s14] sm:$0x1]
    %v1244 = vsel %vm201, %v1238, 0.0
    %1245 = vadd.xlane.f32.xlu0 %v1244
    %v1246 = vpop.xlane.xlu0 %1245
    %v1247 = vsel %vm201, %v1239, 0.0
    %1248 = vadd.xlane.f32.xlu0 %v1247
    %v1249 = vpop.xlane.xlu0 %1248
    %v1250 = vsel %vm201, %v1240, 0.0
    %1251 = vadd.xlane.f32.xlu0 %v1250
    %v1252 = vpop.xlane.xlu0 %1251
    %v1253 = vsel %vm201, %v1241, 0.0
    %1254 = vadd.xlane.f32.xlu0 %v1253
    %v1255 = vpop.xlane.xlu0 %1254
    %v1256 = vmul.f32 %v1246, %v1032
    %v1257 = vmul.f32 %v1249, %v1032
    %v1258 = vmul.f32 %v1252, %v1032
    %v1259 = vmul.f32 %v1255, %v1032
    %v1260 = vsub.f32 %v1238, %v1256
    %v1261 = vsub.f32 %v1239, %v1257
    %v1262 = vsub.f32 %v1240, %v1258
    %v1263 = vsub.f32 %v1241, %v1259
    %v1264 = vmul.f32 %v1260, %v1260
    %v1265 = vmul.f32 %v1261, %v1261
    %v1266 = vmul.f32 %v1262, %v1262
    %v1267 = vmul.f32 %v1263, %v1263
    %v1268 = vsel %vm201, %v1264, 0.0
    %1269 = vadd.xlane.f32.xlu0 %v1268
    %v1270 = vpop.xlane.xlu0 %1269
    %v1271 = vsel %vm201, %v1265, 0.0
    %1272 = vadd.xlane.f32.xlu0 %v1271
    %v1273 = vpop.xlane.xlu0 %1272
    %v1274 = vsel %vm201, %v1266, 0.0
    %1275 = vadd.xlane.f32.xlu0 %v1274
    %v1276 = vpop.xlane.xlu0 %1275
    %v1277 = vsel %vm201, %v1267, 0.0
    %1278 = vadd.xlane.f32.xlu0 %v1277
    %v1279 = vpop.xlane.xlu0 %1278
    %v1280 = vmul.f32 %v1270, %v1032
    %v1281 = vmul.f32 %v1273, %v1032
    %v1282 = vmul.f32 %v1276, %v1032
    %v1283 = vmul.f32 %v1279, %v1032
    %v1284 = vadd.f32 %v1280, 1e-05
    %v1285 = vadd.f32 %v1281, 1e-05
    %v1286 = vadd.f32 %v1282, 1e-05
    %v1287 = vadd.f32 %v1283, 1e-05
    %v1288 = vrsqrt.pop %v1284
    %v1289 = vmul.f32 %v1288, %v1284
    %v1290 = vmul.f32 %v1289, %v1288
    %v1291 = vmul.f32 0.5, %v1290
    %v1292 = vsub.f32 1.5, %v1291
    %v1293 = vmul.f32 %v1288, %v1292
    %vm1294 = vweird.f32 %v1284
    %vm1295 = vweird.f32 %v1288
    %vm1296 = vmor %vm1294, %vm1295
    %v1297 = vsel %vm1296, %v1288, %v1293
    %v1298 = vrsqrt.pop %v1285
    %v1299 = vmul.f32 %v1298, %v1285
    %v1300 = vmul.f32 %v1299, %v1298
    %v1301 = vmul.f32 0.5, %v1300
    %v1302 = vsub.f32 1.5, %v1301
    %v1303 = vmul.f32 %v1298, %v1302
    %vm1304 = vweird.f32 %v1285
    %vm1305 = vweird.f32 %v1298
    %vm1306 = vmor %vm1304, %vm1305
    %v1307 = vsel %vm1306, %v1298, %v1303
    %v1308 = vrsqrt.pop %v1286
    %v1309 = vmul.f32 %v1308, %v1286
    %v1310 = vmul.f32 %v1309, %v1308
    %v1311 = vmul.f32 0.5, %v1310
    %v1312 = vsub.f32 1.5, %v1311
    %v1313 = vmul.f32 %v1308, %v1312
    %vm1314 = vweird.f32 %v1286
    %vm1315 = vweird.f32 %v1308
    %vm1316 = vmor %vm1314, %vm1315
    %v1317 = vsel %vm1316, %v1308, %v1313
    %v1318 = vrsqrt.pop %v1287
    %v1319 = vmul.f32 %v1318, %v1287
    %v1320 = vmul.f32 %v1319, %v1318
    %v1321 = vmul.f32 0.5, %v1320
    %v1322 = vsub.f32 1.5, %v1321
    %v1323 = vmul.f32 %v1318, %v1322
    %vm1324 = vweird.f32 %v1287
    %vm1325 = vweird.f32 %v1318
    %vm1326 = vmor %vm1324, %vm1325
    %v1327 = vsel %vm1326, %v1318, %v1323
    %v1328 = vmul.f32 %v1260, %v1297
    %v1329 = vmul.f32 %v1261, %v1307
    %v1330 = vmul.f32 %v1262, %v1317
    %v1331 = vmul.f32 %v1263, %v1327
    %v1333 = vperm.slane %v1242, 0
    %v1335 = vmul.f32 %v1328, %v1333
    %v1336 = vmul.f32 %v1329, %v1333
    %v1337 = vmul.f32 %v1330, %v1333
    %v1338 = vmul.f32 %v1331, %v1333
    %v1340 = vperm.slane %v1243, 0
    %v1342 = vadd.f32 %v1335, %v1340
    %v1343 = vadd.f32 %v1336, %v1340
    %v1344 = vadd.f32 %v1337, %v1340
    %v1345 = vadd.f32 %v1338, %v1340
    %v1346 = vpack.c.bf16 %v1343, %v1342
    %v1347 = vpack.c.bf16 %v1345, %v1344
    %s1348 = scalar_lea.vmem %s3, 16
    %v1349 = vld [vmem:[%s1348] sm:$0xf]
    %v1350 = vld [vmem:[%s1348 + $0x4] sm:$0xf]
    %v1351 = vld [vmem:[%s1348 + $0x8] sm:$0xf]
    %v1352 = vld [vmem:[%s1348 + $0xc] sm:$0xf]
    %s1353 = scalar_lea.vmem %s4, 1
    %v1354 = vld [vmem:[%s1353] sm:$0x1]
    %v1356 = vperm.slane %v1354, 0
    %v1362 = vunpack.c.l.b16 %v1349
    %v1363 = vunpack.c.l.b16 %v1350
    %v1364 = vunpack.c.l.b16 %v1351
    %v1365 = vunpack.c.l.b16 %v1352
    %v1366 = vpack.c.b16 %v1363, %v1362
    %v1367 = vpack.c.b16 %v1365, %v1364
    %v1371 = vsel %vm201, %v1346, 0
    %v1374 = vsel %vm201, %v1347, 0
    %1376 = vmatpush.bf16.msra.mxu0 0
    %1377 = vmatpush.bf16.msra.mxu0 0
    %1378 = vmatpush.bf16.msra.mxu0 0
    %1379 = vmatpush.bf16.msra.mxu0 0
    %1380 = vmatpush.bf16.msra.mxu0 0
    %1381 = vmatpush.bf16.msra.mxu0 0
    %1382 = vmatpush.bf16.msra.mxu0 %v1367
    %1383 = vmatpush.bf16.msra.mxu0 %v1366
    %1384 = vmatmul.bf16.gmra.mxu0 %v1371
    %v1385 = vpop.f32.mrf.mxu0
    %v1386 = vadd.f32 %v1356, %v1385
    %v1387 = vpop.f32.mrf.mxu0
    %v1388 = vadd.f32 %v1356, %v1387
    %1389 = vmatmul.bf16.gmra.mxu0 %v1374
    %v1390 = vpop.f32.mrf.mxu0
    %v1391 = vadd.f32 %v1356, %v1390
    %v1392 = vpop.f32.mrf.mxu0
    %v1393 = vadd.f32 %v1356, %v1392
    %1394 = vdwg.mxu0
    %v1395 = vmul.f32 %v1386, 0.35355338
    %v1396 = vmul.f32 %v1388, 0.35355338
    %v1397 = vmul.f32 %v1391, 0.35355338
    %v1398 = vmul.f32 %v1393, 0.35355338
    %1403 = vrot.lane.b32.xlu0 %v1386, 96
    %v1404 = vpop.permute.xlu0 %1403
    %1405 = vrot.lane.b32.xlu0 %v1388, 96
    %v1406 = vpop.permute.xlu0 %1405
    %1407 = vrot.lane.b32.xlu0 %v1391, 96
    %v1408 = vpop.permute.xlu0 %1407
    %1409 = vrot.lane.b32.xlu0 %v1393, 96
    %v1410 = vpop.permute.xlu0 %1409
    %v1412 = vsel %vm243, %v1395, 0
    %v1415 = vsel %vm243, %v1396, 0
    %v1418 = vsel %vm243, %v1397, 0
    %v1421 = vsel %vm243, %v1398, 0
    %v1423 = vsel %vm243, %v1404, 0
    %v1425 = vsel %vm243, %v1406, 0
    %v1427 = vsel %vm243, %v1408, 0
    %v1429 = vsel %vm243, %v1410, 0
    %1431 = vmatpush.xpose.msra.mxu0 0.0
    %1432 = vmatpush.xpose.msra.mxu0 0.0
    %1433 = vmatpush.xpose.msra.mxu0 0.0
    %1434 = vmatpush.xpose.msra.mxu0 0.0
    %1435 = vmatpush.xpose.msra.mxu0 0.0
    %1436 = vmatpush.xpose.msra.mxu0 0.0
    %1437 = vmatpush.xpose.msra.mxu0 0.0
    %1438 = vmatpush.xpose.msra.mxu0 0.0
    %1439 = vmatpush.xpose.msra.mxu0 0.0
    %1440 = vmatpush.xpose.msra.mxu0 0.0
    %1441 = vmatpush.xpose.msra.mxu0 0.0
    %1442 = vmatpush.xpose.msra.mxu0 0.0
    %1443 = vmatpush.xpose.msra.mxu0 %v1429
    %1444 = vmatpush.xpose.msra.mxu0 %v1427
    %1445 = vmatpush.xpose.msra.mxu0 %v1425
    %1446 = vmatpush.xpose.msra.mxu0 %v1423
    %1447 = vmatmul.f32.gmra.mxu0 %v1412
    %v1448 = vpop.f32.mrf.mxu0
    %v1449 = vadd.f32 %v175, %v1448
    %1450 = vmatmul.f32.gmra.mxu0 %v1415
    %v1451 = vpop.f32.mrf.mxu0
    %v1452 = vadd.f32 %v176, %v1451
    %1453 = vmatmul.f32.gmra.mxu0 %v1418
    %v1454 = vpop.f32.mrf.mxu0
    %v1455 = vadd.f32 %v177, %v1454
    %1456 = vmatmul.f32.gmra.mxu0 %v1421
    %v1457 = vpop.f32.mrf.mxu0
    %v1458 = vadd.f32 %v178, %v1457
    %1459 = vdwg.mxu0
    %v1460 = vsel %vm201, %v1449, -inf
    %1461 = vmax.xlane.f32.xlu0 %v1460
    %v1462 = vpop.xlane.xlu0 %1461
    %v1463 = vsel %vm201, %v1452, -inf
    %1464 = vmax.xlane.f32.xlu0 %v1463
    %v1465 = vpop.xlane.xlu0 %1464
    %v1466 = vsel %vm201, %v1455, -inf
    %1467 = vmax.xlane.f32.xlu0 %v1466
    %v1468 = vpop.xlane.xlu0 %1467
    %v1469 = vsel %vm201, %v1458, -inf
    %1470 = vmax.xlane.f32.xlu0 %v1469
    %v1471 = vpop.xlane.xlu0 %1470
    %v1472 = vsub.f32 %v1449, %v1462
    %v1473 = vsub.f32 %v1452, %v1465
    %v1474 = vsub.f32 %v1455, %v1468
    %v1475 = vsub.f32 %v1458, %v1471
    %v1476 = vmul.f32 %v1472, 1.442695
    %v1477 = vpow.pop %v1476
    %v1478 = vmul.f32 %v1473, 1.442695
    %v1479 = vpow.pop %v1478
    %v1480 = vmul.f32 %v1474, 1.442695
    %v1481 = vpow.pop %v1480
    %v1482 = vmul.f32 %v1475, 1.442695
    %v1483 = vpow.pop %v1482
    %v1484 = vsel %vm201, %v1477, 0.0
    %1485 = vadd.xlane.f32.xlu0 %v1484
    %v1486 = vpop.xlane.xlu0 %1485
    %v1487 = vsel %vm201, %v1479, 0.0
    %1488 = vadd.xlane.f32.xlu0 %v1487
    %v1489 = vpop.xlane.xlu0 %1488
    %v1490 = vsel %vm201, %v1481, 0.0
    %1491 = vadd.xlane.f32.xlu0 %v1490
    %v1492 = vpop.xlane.xlu0 %1491
    %v1493 = vsel %vm201, %v1483, 0.0
    %1494 = vadd.xlane.f32.xlu0 %v1493
    %v1495 = vpop.xlane.xlu0 %1494
    %v1496 = vrcp.pop %v1486
    %v1497 = vrcp.pop %v1489
    %v1498 = vrcp.pop %v1492
    %v1499 = vrcp.pop %v1495
    %v1500 = vmul.f32 %v1477, %v1496
    %v1501 = vmul.f32 %v1479, %v1497
    %v1502 = vmul.f32 %v1481, %v1498
    %v1503 = vmul.f32 %v1483, %v1499
    %1504 = vrot.lane.b32.xlu0 %v1386, 64
    %v1505 = vpop.permute.xlu0 %1504
    %1506 = vrot.lane.b32.xlu0 %v1388, 64
    %v1507 = vpop.permute.xlu0 %1506
    %1508 = vrot.lane.b32.xlu0 %v1391, 64
    %v1509 = vpop.permute.xlu0 %1508
    %1510 = vrot.lane.b32.xlu0 %v1393, 64
    %v1511 = vpop.permute.xlu0 %1510
    %v1517 = vsel %vm201, %v1500, 0
    %v1520 = vsel %vm201, %v1501, 0
    %v1523 = vsel %vm201, %v1502, 0
    %v1526 = vsel %vm201, %v1503, 0
    %1528 = vmatpush.msra.mxu0 0.0
    %1529 = vmatpush.msra.mxu0 0.0
    %1530 = vmatpush.msra.mxu0 0.0
    %1531 = vmatpush.msra.mxu0 0.0
    %1532 = vmatpush.msra.mxu0 0.0
    %1533 = vmatpush.msra.mxu0 0.0
    %1534 = vmatpush.msra.mxu0 0.0
    %1535 = vmatpush.msra.mxu0 0.0
    %1536 = vmatpush.msra.mxu0 0.0
    %1537 = vmatpush.msra.mxu0 0.0
    %1538 = vmatpush.msra.mxu0 0.0
    %1539 = vmatpush.msra.mxu0 0.0
    %1540 = vmatpush.msra.mxu0 %v1511
    %1541 = vmatpush.msra.mxu0 %v1509
    %1542 = vmatpush.msra.mxu0 %v1507
    %1543 = vmatpush.msra.mxu0 %v1505
    %1544 = vmatmul.f32.gmra.mxu0 %v1517
    %v1545 = vpop.f32.mrf.mxu0
    %v1546 = vadd.f32 0.0, %v1545
    %1547 = vmatmul.f32.gmra.mxu0 %v1520
    %v1548 = vpop.f32.mrf.mxu0
    %v1549 = vadd.f32 0.0, %v1548
    %1550 = vmatmul.f32.gmra.mxu0 %v1523
    %v1551 = vpop.f32.mrf.mxu0
    %v1552 = vadd.f32 0.0, %v1551
    %1553 = vmatmul.f32.gmra.mxu0 %v1526
    %v1554 = vpop.f32.mrf.mxu0
    %v1555 = vadd.f32 0.0, %v1554
    %1556 = vdwg.mxu0
    %v1557 = vpack.c.bf16 %v1549, %v1546
    %v1558 = vpack.c.bf16 %v1555, %v1552
    %s1559 = scalar_lea.vmem [#allocation5], 16
    %v1560 = vld [vmem:[%s1559] sm:$0xf]
    %1561 = vrot.lane.b32.xlu0 %v1395, 120
    %v1562 = vpop.permute.xlu0 %1561
    %1563 = vrot.lane.b32.xlu0 %v1396, 120
    %v1564 = vpop.permute.xlu0 %1563
    %1565 = vrot.lane.b32.xlu0 %v1397, 120
    %v1566 = vpop.permute.xlu0 %1565
    %1567 = vrot.lane.b32.xlu0 %v1398, 120
    %v1568 = vpop.permute.xlu0 %1567
    %1569 = vrot.lane.b32.xlu0 %v1386, 88
    %v1570 = vpop.permute.xlu0 %1569
    %1571 = vrot.lane.b32.xlu0 %v1388, 88
    %v1572 = vpop.permute.xlu0 %1571
    %1573 = vrot.lane.b32.xlu0 %v1391, 88
    %v1574 = vpop.permute.xlu0 %1573
    %1575 = vrot.lane.b32.xlu0 %v1393, 88
    %v1576 = vpop.permute.xlu0 %1575
    %v1577 = vsel %vm243, %v1562, 0
    %v1579 = vsel %vm243, %v1564, 0
    %v1581 = vsel %vm243, %v1566, 0
    %v1583 = vsel %vm243, %v1568, 0
    %v1585 = vsel %vm243, %v1570, 0
    %v1587 = vsel %vm243, %v1572, 0
    %v1589 = vsel %vm243, %v1574, 0
    %v1591 = vsel %vm243, %v1576, 0
    %1593 = vmatpush.xpose.msra.mxu0 0.0
    %1594 = vmatpush.xpose.msra.mxu0 0.0
    %1595 = vmatpush.xpose.msra.mxu0 0.0
    %1596 = vmatpush.xpose.msra.mxu0 0.0
    %1597 = vmatpush.xpose.msra.mxu0 0.0
    %1598 = vmatpush.xpose.msra.mxu0 0.0
    %1599 = vmatpush.xpose.msra.mxu0 0.0
    %1600 = vmatpush.xpose.msra.mxu0 0.0
    %1601 = vmatpush.xpose.msra.mxu0 0.0
    %1602 = vmatpush.xpose.msra.mxu0 0.0
    %1603 = vmatpush.xpose.msra.mxu0 0.0
    %1604 = vmatpush.xpose.msra.mxu0 0.0
    %1605 = vmatpush.xpose.msra.mxu0 %v1591
    %1606 = vmatpush.xpose.msra.mxu0 %v1589
    %1607 = vmatpush.xpose.msra.mxu0 %v1587
    %1608 = vmatpush.xpose.msra.mxu0 %v1585
    %1609 = vmatmul.f32.gmra.mxu0 %v1577
    %v1610 = vpop.f32.mrf.mxu0
    %v1611 = vadd.f32 %v175, %v1610
    %1612 = vmatmul.f32.gmra.mxu0 %v1579
    %v1613 = vpop.f32.mrf.mxu0
    %v1614 = vadd.f32 %v176, %v1613
    %1615 = vmatmul.f32.gmra.mxu0 %v1581
    %v1616 = vpop.f32.mrf.mxu0
    %v1617 = vadd.f32 %v177, %v1616
    %1618 = vmatmul.f32.gmra.mxu0 %v1583
    %v1619 = vpop.f32.mrf.mxu0
    %v1620 = vadd.f32 %v178, %v1619
    %1621 = vdwg.mxu0
    %v1622 = vsel %vm201, %v1611, -inf
    %1623 = vmax.xlane.f32.xlu0 %v1622
    %v1624 = vpop.xlane.xlu0 %1623
    %v1625 = vsel %vm201, %v1614, -inf
    %1626 = vmax.xlane.f32.xlu0 %v1625
    %v1627 = vpop.xlane.xlu0 %1626
    %v1628 = vsel %vm201, %v1617, -inf
    %1629 = vmax.xlane.f32.xlu0 %v1628
    %v1630 = vpop.xlane.xlu0 %1629
    %v1631 = vsel %vm201, %v1620, -inf
    %1632 = vmax.xlane.f32.xlu0 %v1631
    %v1633 = vpop.xlane.xlu0 %1632
    %v1634 = vsub.f32 %v1611, %v1624
    %v1635 = vsub.f32 %v1614, %v1627
    %v1636 = vsub.f32 %v1617, %v1630
    %v1637 = vsub.f32 %v1620, %v1633
    %v1638 = vmul.f32 %v1634, 1.442695
    %v1639 = vpow.pop %v1638
    %v1640 = vmul.f32 %v1635, 1.442695
    %v1641 = vpow.pop %v1640
    %v1642 = vmul.f32 %v1636, 1.442695
    %v1643 = vpow.pop %v1642
    %v1644 = vmul.f32 %v1637, 1.442695
    %v1645 = vpow.pop %v1644
    %v1646 = vsel %vm201, %v1639, 0.0
    %1647 = vadd.xlane.f32.xlu0 %v1646
    %v1648 = vpop.xlane.xlu0 %1647
    %v1649 = vsel %vm201, %v1641, 0.0
    %1650 = vadd.xlane.f32.xlu0 %v1649
    %v1651 = vpop.xlane.xlu0 %1650
    %v1652 = vsel %vm201, %v1643, 0.0
    %1653 = vadd.xlane.f32.xlu0 %v1652
    %v1654 = vpop.xlane.xlu0 %1653
    %v1655 = vsel %vm201, %v1645, 0.0
    %1656 = vadd.xlane.f32.xlu0 %v1655
    %v1657 = vpop.xlane.xlu0 %1656
    %v1658 = vrcp.pop %v1648
    %v1659 = vrcp.pop %v1651
    %v1660 = vrcp.pop %v1654
    %v1661 = vrcp.pop %v1657
    %v1662 = vmul.f32 %v1639, %v1658
    %v1663 = vmul.f32 %v1641, %v1659
    %v1664 = vmul.f32 %v1643, %v1660
    %v1665 = vmul.f32 %v1645, %v1661
    %1666 = vrot.lane.b32.xlu0 %v1386, 56
    %v1667 = vpop.permute.xlu0 %1666
    %1668 = vrot.lane.b32.xlu0 %v1388, 56
    %v1669 = vpop.permute.xlu0 %1668
    %1670 = vrot.lane.b32.xlu0 %v1391, 56
    %v1671 = vpop.permute.xlu0 %1670
    %1672 = vrot.lane.b32.xlu0 %v1393, 56
    %v1673 = vpop.permute.xlu0 %1672
    %v1679 = vsel %vm201, %v1662, 0
    %v1682 = vsel %vm201, %v1663, 0
    %v1685 = vsel %vm201, %v1664, 0
    %v1688 = vsel %vm201, %v1665, 0
    %1690 = vmatpush.msra.mxu0 0.0
    %1691 = vmatpush.msra.mxu0 0.0
    %1692 = vmatpush.msra.mxu0 0.0
    %1693 = vmatpush.msra.mxu0 0.0
    %1694 = vmatpush.msra.mxu0 0.0
    %1695 = vmatpush.msra.mxu0 0.0
    %1696 = vmatpush.msra.mxu0 0.0
    %1697 = vmatpush.msra.mxu0 0.0
    %1698 = vmatpush.msra.mxu0 0.0
    %1699 = vmatpush.msra.mxu0 0.0
    %1700 = vmatpush.msra.mxu0 0.0
    %1701 = vmatpush.msra.mxu0 0.0
    %1702 = vmatpush.msra.mxu0 %v1673
    %1703 = vmatpush.msra.mxu0 %v1671
    %1704 = vmatpush.msra.mxu0 %v1669
    %1705 = vmatpush.msra.mxu0 %v1667
    %1706 = vmatmul.f32.gmra.mxu0 %v1679
    %v1707 = vpop.f32.mrf.mxu0
    %v1708 = vadd.f32 0.0, %v1707
    %1709 = vmatmul.f32.gmra.mxu0 %v1682
    %v1710 = vpop.f32.mrf.mxu0
    %v1711 = vadd.f32 0.0, %v1710
    %1712 = vmatmul.f32.gmra.mxu0 %v1685
    %v1713 = vpop.f32.mrf.mxu0
    %v1714 = vadd.f32 0.0, %v1713
    %1715 = vmatmul.f32.gmra.mxu0 %v1688
    %v1716 = vpop.f32.mrf.mxu0
    %v1717 = vadd.f32 0.0, %v1716
    %1718 = vdwg.mxu0
    %v1719 = vpack.c.bf16 %v1711, %v1708
    %v1720 = vpack.c.bf16 %v1717, %v1714
    %s1721 = scalar_lea.vmem [#allocation5], 20
    %v1722 = vld [vmem:[%s1721] sm:$0xf]
    %v1724 = vsel %vm243, %v1719, 0
    %v1727 = vsel %vm243, %v1720, 0
    %v1730 = vsel %vm561, %v1722, 0
    %1732 = vmatpush.bf16.msra.mxu0 0
    %1733 = vmatpush.bf16.msra.mxu0 0
    %1734 = vmatpush.bf16.msra.mxu0 0
    %1735 = vmatpush.bf16.msra.mxu0 0
    %1736 = vmatpush.bf16.msra.mxu0 0
    %1737 = vmatpush.bf16.msra.mxu0 0
    %1738 = vmatpush.bf16.msra.mxu0 0
    %1739 = vmatpush.bf16.msra.mxu0 %v1730
    %1740 = vmatmul.bf16.gmra.mxu0 %v1724
    %v1741 = vpop.f32.mrf.mxu0
    %v1742 = vadd.f32 0.0, %v1741
    %v1743 = vpop.f32.mrf.mxu0
    %v1744 = vadd.f32 0.0, %v1743
    %1745 = vmatmul.bf16.gmra.mxu0 %v1727
    %v1746 = vpop.f32.mrf.mxu0
    %v1747 = vadd.f32 0.0, %v1746
    %v1748 = vpop.f32.mrf.mxu0
    %v1749 = vadd.f32 0.0, %v1748
    %1750 = vdwg.mxu0
    %v1752 = vsel %vm243, %v1557, 0
    %v1755 = vsel %vm243, %v1558, 0
    %v1758 = vsel %vm561, %v1560, 0
    %1760 = vmatpush.bf16.msra.mxu0 0
    %1761 = vmatpush.bf16.msra.mxu0 0
    %1762 = vmatpush.bf16.msra.mxu0 0
    %1763 = vmatpush.bf16.msra.mxu0 0
    %1764 = vmatpush.bf16.msra.mxu0 0
    %1765 = vmatpush.bf16.msra.mxu0 0
    %1766 = vmatpush.bf16.msra.mxu0 0
    %1767 = vmatpush.bf16.msra.mxu0 %v1758
    %1768 = vmatmul.bf16.gmra.mxu0 %v1752
    %v1769 = vpop.f32.mrf.mxu0
    %v1770 = vadd.f32 %v1742, %v1769
    %v1771 = vpop.f32.mrf.mxu0
    %v1772 = vadd.f32 %v1744, %v1771
    %1773 = vmatmul.bf16.gmra.mxu0 %v1755
    %v1774 = vpop.f32.mrf.mxu0
    %v1775 = vadd.f32 %v1747, %v1774
    %v1776 = vpop.f32.mrf.mxu0
    %v1777 = vadd.f32 %v1749, %v1776
    %1778 = vdwg.mxu0
    %1779 = vrot.lane.b32.xlu0 %v1395, 112
    %v1780 = vpop.permute.xlu0 %1779
    %1781 = vrot.lane.b32.xlu0 %v1396, 112
    %v1782 = vpop.permute.xlu0 %1781
    %1783 = vrot.lane.b32.xlu0 %v1397, 112
    %v1784 = vpop.permute.xlu0 %1783
    %1785 = vrot.lane.b32.xlu0 %v1398, 112
    %v1786 = vpop.permute.xlu0 %1785
    %1787 = vrot.lane.b32.xlu0 %v1386, 80
    %v1788 = vpop.permute.xlu0 %1787
    %1789 = vrot.lane.b32.xlu0 %v1388, 80
    %v1790 = vpop.permute.xlu0 %1789
    %1791 = vrot.lane.b32.xlu0 %v1391, 80
    %v1792 = vpop.permute.xlu0 %1791
    %1793 = vrot.lane.b32.xlu0 %v1393, 80
    %v1794 = vpop.permute.xlu0 %1793
    %v1795 = vsel %vm243, %v1780, 0
    %v1797 = vsel %vm243, %v1782, 0
    %v1799 = vsel %vm243, %v1784, 0
    %v1801 = vsel %vm243, %v1786, 0
    %v1803 = vsel %vm243, %v1788, 0
    %v1805 = vsel %vm243, %v1790, 0
    %v1807 = vsel %vm243, %v1792, 0
    %v1809 = vsel %vm243, %v1794, 0
    %1811 = vmatpush.xpose.msra.mxu0 0.0
    %1812 = vmatpush.xpose.msra.mxu0 0.0
    %1813 = vmatpush.xpose.msra.mxu0 0.0
    %1814 = vmatpush.xpose.msra.mxu0 0.0
    %1815 = vmatpush.xpose.msra.mxu0 0.0
    %1816 = vmatpush.xpose.msra.mxu0 0.0
    %1817 = vmatpush.xpose.msra.mxu0 0.0
    %1818 = vmatpush.xpose.msra.mxu0 0.0
    %1819 = vmatpush.xpose.msra.mxu0 0.0
    %1820 = vmatpush.xpose.msra.mxu0 0.0
    %1821 = vmatpush.xpose.msra.mxu0 0.0
    %1822 = vmatpush.xpose.msra.mxu0 0.0
    %1823 = vmatpush.xpose.msra.mxu0 %v1809
    %1824 = vmatpush.xpose.msra.mxu0 %v1807
    %1825 = vmatpush.xpose.msra.mxu0 %v1805
    %1826 = vmatpush.xpose.msra.mxu0 %v1803
    %1827 = vmatmul.f32.gmra.mxu0 %v1795
    %v1828 = vpop.f32.mrf.mxu0
    %v1829 = vadd.f32 %v175, %v1828
    %1830 = vmatmul.f32.gmra.mxu0 %v1797
    %v1831 = vpop.f32.mrf.mxu0
    %v1832 = vadd.f32 %v176, %v1831
    %1833 = vmatmul.f32.gmra.mxu0 %v1799
    %v1834 = vpop.f32.mrf.mxu0
    %v1835 = vadd.f32 %v177, %v1834
    %1836 = vmatmul.f32.gmra.mxu0 %v1801
    %v1837 = vpop.f32.mrf.mxu0
    %v1838 = vadd.f32 %v178, %v1837
    %1839 = vdwg.mxu0
    %v1840 = vsel %vm201, %v1829, -inf
    %1841 = vmax.xlane.f32.xlu0 %v1840
    %v1842 = vpop.xlane.xlu0 %1841
    %v1843 = vsel %vm201, %v1832, -inf
    %1844 = vmax.xlane.f32.xlu0 %v1843
    %v1845 = vpop.xlane.xlu0 %1844
    %v1846 = vsel %vm201, %v1835, -inf
    %1847 = vmax.xlane.f32.xlu0 %v1846
    %v1848 = vpop.xlane.xlu0 %1847
    %v1849 = vsel %vm201, %v1838, -inf
    %1850 = vmax.xlane.f32.xlu0 %v1849
    %v1851 = vpop.xlane.xlu0 %1850
    %v1852 = vsub.f32 %v1829, %v1842
    %v1853 = vsub.f32 %v1832, %v1845
    %v1854 = vsub.f32 %v1835, %v1848
    %v1855 = vsub.f32 %v1838, %v1851
    %v1856 = vmul.f32 %v1852, 1.442695
    %v1857 = vpow.pop %v1856
    %v1858 = vmul.f32 %v1853, 1.442695
    %v1859 = vpow.pop %v1858
    %v1860 = vmul.f32 %v1854, 1.442695
    %v1861 = vpow.pop %v1860
    %v1862 = vmul.f32 %v1855, 1.442695
    %v1863 = vpow.pop %v1862
    %v1864 = vsel %vm201, %v1857, 0.0
    %1865 = vadd.xlane.f32.xlu0 %v1864
    %v1866 = vpop.xlane.xlu0 %1865
    %v1867 = vsel %vm201, %v1859, 0.0
    %1868 = vadd.xlane.f32.xlu0 %v1867
    %v1869 = vpop.xlane.xlu0 %1868
    %v1870 = vsel %vm201, %v1861, 0.0
    %1871 = vadd.xlane.f32.xlu0 %v1870
    %v1872 = vpop.xlane.xlu0 %1871
    %v1873 = vsel %vm201, %v1863, 0.0
    %1874 = vadd.xlane.f32.xlu0 %v1873
    %v1875 = vpop.xlane.xlu0 %1874
    %v1876 = vrcp.pop %v1866
    %v1877 = vrcp.pop %v1869
    %v1878 = vrcp.pop %v1872
    %v1879 = vrcp.pop %v1875
    %v1880 = vmul.f32 %v1857, %v1876
    %v1881 = vmul.f32 %v1859, %v1877
    %v1882 = vmul.f32 %v1861, %v1878
    %v1883 = vmul.f32 %v1863, %v1879
    %1884 = vrot.lane.b32.xlu0 %v1386, 48
    %v1885 = vpop.permute.xlu0 %1884
    %1886 = vrot.lane.b32.xlu0 %v1388, 48
    %v1887 = vpop.permute.xlu0 %1886
    %1888 = vrot.lane.b32.xlu0 %v1391, 48
    %v1889 = vpop.permute.xlu0 %1888
    %1890 = vrot.lane.b32.xlu0 %v1393, 48
    %v1891 = vpop.permute.xlu0 %1890
    %v1897 = vsel %vm201, %v1880, 0
    %v1900 = vsel %vm201, %v1881, 0
    %v1903 = vsel %vm201, %v1882, 0
    %v1906 = vsel %vm201, %v1883, 0
    %1908 = vmatpush.msra.mxu0 0.0
    %1909 = vmatpush.msra.mxu0 0.0
    %1910 = vmatpush.msra.mxu0 0.0
    %1911 = vmatpush.msra.mxu0 0.0
    %1912 = vmatpush.msra.mxu0 0.0
    %1913 = vmatpush.msra.mxu0 0.0
    %1914 = vmatpush.msra.mxu0 0.0
    %1915 = vmatpush.msra.mxu0 0.0
    %1916 = vmatpush.msra.mxu0 0.0
    %1917 = vmatpush.msra.mxu0 0.0
    %1918 = vmatpush.msra.mxu0 0.0
    %1919 = vmatpush.msra.mxu0 0.0
    %1920 = vmatpush.msra.mxu0 %v1891
    %1921 = vmatpush.msra.mxu0 %v1889
    %1922 = vmatpush.msra.mxu0 %v1887
    %1923 = vmatpush.msra.mxu0 %v1885
    %1924 = vmatmul.f32.gmra.mxu0 %v1897
    %v1925 = vpop.f32.mrf.mxu0
    %v1926 = vadd.f32 0.0, %v1925
    %1927 = vmatmul.f32.gmra.mxu0 %v1900
    %v1928 = vpop.f32.mrf.mxu0
    %v1929 = vadd.f32 0.0, %v1928
    %1930 = vmatmul.f32.gmra.mxu0 %v1903
    %v1931 = vpop.f32.mrf.mxu0
    %v1932 = vadd.f32 0.0, %v1931
    %1933 = vmatmul.f32.gmra.mxu0 %v1906
    %v1934 = vpop.f32.mrf.mxu0
    %v1935 = vadd.f32 0.0, %v1934
    %1936 = vdwg.mxu0
    %v1937 = vpack.c.bf16 %v1929, %v1926
    %v1938 = vpack.c.bf16 %v1935, %v1932
    %s1939 = scalar_lea.vmem [#allocation5], 24
    %v1940 = vld [vmem:[%s1939] sm:$0xf]
    %v1942 = vsel %vm243, %v1937, 0
    %v1945 = vsel %vm243, %v1938, 0
    %v1948 = vsel %vm561, %v1940, 0
    %1950 = vmatpush.bf16.msra.mxu0 0
    %1951 = vmatpush.bf16.msra.mxu0 0
    %1952 = vmatpush.bf16.msra.mxu0 0
    %1953 = vmatpush.bf16.msra.mxu0 0
    %1954 = vmatpush.bf16.msra.mxu0 0
    %1955 = vmatpush.bf16.msra.mxu0 0
    %1956 = vmatpush.bf16.msra.mxu0 0
    %1957 = vmatpush.bf16.msra.mxu0 %v1948
    %1958 = vmatmul.bf16.gmra.mxu0 %v1942
    %v1959 = vpop.f32.mrf.mxu0
    %v1960 = vadd.f32 0.0, %v1959
    %v1961 = vpop.f32.mrf.mxu0
    %v1962 = vadd.f32 0.0, %v1961
    %1963 = vmatmul.bf16.gmra.mxu0 %v1945
    %v1964 = vpop.f32.mrf.mxu0
    %v1965 = vadd.f32 0.0, %v1964
    %v1966 = vpop.f32.mrf.mxu0
    %v1967 = vadd.f32 0.0, %v1966
    %1968 = vdwg.mxu0
    %v1969 = vadd.f32 %v1770, %v1960
    %v1970 = vadd.f32 %v1772, %v1962
    %v1971 = vadd.f32 %v1775, %v1965
    %v1972 = vadd.f32 %v1777, %v1967
    %1973 = vrot.lane.b32.xlu0 %v1395, 104
    %v1974 = vpop.permute.xlu0 %1973
    %1975 = vrot.lane.b32.xlu0 %v1396, 104
    %v1976 = vpop.permute.xlu0 %1975
    %1977 = vrot.lane.b32.xlu0 %v1397, 104
    %v1978 = vpop.permute.xlu0 %1977
    %1979 = vrot.lane.b32.xlu0 %v1398, 104
    %v1980 = vpop.permute.xlu0 %1979
    %1981 = vrot.lane.b32.xlu0 %v1386, 72
    %v1982 = vpop.permute.xlu0 %1981
    %1983 = vrot.lane.b32.xlu0 %v1388, 72
    %v1984 = vpop.permute.xlu0 %1983
    %1985 = vrot.lane.b32.xlu0 %v1391, 72
    %v1986 = vpop.permute.xlu0 %1985
    %1987 = vrot.lane.b32.xlu0 %v1393, 72
    %v1988 = vpop.permute.xlu0 %1987
    %v1989 = vsel %vm243, %v1974, 0
    %v1991 = vsel %vm243, %v1976, 0
    %v1993 = vsel %vm243, %v1978, 0
    %v1995 = vsel %vm243, %v1980, 0
    %v1997 = vsel %vm243, %v1982, 0
    %v1999 = vsel %vm243, %v1984, 0
    %v2001 = vsel %vm243, %v1986, 0
    %v2003 = vsel %vm243, %v1988, 0
    %2005 = vmatpush.xpose.msra.mxu0 0.0
    %2006 = vmatpush.xpose.msra.mxu0 0.0
    %2007 = vmatpush.xpose.msra.mxu0 0.0
    %2008 = vmatpush.xpose.msra.mxu0 0.0
    %2009 = vmatpush.xpose.msra.mxu0 0.0
    %2010 = vmatpush.xpose.msra.mxu0 0.0
    %2011 = vmatpush.xpose.msra.mxu0 0.0
    %2012 = vmatpush.xpose.msra.mxu0 0.0
    %2013 = vmatpush.xpose.msra.mxu0 0.0
    %2014 = vmatpush.xpose.msra.mxu0 0.0
    %2015 = vmatpush.xpose.msra.mxu0 0.0
    %2016 = vmatpush.xpose.msra.mxu0 0.0
    %2017 = vmatpush.xpose.msra.mxu0 %v2003
    %2018 = vmatpush.xpose.msra.mxu0 %v2001
    %2019 = vmatpush.xpose.msra.mxu0 %v1999
    %2020 = vmatpush.xpose.msra.mxu0 %v1997
    %2021 = vmatmul.f32.gmra.mxu0 %v1989
    %v2022 = vpop.f32.mrf.mxu0
    %v2023 = vadd.f32 %v175, %v2022
    %2024 = vmatmul.f32.gmra.mxu0 %v1991
    %v2025 = vpop.f32.mrf.mxu0
    %v2026 = vadd.f32 %v176, %v2025
    %2027 = vmatmul.f32.gmra.mxu0 %v1993
    %v2028 = vpop.f32.mrf.mxu0
    %v2029 = vadd.f32 %v177, %v2028
    %2030 = vmatmul.f32.gmra.mxu0 %v1995
    %v2031 = vpop.f32.mrf.mxu0
    %v2032 = vadd.f32 %v178, %v2031
    %2033 = vdwg.mxu0
    %v2034 = vsel %vm201, %v2023, -inf
    %2035 = vmax.xlane.f32.xlu0 %v2034
    %v2036 = vpop.xlane.xlu0 %2035
    %v2037 = vsel %vm201, %v2026, -inf
    %2038 = vmax.xlane.f32.xlu0 %v2037
    %v2039 = vpop.xlane.xlu0 %2038
    %v2040 = vsel %vm201, %v2029, -inf
    %2041 = vmax.xlane.f32.xlu0 %v2040
    %v2042 = vpop.xlane.xlu0 %2041
    %v2043 = vsel %vm201, %v2032, -inf
    %2044 = vmax.xlane.f32.xlu0 %v2043
    %v2045 = vpop.xlane.xlu0 %2044
    %v2046 = vsub.f32 %v2023, %v2036
    %v2047 = vsub.f32 %v2026, %v2039
    %v2048 = vsub.f32 %v2029, %v2042
    %v2049 = vsub.f32 %v2032, %v2045
    %v2050 = vmul.f32 %v2046, 1.442695
    %v2051 = vpow.pop %v2050
    %v2052 = vmul.f32 %v2047, 1.442695
    %v2053 = vpow.pop %v2052
    %v2054 = vmul.f32 %v2048, 1.442695
    %v2055 = vpow.pop %v2054
    %v2056 = vmul.f32 %v2049, 1.442695
    %v2057 = vpow.pop %v2056
    %v2058 = vsel %vm201, %v2051, 0.0
    %2059 = vadd.xlane.f32.xlu0 %v2058
    %v2060 = vpop.xlane.xlu0 %2059
    %v2061 = vsel %vm201, %v2053, 0.0
    %2062 = vadd.xlane.f32.xlu0 %v2061
    %v2063 = vpop.xlane.xlu0 %2062
    %v2064 = vsel %vm201, %v2055, 0.0
    %2065 = vadd.xlane.f32.xlu0 %v2064
    %v2066 = vpop.xlane.xlu0 %2065
    %v2067 = vsel %vm201, %v2057, 0.0
    %2068 = vadd.xlane.f32.xlu0 %v2067
    %v2069 = vpop.xlane.xlu0 %2068
    %v2070 = vrcp.pop %v2060
    %v2071 = vrcp.pop %v2063
    %v2072 = vrcp.pop %v2066
    %v2073 = vrcp.pop %v2069
    %v2074 = vmul.f32 %v2051, %v2070
    %v2075 = vmul.f32 %v2053, %v2071
    %v2076 = vmul.f32 %v2055, %v2072
    %v2077 = vmul.f32 %v2057, %v2073
    %2078 = vrot.lane.b32.xlu0 %v1386, 40
    %v2079 = vpop.permute.xlu0 %2078
    %2080 = vrot.lane.b32.xlu0 %v1388, 40
    %v2081 = vpop.permute.xlu0 %2080
    %2082 = vrot.lane.b32.xlu0 %v1391, 40
    %v2083 = vpop.permute.xlu0 %2082
    %2084 = vrot.lane.b32.xlu0 %v1393, 40
    %v2085 = vpop.permute.xlu0 %2084
    %v2091 = vsel %vm201, %v2074, 0
    %v2094 = vsel %vm201, %v2075, 0
    %v2097 = vsel %vm201, %v2076, 0
    %v2100 = vsel %vm201, %v2077, 0
    %2102 = vmatpush.msra.mxu0 0.0
    %2103 = vmatpush.msra.mxu0 0.0
    %2104 = vmatpush.msra.mxu0 0.0
    %2105 = vmatpush.msra.mxu0 0.0
    %2106 = vmatpush.msra.mxu0 0.0
    %2107 = vmatpush.msra.mxu0 0.0
    %2108 = vmatpush.msra.mxu0 0.0
    %2109 = vmatpush.msra.mxu0 0.0
    %2110 = vmatpush.msra.mxu0 0.0
    %2111 = vmatpush.msra.mxu0 0.0
    %2112 = vmatpush.msra.mxu0 0.0
    %2113 = vmatpush.msra.mxu0 0.0
    %2114 = vmatpush.msra.mxu0 %v2085
    %2115 = vmatpush.msra.mxu0 %v2083
    %2116 = vmatpush.msra.mxu0 %v2081
    %2117 = vmatpush.msra.mxu0 %v2079
    %2118 = vmatmul.f32.gmra.mxu0 %v2091
    %v2119 = vpop.f32.mrf.mxu0
    %v2120 = vadd.f32 0.0, %v2119
    %2121 = vmatmul.f32.gmra.mxu0 %v2094
    %v2122 = vpop.f32.mrf.mxu0
    %v2123 = vadd.f32 0.0, %v2122
    %2124 = vmatmul.f32.gmra.mxu0 %v2097
    %v2125 = vpop.f32.mrf.mxu0
    %v2126 = vadd.f32 0.0, %v2125
    %2127 = vmatmul.f32.gmra.mxu0 %v2100
    %v2128 = vpop.f32.mrf.mxu0
    %v2129 = vadd.f32 0.0, %v2128
    %2130 = vdwg.mxu0
    %v2131 = vpack.c.bf16 %v2123, %v2120
    %v2132 = vpack.c.bf16 %v2129, %v2126
    %s2133 = scalar_lea.vmem [#allocation5], 28
    %v2134 = vld [vmem:[%s2133] sm:$0xf]
    %v2136 = vsel %vm243, %v2131, 0
    %v2139 = vsel %vm243, %v2132, 0
    %v2142 = vsel %vm561, %v2134, 0
    %2144 = vmatpush.bf16.msra.mxu0 0
    %2145 = vmatpush.bf16.msra.mxu0 0
    %2146 = vmatpush.bf16.msra.mxu0 0
    %2147 = vmatpush.bf16.msra.mxu0 0
    %2148 = vmatpush.bf16.msra.mxu0 0
    %2149 = vmatpush.bf16.msra.mxu0 0
    %2150 = vmatpush.bf16.msra.mxu0 0
    %2151 = vmatpush.bf16.msra.mxu0 %v2142
    %2152 = vmatmul.bf16.gmra.mxu0 %v2136
    %v2153 = vpop.f32.mrf.mxu0
    %v2154 = vadd.f32 0.0, %v2153
    %v2155 = vpop.f32.mrf.mxu0
    %v2156 = vadd.f32 0.0, %v2155
    %2157 = vmatmul.bf16.gmra.mxu0 %v2139
    %v2158 = vpop.f32.mrf.mxu0
    %v2159 = vadd.f32 0.0, %v2158
    %v2160 = vpop.f32.mrf.mxu0
    %v2161 = vadd.f32 0.0, %v2160
    %2162 = vdwg.mxu0
    %v2163 = vadd.f32 %v1969, %v2154
    %v2164 = vadd.f32 %v1970, %v2156
    %v2165 = vadd.f32 %v1971, %v2159
    %v2166 = vadd.f32 %v1972, %v2161
    %s2167 = scalar_lea.vmem %s6, 1
    %v2168 = vld [vmem:[%s2167] sm:$0x1]
    %v2170 = vperm.slane %v2168, 0
    %v2172 = vadd.f32 %v2163, %v2170
    %v2173 = vadd.f32 %v2164, %v2170
    %v2174 = vadd.f32 %v2165, %v2170
    %v2175 = vadd.f32 %v2166, %v2170
    %v2176 = vadd.f32 %v1342, %v2172
    %v2177 = vadd.f32 %v1343, %v2173
    %v2178 = vadd.f32 %v1344, %v2174
    %v2179 = vadd.f32 %v1345, %v2175
    %s2180 = scalar_lea.vmem [#allocation7], 1
    %v2181 = vld [vmem:[%s2180] sm:$0x1]
    %s2182 = scalar_lea.vmem %s8, 1
    %v2183 = vld [vmem:[%s2182] sm:$0x1]
    %v2184 = vsel %vm201, %v2176, 0.0
    %2185 = vadd.xlane.f32.xlu0 %v2184
    %v2186 = vpop.xlane.xlu0 %2185
    %v2187 = vsel %vm201, %v2177, 0.0
    %2188 = vadd.xlane.f32.xlu0 %v2187
    %v2189 = vpop.xlane.xlu0 %2188
    %v2190 = vsel %vm201, %v2178, 0.0
    %2191 = vadd.xlane.f32.xlu0 %v2190
    %v2192 = vpop.xlane.xlu0 %2191
    %v2193 = vsel %vm201, %v2179, 0.0
    %2194 = vadd.xlane.f32.xlu0 %v2193
    %v2195 = vpop.xlane.xlu0 %2194
    %v2196 = vmul.f32 %v2186, %v1032
    %v2197 = vmul.f32 %v2189, %v1032
    %v2198 = vmul.f32 %v2192, %v1032
    %v2199 = vmul.f32 %v2195, %v1032
    %v2200 = vsub.f32 %v2176, %v2196
    %v2201 = vsub.f32 %v2177, %v2197
    %v2202 = vsub.f32 %v2178, %v2198
    %v2203 = vsub.f32 %v2179, %v2199
    %v2204 = vmul.f32 %v2200, %v2200
    %v2205 = vmul.f32 %v2201, %v2201
    %v2206 = vmul.f32 %v2202, %v2202
    %v2207 = vmul.f32 %v2203, %v2203
    %v2208 = vsel %vm201, %v2204, 0.0
    %2209 = vadd.xlane.f32.xlu0 %v2208
    %v2210 = vpop.xlane.xlu0 %2209
    %v2211 = vsel %vm201, %v2205, 0.0
    %2212 = vadd.xlane.f32.xlu0 %v2211
    %v2213 = vpop.xlane.xlu0 %2212
    %v2214 = vsel %vm201, %v2206, 0.0
    %2215 = vadd.xlane.f32.xlu0 %v2214
    %v2216 = vpop.xlane.xlu0 %2215
    %v2217 = vsel %vm201, %v2207, 0.0
    %2218 = vadd.xlane.f32.xlu0 %v2217
    %v2219 = vpop.xlane.xlu0 %2218
    %v2220 = vmul.f32 %v2210, %v1032
    %v2221 = vmul.f32 %v2213, %v1032
    %v2222 = vmul.f32 %v2216, %v1032
    %v2223 = vmul.f32 %v2219, %v1032
    %v2224 = vadd.f32 %v2220, 1e-05
    %v2225 = vadd.f32 %v2221, 1e-05
    %v2226 = vadd.f32 %v2222, 1e-05
    %v2227 = vadd.f32 %v2223, 1e-05
    %v2228 = vrsqrt.pop %v2224
    %v2229 = vmul.f32 %v2228, %v2224
    %v2230 = vmul.f32 %v2229, %v2228
    %v2231 = vmul.f32 0.5, %v2230
    %v2232 = vsub.f32 1.5, %v2231
    %v2233 = vmul.f32 %v2228, %v2232
    %vm2234 = vweird.f32 %v2224
    %vm2235 = vweird.f32 %v2228
    %vm2236 = vmor %vm2234, %vm2235
    %v2237 = vsel %vm2236, %v2228, %v2233
    %v2238 = vrsqrt.pop %v2225
    %v2239 = vmul.f32 %v2238, %v2225
    %v2240 = vmul.f32 %v2239, %v2238
    %v2241 = vmul.f32 0.5, %v2240
    %v2242 = vsub.f32 1.5, %v2241
    %v2243 = vmul.f32 %v2238, %v2242
    %vm2244 = vweird.f32 %v2225
    %vm2245 = vweird.f32 %v2238
    %vm2246 = vmor %vm2244, %vm2245
    %v2247 = vsel %vm2246, %v2238, %v2243
    %v2248 = vrsqrt.pop %v2226
    %v2249 = vmul.f32 %v2248, %v2226
    %v2250 = vmul.f32 %v2249, %v2248
    %v2251 = vmul.f32 0.5, %v2250
    %v2252 = vsub.f32 1.5, %v2251
    %v2253 = vmul.f32 %v2248, %v2252
    %vm2254 = vweird.f32 %v2226
    %vm2255 = vweird.f32 %v2248
    %vm2256 = vmor %vm2254, %vm2255
    %v2257 = vsel %vm2256, %v2248, %v2253
    %v2258 = vrsqrt.pop %v2227
    %v2259 = vmul.f32 %v2258, %v2227
    %v2260 = vmul.f32 %v2259, %v2258
    %v2261 = vmul.f32 0.5, %v2260
    %v2262 = vsub.f32 1.5, %v2261
    %v2263 = vmul.f32 %v2258, %v2262
    %vm2264 = vweird.f32 %v2227
    %vm2265 = vweird.f32 %v2258
    %vm2266 = vmor %vm2264, %vm2265
    %v2267 = vsel %vm2266, %v2258, %v2263
    %v2268 = vmul.f32 %v2200, %v2237
    %v2269 = vmul.f32 %v2201, %v2247
    %v2270 = vmul.f32 %v2202, %v2257
    %v2271 = vmul.f32 %v2203, %v2267
    %v2273 = vperm.slane %v2181, 0
    %v2275 = vmul.f32 %v2268, %v2273
    %v2276 = vmul.f32 %v2269, %v2273
    %v2277 = vmul.f32 %v2270, %v2273
    %v2278 = vmul.f32 %v2271, %v2273
    %v2280 = vperm.slane %v2183, 0
    %v2282 = vadd.f32 %v2275, %v2280
    %v2283 = vadd.f32 %v2276, %v2280
    %v2284 = vadd.f32 %v2277, %v2280
    %v2285 = vadd.f32 %v2278, %v2280
    %v2286 = vpack.c.bf16 %v2283, %v2282
    %v2287 = vpack.c.bf16 %v2285, %v2284
    %s2288 = scalar_lea.vmem [#allocation8], 16
    %v2289 = vld [vmem:[%s2288] sm:$0xf]
    %v2290 = vld [vmem:[%s2288 + $0x4] sm:$0xf]
    %v2291 = vld [vmem:[%s2288 + $0x8] sm:$0xf]
    %v2292 = vld [vmem:[%s2288 + $0xc] sm:$0xf]
    %s2293 = scalar_lea.vmem %s10, 1
    %v2294 = vld [vmem:[%s2293] sm:$0x1]
    %v2296 = vperm.slane %v2294, 0
    %v2302 = vunpack.c.l.b16 %v2289
    %v2303 = vunpack.c.l.b16 %v2290
    %v2304 = vunpack.c.l.b16 %v2291
    %v2305 = vunpack.c.l.b16 %v2292
    %v2306 = vpack.c.b16 %v2303, %v2302
    %v2307 = vpack.c.b16 %v2305, %v2304
    %v2311 = vsel %vm201, %v2286, 0
    %v2314 = vsel %vm201, %v2287, 0
    %2316 = vmatpush.bf16.msra.mxu0 0
    %2317 = vmatpush.bf16.msra.mxu0 0
    %2318 = vmatpush.bf16.msra.mxu0 0
    %2319 = vmatpush.bf16.msra.mxu0 0
    %2320 = vmatpush.bf16.msra.mxu0 0
    %2321 = vmatpush.bf16.msra.mxu0 0
    %2322 = vmatpush.bf16.msra.mxu0 %v2307
    %2323 = vmatpush.bf16.msra.mxu0 %v2306
    %2324 = vmatmul.bf16.gmra.mxu0 %v2311
    %v2325 = vpop.f32.mrf.mxu0
    %v2326 = vadd.f32 %v2296, %v2325
    %v2327 = vpop.f32.mrf.mxu0
    %v2328 = vadd.f32 %v2296, %v2327
    %2329 = vmatmul.bf16.gmra.mxu0 %v2314
    %v2330 = vpop.f32.mrf.mxu0
    %v2331 = vadd.f32 %v2296, %v2330
    %v2332 = vpop.f32.mrf.mxu0
    %v2333 = vadd.f32 %v2296, %v2332
    %2334 = vdwg.mxu0
    %v2335 = vmax.f32 %v2326, 0.0
    %v2336 = vmax.f32 %v2328, 0.0
    %v2337 = vmax.f32 %v2331, 0.0
    %v2338 = vmax.f32 %v2333, 0.0
    %v2339 = vpack.c.bf16 %v2336, %v2335
    %v2340 = vpack.c.bf16 %v2338, %v2337
    %s2341 = scalar_lea.vmem %s11, 32
    %v2342 = vld [vmem:[%s2341] sm:$0xf]
    %v2343 = vld [vmem:[%s2341 + $0x4] sm:$0xf]
    %v2344 = vld [vmem:[%s2341 + $0x8] sm:$0xf]
    %v2345 = vld [vmem:[%s2341 + $0xc] sm:$0xf]
    %v2346 = vld [vmem:[%s2341 + $0x10] sm:$0xf]
    %v2347 = vld [vmem:[%s2341 + $0x14] sm:$0xf]
    %v2348 = vld [vmem:[%s2341 + $0x18] sm:$0xf]
    %v2349 = vld [vmem:[%s2341 + $0x1c] sm:$0xf]
    %s2350 = scalar_lea.vmem %s12, 1
    %v2351 = vld [vmem:[%s2350] sm:$0x1]
    %v2353 = vperm.slane %v2351, 0
    %v2363 = vunpack.c.l.b16 %v2342
    %v2364 = vunpack.c.l.b16 %v2343
    %v2365 = vunpack.c.l.b16 %v2344
    %v2366 = vunpack.c.l.b16 %v2345
    %v2367 = vunpack.c.l.b16 %v2346
    %v2368 = vunpack.c.l.b16 %v2347
    %v2369 = vunpack.c.l.b16 %v2348
    %v2370 = vunpack.c.l.b16 %v2349
    %v2371 = vpack.c.b16 %v2364, %v2363
    %v2372 = vpack.c.b16 %v2366, %v2365
    %v2373 = vpack.c.b16 %v2368, %v2367
    %v2374 = vpack.c.b16 %v2370, %v2369
    %v2380 = vsel %vm1212, %v2339, 0
    %v2383 = vsel %vm1212, %v2340, 0
    %2385 = vmatpush.bf16.msra.mxu0 0
    %2386 = vmatpush.bf16.msra.mxu0 0
    %2387 = vmatpush.bf16.msra.mxu0 0
    %2388 = vmatpush.bf16.msra.mxu0 0
    %2389 = vmatpush.bf16.msra.mxu0 %v2374
    %2390 = vmatpush.bf16.msra.mxu0 %v2373
    %2391 = vmatpush.bf16.msra.mxu0 %v2372
    %2392 = vmatpush.bf16.msra.mxu0 %v2371
    %2393 = vmatmul.bf16.gmra.mxu0 %v2380
    %v2394 = vpop.f32.mrf.mxu0
    %v2395 = vadd.f32 %v2353, %v2394
    %v2396 = vpop.f32.mrf.mxu0
    %v2397 = vadd.f32 %v2353, %v2396
    %2398 = vmatmul.bf16.gmra.mxu0 %v2383
    %v2399 = vpop.f32.mrf.mxu0
    %v2400 = vadd.f32 %v2353, %v2399
    %v2401 = vpop.f32.mrf.mxu0
    %v2402 = vadd.f32 %v2353, %v2401
    %2403 = vdwg.mxu0
    %v2404 = vadd.f32 %v2282, %v2395
    %v2405 = vadd.f32 %v2283, %v2397
    %v2406 = vadd.f32 %v2284, %v2400
    %v2407 = vadd.f32 %v2285, %v2402
    %s2408 = scalar_lea.vmem [#allocation10], 1
    %v2409 = vld [vmem:[%s2408] sm:$0x1]
    %s2410 = scalar_lea.vmem %s14, 1
    %v2411 = vld [vmem:[%s2410] sm:$0x1]
    %v2412 = vsel %vm201, %v2404, 0.0
    %2413 = vadd.xlane.f32.xlu0 %v2412
    %v2414 = vpop.xlane.xlu0 %2413
    %v2415 = vsel %vm201, %v2405, 0.0
    %2416 = vadd.xlane.f32.xlu0 %v2415
    %v2417 = vpop.xlane.xlu0 %2416
    %v2418 = vsel %vm201, %v2406, 0.0
    %2419 = vadd.xlane.f32.xlu0 %v2418
    %v2420 = vpop.xlane.xlu0 %2419
    %v2421 = vsel %vm201, %v2407, 0.0
    %2422 = vadd.xlane.f32.xlu0 %v2421
    %v2423 = vpop.xlane.xlu0 %2422
    %v2424 = vmul.f32 %v2414, %v1032
    %v2425 = vmul.f32 %v2417, %v1032
    %v2426 = vmul.f32 %v2420, %v1032
    %v2427 = vmul.f32 %v2423, %v1032
    %v2428 = vsub.f32 %v2404, %v2424
    %v2429 = vsub.f32 %v2405, %v2425
    %v2430 = vsub.f32 %v2406, %v2426
    %v2431 = vsub.f32 %v2407, %v2427
    %v2432 = vmul.f32 %v2428, %v2428
    %v2433 = vmul.f32 %v2429, %v2429
    %v2434 = vmul.f32 %v2430, %v2430
    %v2435 = vmul.f32 %v2431, %v2431
    %v2436 = vsel %vm201, %v2432, 0.0
    %2437 = vadd.xlane.f32.xlu0 %v2436
    %v2438 = vpop.xlane.xlu0 %2437
    %v2439 = vsel %vm201, %v2433, 0.0
    %2440 = vadd.xlane.f32.xlu0 %v2439
    %v2441 = vpop.xlane.xlu0 %2440
    %v2442 = vsel %vm201, %v2434, 0.0
    %2443 = vadd.xlane.f32.xlu0 %v2442
    %v2444 = vpop.xlane.xlu0 %2443
    %v2445 = vsel %vm201, %v2435, 0.0
    %2446 = vadd.xlane.f32.xlu0 %v2445
    %v2447 = vpop.xlane.xlu0 %2446
    %v2448 = vmul.f32 %v2438, %v1032
    %v2449 = vmul.f32 %v2441, %v1032
    %v2450 = vmul.f32 %v2444, %v1032
    %v2451 = vmul.f32 %v2447, %v1032
    %v2452 = vadd.f32 %v2448, 1e-05
    %v2453 = vadd.f32 %v2449, 1e-05
    %v2454 = vadd.f32 %v2450, 1e-05
    %v2455 = vadd.f32 %v2451, 1e-05
    %v2456 = vrsqrt.pop %v2452
    %v2457 = vmul.f32 %v2456, %v2452
    %v2458 = vmul.f32 %v2457, %v2456
    %v2459 = vmul.f32 0.5, %v2458
    %v2460 = vsub.f32 1.5, %v2459
    %v2461 = vmul.f32 %v2456, %v2460
    %vm2462 = vweird.f32 %v2452
    %vm2463 = vweird.f32 %v2456
    %vm2464 = vmor %vm2462, %vm2463
    %v2465 = vsel %vm2464, %v2456, %v2461
    %v2466 = vrsqrt.pop %v2453
    %v2467 = vmul.f32 %v2466, %v2453
    %v2468 = vmul.f32 %v2467, %v2466
    %v2469 = vmul.f32 0.5, %v2468
    %v2470 = vsub.f32 1.5, %v2469
    %v2471 = vmul.f32 %v2466, %v2470
    %vm2472 = vweird.f32 %v2453
    %vm2473 = vweird.f32 %v2466
    %vm2474 = vmor %vm2472, %vm2473
    %v2475 = vsel %vm2474, %v2466, %v2471
    %v2476 = vrsqrt.pop %v2454
    %v2477 = vmul.f32 %v2476, %v2454
    %v2478 = vmul.f32 %v2477, %v2476
    %v2479 = vmul.f32 0.5, %v2478
    %v2480 = vsub.f32 1.5, %v2479
    %v2481 = vmul.f32 %v2476, %v2480
    %vm2482 = vweird.f32 %v2454
    %vm2483 = vweird.f32 %v2476
    %vm2484 = vmor %vm2482, %vm2483
    %v2485 = vsel %vm2484, %v2476, %v2481
    %v2486 = vrsqrt.pop %v2455
    %v2487 = vmul.f32 %v2486, %v2455
    %v2488 = vmul.f32 %v2487, %v2486
    %v2489 = vmul.f32 0.5, %v2488
    %v2490 = vsub.f32 1.5, %v2489
    %v2491 = vmul.f32 %v2486, %v2490
    %vm2492 = vweird.f32 %v2455
    %vm2493 = vweird.f32 %v2486
    %vm2494 = vmor %vm2492, %vm2493
    %v2495 = vsel %vm2494, %v2486, %v2491
    %v2496 = vmul.f32 %v2428, %v2465
    %v2497 = vmul.f32 %v2429, %v2475
    %v2498 = vmul.f32 %v2430, %v2485
    %v2499 = vmul.f32 %v2431, %v2495
    %v2501 = vperm.slane %v2409, 0
    %v2503 = vmul.f32 %v2496, %v2501
    %v2504 = vmul.f32 %v2497, %v2501
    %v2505 = vmul.f32 %v2498, %v2501
    %v2506 = vmul.f32 %v2499, %v2501
    %v2508 = vperm.slane %v2411, 0
    %v2510 = vadd.f32 %v2503, %v2508
    %v2511 = vadd.f32 %v2504, %v2508
    %v2512 = vadd.f32 %v2505, %v2508
    %v2513 = vadd.f32 %v2506, %v2508
    %v2514 = vld [vmem:[#allocation2] sm:$0xff]
    %v2516 = vsel %vm201, %v2514, 0
    %2518 = vmatpush.msra.mxu0 0.0
    %2519 = vmatpush.msra.mxu0 0.0
    %2520 = vmatpush.msra.mxu0 0.0
    %2521 = vmatpush.msra.mxu0 0.0
    %2522 = vmatpush.msra.mxu0 0.0
    %2523 = vmatpush.msra.mxu0 0.0
    %2524 = vmatpush.msra.mxu0 0.0
    %2525 = vmatpush.msra.mxu0 0.0
    %2526 = vmatpush.msra.mxu0 0.0
    %2527 = vmatpush.msra.mxu0 0.0
    %2528 = vmatpush.msra.mxu0 0.0
    %2529 = vmatpush.msra.mxu0 0.0
    %2530 = vmatpush.msra.mxu0 %v2513
    %2531 = vmatpush.msra.mxu0 %v2512
    %2532 = vmatpush.msra.mxu0 %v2511
    %2533 = vmatpush.msra.mxu0 %v2510
    %2534 = vmatmul.f32.gmra.mxu0 %v2516
    %v2535 = vpop.f32.mrf.mxu0
    %v2536 = vadd.f32 0.0, %v2535
    %2537 = vdwg.mxu0
    %v2538 = vpack.c.bf16 %v2536, %v2536
    %v2539 = vld [vmem:[#allocation11] sm:$0xf]
    %v2540 = vld [vmem:[#allocation11 + $0x4] sm:$0xf]
    %v2541 = vld [vmem:[#allocation11 + $0x8] sm:$0xf]
    %v2542 = vld [vmem:[#allocation11 + $0xc] sm:$0xf]
    %v2543 = vld [vmem:[%s16] sm:$0x1]
    %v2545 = vperm.slane %v2543, 0
    %v2551 = vunpack.c.l.b16 %v2539
    %v2552 = vunpack.c.l.b16 %v2540
    %v2553 = vunpack.c.l.b16 %v2541
    %v2554 = vunpack.c.l.b16 %v2542
    %v2555 = vpack.c.b16 %v2552, %v2551
    %v2556 = vpack.c.b16 %v2554, %v2553
    %v2560 = vsel %vm201, %v2538, 0
    %2562 = vmatpush.bf16.msra.mxu0 0
    %2563 = vmatpush.bf16.msra.mxu0 0
    %2564 = vmatpush.bf16.msra.mxu0 0
    %2565 = vmatpush.bf16.msra.mxu0 0
    %2566 = vmatpush.bf16.msra.mxu0 0
    %2567 = vmatpush.bf16.msra.mxu0 0
    %2568 = vmatpush.bf16.msra.mxu0 %v2556
    %2569 = vmatpush.bf16.msra.mxu0 %v2555
    %2570 = vmatmul.bf16.gmra.mxu0 %v2560
    %v2571 = vpop.f32.mrf.mxu0
    %v2572 = vadd.f32 %v2545, %v2571
    %v2573 = vpop.f32.mrf.mxu0
    %2574 = vdwg.mxu0
    %vm2575 = vcmp.gt.f32.partialorder %v2572, 20.0
    %v2576 = vmin.f32 %v2572, 20.0
    %v2577 = vmul.f32 %v2576, 1.442695
    %v2578 = vpow.pop %v2577
    %v2579 = vadd.f32 %v2578, 1.0
    %v2580 = vlog2.pop %v2579
    %v2581 = vmul.f32 %v2580, 0.6931472
    %v2582 = vmul.f32 -0.5, %v2578
    %v2583 = vadd.f32 %v2582, 1.0
    %v2584 = vmul.f32 %v2583, %v2578
    %v2585 = vand.u32 2147483647, %v2578
    %vm2586 = vcmp.lt.f32.partialorder %v2585, 0.0004427343
    %v2587 = vsel %vm2586, %v2584, %v2581
    %v2588 = vsel %vm2575, %v2572, %v2587
    %v2589 = vpack.c.bf16 %v2588, %v2588
    %v2590 = vld [vmem:[#allocation13] sm:$0xf]
    %v2591 = vld [vmem:[#allocation13 + $0x4] sm:$0xf]
    %v2592 = vld [vmem:[#allocation13 + $0x8] sm:$0xf]
    %v2593 = vld [vmem:[#allocation13 + $0xc] sm:$0xf]
    %v2594 = vld [vmem:[%s18] sm:$0x1]
    %v2596 = vperm.slane %v2594, 0
    %v2602 = vunpack.c.l.b16 %v2590
    %v2603 = vunpack.c.l.b16 %v2591
    %v2604 = vunpack.c.l.b16 %v2592
    %v2605 = vunpack.c.l.b16 %v2593
    %v2606 = vpack.c.b16 %v2603, %v2602
    %v2607 = vpack.c.b16 %v2605, %v2604
    %v2611 = vsel %vm201, %v2589, 0
    %2613 = vmatpush.bf16.msra.mxu0 0
    %2614 = vmatpush.bf16.msra.mxu0 0
    %2615 = vmatpush.bf16.msra.mxu0 0
    %2616 = vmatpush.bf16.msra.mxu0 0
    %2617 = vmatpush.bf16.msra.mxu0 0
    %2618 = vmatpush.bf16.msra.mxu0 0
    %2619 = vmatpush.bf16.msra.mxu0 %v2607
    %2620 = vmatpush.bf16.msra.mxu0 %v2606
    %2621 = vmatmul.bf16.gmra.mxu0 %v2611
    %v2622 = vpop.f32.mrf.mxu0
    %v2623 = vadd.f32 %v2596, %v2622
    %v2624 = vpop.f32.mrf.mxu0
    %2625 = vdwg.mxu0
    %2626 = vst.msk [vmem:[#allocation14] sm:$0xff] %vm201, %v2623
    // Predicated region
    $region106: #{tpu_custom_call.1} parent=1 // pred_check
      _
    $region107: #{tpu_custom_call.1} parent=1 // pred_check_branch
      %2628 = sbr.rel (0) target = $region109
    $region108: #{tpu_custom_call.1} parent=1 // pred_region
      %2630 = vsyncadd [#allocation4], 0
      %s2632 = sshll.u32 [#allocation14], 4
      %s2633 = int_to_ptr.vmem [resolvable:$true] %s2632
      %s2634 = sshll.u32 %s19, 4
      %s2635 = int_to_ptr.hbm [resolvable:$true] %s2634
      %2637 = dma.vmem_to_hbm [thread:$0]  %s2633, 128, %s2635, [#allocation4]
    $region109: #{tpu_custom_call.1} parent=1 // pred_fallthru
      _
    // Predicated region
    $region110: #{tpu_custom_call.1} parent=1 // pred_check
      _
    $region111: #{tpu_custom_call.1} parent=1 // pred_check_branch
      %2639 = sbr.rel (0) target = $region113
    $region112: #{tpu_custom_call.1} parent=1 // pred_region
      %2641 = dma.done [#allocation4], 128
    $region113: #{tpu_custom_call.1} parent=1 // pred_fallthru
      _
    %2642 = vsyncpa [#allocation3], 1
    %2643 = vsyncpa [#allocation6], 1
    %2644 = vsyncpa [#allocation9], 1
    %2645 = vsyncpa [#allocation12], 1
    %2646 = vsyncpa [#allocation4], 1

</llo_original>
